<compile_context>
chip_gen: v7x
topology: tpu7x:2x2x1
jax: 0.10.0
libtpu: 0.0.40
codegen_flags: <defaults>
</compile_context>

<pallas_src>
import jax
import jax.numpy as jnp
from jax import lax
from jax.experimental import pallas as pl
from jax.experimental.pallas import tpu as pltpu

EMB = 32       # config.emb_size
HID = 32       # config.encoder_hidden_size
VOCAB = 64
T = 16         # sequence length
B = 2          # batch


# ------------------------- fused forward kernel ----------------------------- #
def gated_rnn_encoder_kernel(ids_ref, len_ref, embproj_ref, whh_ref, b_ref,
                             wg_ref, bg_ref,
                             out_ref, hN_ref, cN_ref):
    # ids_ref:     (T*B, 1) int32          len_ref: (B, 1) int32
    # embproj_ref: (V, 4H)  = embedding @ W_ih^T   (g columns pre-scaled by 2)
    # whh_ref:     (H, 4H)  (g columns pre-scaled by 2)
    # b_ref:       (1, 4H)  = b_ih + b_hh  (g columns pre-scaled by 2)
    # wg_ref:      (1, H)   gating Linear weight (row layout for VPU broadcast)
    # bg_ref:      (1, 1)
    # out_ref:     (B, T*H) lane-dense output slab
    # hN_ref/cN_ref: (B, H)
    TB = ids_ref.shape[0]
    B_ = len_ref.shape[0]
    T_ = TB // B_
    H = whh_ref.shape[0]
    V = embproj_ref.shape[0]

    ids = ids_ref[...]                                      # (TB, 1) int32
    lengths = len_ref[...]                                  # (B, 1) int32

    # ---- embedding gather + input projection fused into ONE MXU pass ----
    # xproj[t*B + b] = onehot(id) @ (embedding @ W_ih^T) + bias
    iota_v = lax.broadcasted_iota(jnp.int32, (TB, V), 1)
    onehot = (iota_v == ids).astype(jnp.float32)            # (TB, V)
    xproj = jnp.dot(onehot, embproj_ref[...],
                    preferred_element_type=jnp.float32) + b_ref[...]   # (TB, 4H)

    whh = whh_ref[...]                                      # (H, 4H)
    wg = wg_ref[...]                                        # (1, H)
    bg = bg_ref[...]                                        # (1, 1)

    # lane mask selecting the g-gate lanes [2H, 3H) (PyTorch gate order i,f,g,o)
    lane = lax.broadcasted_iota(jnp.int32, (B_, 4 * H), 1)
    g_lanes = (lane >= 2 * H) & (lane < 3 * H)

    h = jnp.zeros((B_, H), jnp.float32)
    c = jnp.zeros((B_, H), jnp.float32)
    # Fully unrolled recurrence (T is small & static); only h @ W_hh sits on the
    # loop-carried critical path.
    for t in range(T_):
        gates = xproj[t * B_:(t + 1) * B_, :] + jnp.dot(
            h, whh, preferred_element_type=jnp.float32)     # (B, 4H) = (8, 128)
        # single EUP pass: sigmoid over all lanes; g gate recovered as
        # tanh(x) = 2*sigmoid(2x) - 1 (g columns were pre-scaled by 2).
        acts = jax.nn.sigmoid(gates)
        acts = jnp.where(g_lanes, 2.0 * acts - 1.0, acts)
        i = acts[:, 0 * H:1 * H]
        f = acts[:, 1 * H:2 * H]
        g = acts[:, 2 * H:3 * H]
        o = acts[:, 3 * H:4 * H]
        c_new = f * c + i * g
        h_new = o * jnp.tanh(c_new)

        # packed-sequence semantics: padded steps freeze state, output zero.
        m = jnp.broadcast_to(lengths > t, (B_, H))          # one broadcast, reused
        h = jnp.where(m, h_new, h)
        c = jnp.where(m, c_new, c)
        out_t = jnp.where(m, h_new, 0.0)

        # gated projection on VPU/XLU (no N=1 MXU matmul), off the h/c chain;
        # per-step store into the lane-dense output slab (idle vst slot).
        p = jax.nn.sigmoid(
            jnp.sum(out_t * wg, axis=-1, keepdims=True) + bg)   # (B, 1)
        out_ref[:, t * H:(t + 1) * H] = out_t * p

    hN_ref[...] = h                                         # state at last valid step
    cN_ref[...] = c


# -------------------------------- wrapper ------------------------------------ #
def _vmem_spec():
    return pl.BlockSpec(memory_space=pltpu.MemorySpace.VMEM)


def prepare_params(params):
    """One-time weight preprocessing (fold embedding into W_ih, scale g gate x2)."""
    H = params["whh"].shape[0]
    scale = jnp.concatenate(
        [jnp.ones((1, 2 * H), jnp.float32),
         2.0 * jnp.ones((1, H), jnp.float32),
         jnp.ones((1, H), jnp.float32)], axis=1)            # (1, 4H)
    emb_proj = jnp.dot(params["embedding"], params["wih"])  # (V, 4H)
    return {
        "emb_proj": (emb_proj * scale).astype(jnp.float32),
        "whh": (params["whh"] * scale).astype(jnp.float32),
        "b": (params["b"] * scale).astype(jnp.float32),
        "wg": params["wg"].reshape(1, H).astype(jnp.float32),
        "bg": params["bg"].astype(jnp.float32),
    }


@jax.jit
def gated_rnn_encoder_forward(prepped, input_ids, lengths):
    # input_ids: (T, B) int32 token ids; lengths: (B,) int32 (sorted desc, as pack() requires).
    T_, B_ = input_ids.shape
    H = prepped["whh"].shape[0]

    # pad batch to a multiple of 8 so every vector op fills the sublane axis
    B_pad = ((B_ + 7) // 8) * 8
    ids = input_ids.astype(jnp.int32)
    lens = lengths.astype(jnp.int32)
    if B_pad != B_:
        ids = jnp.pad(ids, ((0, 0), (0, B_pad - B_)))
        lens = jnp.pad(lens, (0, B_pad - B_))               # length 0 -> inert rows

    ids_flat = ids.reshape(T_ * B_pad, 1)                   # row-major (T, B) flatten
    len2 = lens.reshape(B_pad, 1)

    out_bth, hN, cN = pl.pallas_call(
        gated_rnn_encoder_kernel,
        out_shape=(
            jax.ShapeDtypeStruct((B_pad, T_ * H), jnp.float32),   # lane-dense slab
            jax.ShapeDtypeStruct((B_pad, H), jnp.float32),
            jax.ShapeDtypeStruct((B_pad, H), jnp.float32),
        ),
        in_specs=[_vmem_spec() for _ in range(7)],
        out_specs=(_vmem_spec(), _vmem_spec(), _vmem_spec()),
    )(ids_flat, len2,
      prepped["emb_proj"], prepped["whh"], prepped["b"],
      prepped["wg"], prepped["bg"])

    # (B_pad, T*H) -> (T, B, H); tiny reshape/transpose in the wrapper
    outputs = out_bth.reshape(B_pad, T_, H).transpose(1, 0, 2)[:, :B_, :]
    state = (hN[None, :B_, :], cN[None, :B_, :])            # (num_layers=1, B, H) each
    return outputs, state


def init_params(key):
    ks = jax.random.split(key, 7)
    s = 0.1
    f32 = jnp.float32
    return {
        # nn.Embedding(vocab, emb)
        "embedding": jax.random.normal(ks[0], (VOCAB, EMB), f32) * s,
        # nn.LSTM weights pre-transposed: W_ih^T (E,4H), W_hh^T (H,4H),
        # bias = b_ih + b_hh (1,4H).  Gate order [i, f, g, o].
        "wih": jax.random.normal(ks[1], (EMB, 4 * HID), f32) * s,
        "whh": jax.random.normal(ks[2], (HID, 4 * HID), f32) * s,
        "b":   jax.random.normal(ks[3], (1, 4 * HID), f32) * s,
        # gated = Sequential(Linear(H, 1), Sigmoid()); Linear weight pre-transposed (H,1)
        "wg": jax.random.normal(ks[4], (HID, 1), f32) * s,
        "bg": jax.random.normal(ks[5], (1, 1), f32) * s,
    }


if __name__ == "__main__":
    key = jax.random.PRNGKey(0)
    pkey, ikey = jax.random.split(key)
    params = init_params(pkey)
    prepped = prepare_params(params)

    input_ids = jax.random.randint(ikey, (T, B), 0, VOCAB, dtype=jnp.int32)
    lengths = jnp.array([T, T - 3], dtype=jnp.int32)   # sorted desc, as pack() requires

    outputs, state = gated_rnn_encoder_forward(prepped, input_ids, lengths)
    jax.block_until_ready((outputs, state))

    assert outputs.shape == (T, B, HID)
    assert state[0].shape == (1, B, HID) and state[1].shape == (1, B, HID)
    assert bool(jnp.all(jnp.isfinite(outputs)))
    assert bool(jnp.all(jnp.isfinite(state[0]))) and bool(jnp.all(jnp.isfinite(state[1])))
    # padded timesteps of the shorter sequence must be exactly zero (unpack semantics)
    assert bool(jnp.all(outputs[T - 3:, 1, :] == 0.0))
    print("KERNEL_OK")
</pallas_src>

<mosaic_0001>
module attributes {stable_mosaic.version = 11 : i64} {
  func.func @gated_rnn_encoder_kernel(%arg0: memref<128x1xi32, #tpu.memory_space<vmem>>, %arg1: memref<8x1xi32, #tpu.memory_space<vmem>>, %arg2: memref<64x128xf32, #tpu.memory_space<vmem>>, %arg3: memref<32x128xf32, #tpu.memory_space<vmem>>, %arg4: memref<1x128xf32, #tpu.memory_space<vmem>>, %arg5: memref<1x32xf32, #tpu.memory_space<vmem>>, %arg6: memref<1x1xf32, #tpu.memory_space<vmem>>, %arg7: memref<8x512xf32, #tpu.memory_space<vmem>>, %arg8: memref<8x32xf32, #tpu.memory_space<vmem>>, %arg9: memref<8x32xf32, #tpu.memory_space<vmem>>) attributes {dimension_semantics = [], scalar_prefetch = 0 : i64, scratch_operands = 0 : i64, tpu.core_type = #tpu.core_type<tc>} {
    %c0 = arith.constant 0 : index
    %c0_0 = arith.constant 0 : index
    %0 = vector.load %arg0[%c0, %c0_0] : memref<128x1xi32, #tpu.memory_space<vmem>>, vector<128x1xi32>
    %c0_1 = arith.constant 0 : index
    %c0_2 = arith.constant 0 : index
    %1 = vector.load %arg1[%c0_1, %c0_2] : memref<8x1xi32, #tpu.memory_space<vmem>>, vector<8x1xi32>
    %2 = tpu.iota {dimensions = array<i32: 1>} : vector<128x64xi32>
    %3 = vector.broadcast %0 : vector<128x1xi32> to vector<128x64xi32>
    %4 = arith.cmpi eq, %2, %3 : vector<128x64xi32>
    %5 = arith.extui %4 : vector<128x64xi1> to vector<128x64xi32>
    %6 = arith.sitofp %5 : vector<128x64xi32> to vector<128x64xf32>
    %c0_3 = arith.constant 0 : index
    %c0_4 = arith.constant 0 : index
    %7 = vector.load %arg2[%c0_3, %c0_4] : memref<64x128xf32, #tpu.memory_space<vmem>>, vector<64x128xf32>
    %cst = arith.constant dense<0.000000e+00> : vector<128x128xf32>
    %8 = tpu.matmul %6, %7, %cst {dimension_numbers = #tpu.dot_dimension_numbers<[1], [0], [0], [1], [0, 0, 1, 1], [], []>} : vector<128x64xf32>, vector<64x128xf32>, vector<128x128xf32> -> vector<128x128xf32>
    %c0_5 = arith.constant 0 : index
    %c0_6 = arith.constant 0 : index
    %9 = vector.load %arg4[%c0_5, %c0_6] : memref<1x128xf32, #tpu.memory_space<vmem>>, vector<1x128xf32>
    %10 = vector.broadcast %9 : vector<1x128xf32> to vector<128x128xf32>
    %11 = arith.addf %8, %10 : vector<128x128xf32>
    %c0_7 = arith.constant 0 : index
    %c0_8 = arith.constant 0 : index
    %12 = vector.load %arg3[%c0_7, %c0_8] : memref<32x128xf32, #tpu.memory_space<vmem>>, vector<32x128xf32>
    %c0_9 = arith.constant 0 : index
    %c0_10 = arith.constant 0 : index
    %13 = vector.load %arg5[%c0_9, %c0_10] : memref<1x32xf32, #tpu.memory_space<vmem>>, vector<1x32xf32>
    %c0_11 = arith.constant 0 : index
    %c0_12 = arith.constant 0 : index
    %14 = vector.load %arg6[%c0_11, %c0_12] : memref<1x1xf32, #tpu.memory_space<vmem>>, vector<1x1xf32>
    %15 = tpu.iota {dimensions = array<i32: 1>} : vector<8x128xi32>
    %c64_i32 = arith.constant 64 : i32
    %16 = vector.broadcast %c64_i32 : i32 to vector<8x128xi32>
    %17 = arith.cmpi sge, %15, %16 : vector<8x128xi32>
    %c96_i32 = arith.constant 96 : i32
    %18 = vector.broadcast %c96_i32 : i32 to vector<8x128xi32>
    %19 = arith.cmpi slt, %15, %18 : vector<8x128xi32>
    %20 = arith.andi %17, %19 : vector<8x128xi1>
    %cst_13 = arith.constant 0.000000e+00 : f32
    %21 = vector.broadcast %cst_13 : f32 to vector<8x32xf32>
    %cst_14 = arith.constant 0.000000e+00 : f32
    %22 = vector.broadcast %cst_14 : f32 to vector<8x32xf32>
    %23 = vector.extract_strided_slice %11 {offsets = [0, 0], sizes = [8, 128], strides = [1, 1]} : vector<128x128xf32> to vector<8x128xf32>
    %cst_15 = arith.constant dense<0.000000e+00> : vector<8x128xf32>
    %24 = tpu.matmul %21, %12, %cst_15 {dimension_numbers = #tpu.dot_dimension_numbers<[1], [0], [0], [1], [0, 0, 1, 1], [], []>} : vector<8x32xf32>, vector<32x128xf32>, vector<8x128xf32> -> vector<8x128xf32>
    %25 = arith.addf %23, %24 : vector<8x128xf32>
    %26 = arith.negf %25 : vector<8x128xf32>
    %27 = math.exp %26 : vector<8x128xf32>
    %cst_16 = arith.constant 1.000000e+00 : f32
    %28 = vector.broadcast %cst_16 : f32 to vector<8x128xf32>
    %29 = arith.addf %28, %27 : vector<8x128xf32>
    %30 = arith.divf %28, %29 : vector<8x128xf32>
    %cst_17 = arith.constant 2.000000e+00 : f32
    %31 = vector.broadcast %cst_17 : f32 to vector<8x128xf32>
    %32 = arith.mulf %31, %30 : vector<8x128xf32>
    %cst_18 = arith.constant 1.000000e+00 : f32
    %33 = vector.broadcast %cst_18 : f32 to vector<8x128xf32>
    %34 = arith.subf %32, %33 : vector<8x128xf32>
    %35 = arith.select %20, %34, %30 : vector<8x128xi1>, vector<8x128xf32>
    %36 = vector.extract_strided_slice %35 {offsets = [0, 0], sizes = [8, 32], strides = [1, 1]} : vector<8x128xf32> to vector<8x32xf32>
    %37 = vector.extract_strided_slice %35 {offsets = [0, 32], sizes = [8, 32], strides = [1, 1]} : vector<8x128xf32> to vector<8x32xf32>
    %38 = vector.extract_strided_slice %35 {offsets = [0, 64], sizes = [8, 32], strides = [1, 1]} : vector<8x128xf32> to vector<8x32xf32>
    %39 = vector.extract_strided_slice %35 {offsets = [0, 96], sizes = [8, 32], strides = [1, 1]} : vector<8x128xf32> to vector<8x32xf32>
    %40 = arith.mulf %37, %22 : vector<8x32xf32>
    %41 = arith.mulf %36, %38 : vector<8x32xf32>
    %42 = arith.addf %40, %41 : vector<8x32xf32>
    %43 = math.tanh %42 : vector<8x32xf32>
    %44 = arith.mulf %39, %43 : vector<8x32xf32>
    %c0_i32 = arith.constant 0 : i32
    %45 = vector.broadcast %c0_i32 : i32 to vector<8x1xi32>
    %46 = arith.cmpi sgt, %1, %45 : vector<8x1xi32>
    %47 = vector.shape_cast %46 : vector<8x1xi1> to vector<8x1xi1>
    %48 = vector.broadcast %47 : vector<8x1xi1> to vector<8x32xi1>
    %49 = arith.select %48, %44, %21 : vector<8x32xi1>, vector<8x32xf32>
    %50 = arith.select %48, %42, %22 : vector<8x32xi1>, vector<8x32xf32>
    %cst_19 = arith.constant 0.000000e+00 : f32
    %51 = vector.broadcast %cst_19 : f32 to vector<8x32xf32>
    %52 = arith.select %48, %44, %51 : vector<8x32xi1>, vector<8x32xf32>
    %53 = vector.broadcast %13 : vector<1x32xf32> to vector<8x32xf32>
    %54 = arith.mulf %52, %53 : vector<8x32xf32>
    %cst_20 = arith.constant dense<0.000000e+00> : vector<8xf32>
    %55 = vector.multi_reduction <add>, %54, %cst_20 [1] : vector<8x32xf32> to vector<8xf32>
    %56 = vector.shape_cast %55 : vector<8xf32> to vector<8x1xf32>
    %57 = vector.broadcast %14 : vector<1x1xf32> to vector<8x1xf32>
    %58 = arith.addf %56, %57 : vector<8x1xf32>
    %59 = arith.negf %58 : vector<8x1xf32>
    %60 = math.exp %59 : vector<8x1xf32>
    %cst_21 = arith.constant 1.000000e+00 : f32
    %61 = vector.broadcast %cst_21 : f32 to vector<8x1xf32>
    %62 = arith.addf %61, %60 : vector<8x1xf32>
    %63 = arith.divf %61, %62 : vector<8x1xf32>
    %64 = vector.broadcast %63 : vector<8x1xf32> to vector<8x32xf32>
    %65 = arith.mulf %52, %64 : vector<8x32xf32>
    %c0_22 = arith.constant 0 : index
    %c0_23 = arith.constant 0 : index
    %66 = vector.load %arg7[%c0_22, %c0_23] : memref<8x512xf32, #tpu.memory_space<vmem>>, vector<8x32xf32>
    tpu.vector_store %arg7[%c0_22, %c0_23], %65 {strides = array<i32>} : memref<8x512xf32, #tpu.memory_space<vmem>>, vector<8x32xf32>,
    %67 = vector.extract_strided_slice %11 {offsets = [8, 0], sizes = [8, 128], strides = [1, 1]} : vector<128x128xf32> to vector<8x128xf32>
    %cst_24 = arith.constant dense<0.000000e+00> : vector<8x128xf32>
    %68 = tpu.matmul %49, %12, %cst_24 {dimension_numbers = #tpu.dot_dimension_numbers<[1], [0], [0], [1], [0, 0, 1, 1], [], []>} : vector<8x32xf32>, vector<32x128xf32>, vector<8x128xf32> -> vector<8x128xf32>
    %69 = arith.addf %67, %68 : vector<8x128xf32>
    %70 = arith.negf %69 : vector<8x128xf32>
    %71 = math.exp %70 : vector<8x128xf32>
    %cst_25 = arith.constant 1.000000e+00 : f32
    %72 = vector.broadcast %cst_25 : f32 to vector<8x128xf32>
    %73 = arith.addf %72, %71 : vector<8x128xf32>
    %74 = arith.divf %72, %73 : vector<8x128xf32>
    %cst_26 = arith.constant 2.000000e+00 : f32
    %75 = vector.broadcast %cst_26 : f32 to vector<8x128xf32>
    %76 = arith.mulf %75, %74 : vector<8x128xf32>
    %cst_27 = arith.constant 1.000000e+00 : f32
    %77 = vector.broadcast %cst_27 : f32 to vector<8x128xf32>
    %78 = arith.subf %76, %77 : vector<8x128xf32>
    %79 = arith.select %20, %78, %74 : vector<8x128xi1>, vector<8x128xf32>
    %80 = vector.extract_strided_slice %79 {offsets = [0, 0], sizes = [8, 32], strides = [1, 1]} : vector<8x128xf32> to vector<8x32xf32>
    %81 = vector.extract_strided_slice %79 {offsets = [0, 32], sizes = [8, 32], strides = [1, 1]} : vector<8x128xf32> to vector<8x32xf32>
    %82 = vector.extract_strided_slice %79 {offsets = [0, 64], sizes = [8, 32], strides = [1, 1]} : vector<8x128xf32> to vector<8x32xf32>
    %83 = vector.extract_strided_slice %79 {offsets = [0, 96], sizes = [8, 32], strides = [1, 1]} : vector<8x128xf32> to vector<8x32xf32>
    %84 = arith.mulf %81, %50 : vector<8x32xf32>
    %85 = arith.mulf %80, %82 : vector<8x32xf32>
    %86 = arith.addf %84, %85 : vector<8x32xf32>
    %87 = math.tanh %86 : vector<8x32xf32>
    %88 = arith.mulf %83, %87 : vector<8x32xf32>
    %c1_i32 = arith.constant 1 : i32
    %89 = vector.broadcast %c1_i32 : i32 to vector<8x1xi32>
    %90 = arith.cmpi sgt, %1, %89 : vector<8x1xi32>
    %91 = vector.shape_cast %90 : vector<8x1xi1> to vector<8x1xi1>
    %92 = vector.broadcast %91 : vector<8x1xi1> to vector<8x32xi1>
    %93 = arith.select %92, %88, %49 : vector<8x32xi1>, vector<8x32xf32>
    %94 = arith.select %92, %86, %50 : vector<8x32xi1>, vector<8x32xf32>
    %cst_28 = arith.constant 0.000000e+00 : f32
    %95 = vector.broadcast %cst_28 : f32 to vector<8x32xf32>
    %96 = arith.select %92, %88, %95 : vector<8x32xi1>, vector<8x32xf32>
    %97 = vector.broadcast %13 : vector<1x32xf32> to vector<8x32xf32>
    %98 = arith.mulf %96, %97 : vector<8x32xf32>
    %cst_29 = arith.constant dense<0.000000e+00> : vector<8xf32>
    %99 = vector.multi_reduction <add>, %98, %cst_29 [1] : vector<8x32xf32> to vector<8xf32>
    %100 = vector.shape_cast %99 : vector<8xf32> to vector<8x1xf32>
    %101 = vector.broadcast %14 : vector<1x1xf32> to vector<8x1xf32>
    %102 = arith.addf %100, %101 : vector<8x1xf32>
    %103 = arith.negf %102 : vector<8x1xf32>
    %104 = math.exp %103 : vector<8x1xf32>
    %cst_30 = arith.constant 1.000000e+00 : f32
    %105 = vector.broadcast %cst_30 : f32 to vector<8x1xf32>
    %106 = arith.addf %105, %104 : vector<8x1xf32>
    %107 = arith.divf %105, %106 : vector<8x1xf32>
    %108 = vector.broadcast %107 : vector<8x1xf32> to vector<8x32xf32>
    %109 = arith.mulf %96, %108 : vector<8x32xf32>
    %c0_31 = arith.constant 0 : index
    %c32 = arith.constant 32 : index
    %110 = vector.load %arg7[%c0_31, %c32] : memref<8x512xf32, #tpu.memory_space<vmem>>, vector<8x32xf32>
    tpu.vector_store %arg7[%c0_31, %c32], %109 {strides = array<i32>} : memref<8x512xf32, #tpu.memory_space<vmem>>, vector<8x32xf32>,
    %111 = vector.extract_strided_slice %11 {offsets = [16, 0], sizes = [8, 128], strides = [1, 1]} : vector<128x128xf32> to vector<8x128xf32>
    %cst_32 = arith.constant dense<0.000000e+00> : vector<8x128xf32>
    %112 = tpu.matmul %93, %12, %cst_32 {dimension_numbers = #tpu.dot_dimension_numbers<[1], [0], [0], [1], [0, 0, 1, 1], [], []>} : vector<8x32xf32>, vector<32x128xf32>, vector<8x128xf32> -> vector<8x128xf32>
    %113 = arith.addf %111, %112 : vector<8x128xf32>
    %114 = arith.negf %113 : vector<8x128xf32>
    %115 = math.exp %114 : vector<8x128xf32>
    %cst_33 = arith.constant 1.000000e+00 : f32
    %116 = vector.broadcast %cst_33 : f32 to vector<8x128xf32>
    %117 = arith.addf %116, %115 : vector<8x128xf32>
    %118 = arith.divf %116, %117 : vector<8x128xf32>
    %cst_34 = arith.constant 2.000000e+00 : f32
    %119 = vector.broadcast %cst_34 : f32 to vector<8x128xf32>
    %120 = arith.mulf %119, %118 : vector<8x128xf32>
    %cst_35 = arith.constant 1.000000e+00 : f32
    %121 = vector.broadcast %cst_35 : f32 to vector<8x128xf32>
    %122 = arith.subf %120, %121 : vector<8x128xf32>
    %123 = arith.select %20, %122, %118 : vector<8x128xi1>, vector<8x128xf32>
    %124 = vector.extract_strided_slice %123 {offsets = [0, 0], sizes = [8, 32], strides = [1, 1]} : vector<8x128xf32> to vector<8x32xf32>
    %125 = vector.extract_strided_slice %123 {offsets = [0, 32], sizes = [8, 32], strides = [1, 1]} : vector<8x128xf32> to vector<8x32xf32>
    %126 = vector.extract_strided_slice %123 {offsets = [0, 64], sizes = [8, 32], strides = [1, 1]} : vector<8x128xf32> to vector<8x32xf32>
    %127 = vector.extract_strided_slice %123 {offsets = [0, 96], sizes = [8, 32], strides = [1, 1]} : vector<8x128xf32> to vector<8x32xf32>
    %128 = arith.mulf %125, %94 : vector<8x32xf32>
    %129 = arith.mulf %124, %126 : vector<8x32xf32>
    %130 = arith.addf %128, %129 : vector<8x32xf32>
    %131 = math.tanh %130 : vector<8x32xf32>
    %132 = arith.mulf %127, %131 : vector<8x32xf32>
    %c2_i32 = arith.constant 2 : i32
    %133 = vector.broadcast %c2_i32 : i32 to vector<8x1xi32>
    %134 = arith.cmpi sgt, %1, %133 : vector<8x1xi32>
    %135 = vector.shape_cast %134 : vector<8x1xi1> to vector<8x1xi1>
    %136 = vector.broadcast %135 : vector<8x1xi1> to vector<8x32xi1>
    %137 = arith.select %136, %132, %93 : vector<8x32xi1>, vector<8x32xf32>
    %138 = arith.select %136, %130, %94 : vector<8x32xi1>, vector<8x32xf32>
    %cst_36 = arith.constant 0.000000e+00 : f32
    %139 = vector.broadcast %cst_36 : f32 to vector<8x32xf32>
    %140 = arith.select %136, %132, %139 : vector<8x32xi1>, vector<8x32xf32>
    %141 = vector.broadcast %13 : vector<1x32xf32> to vector<8x32xf32>
    %142 = arith.mulf %140, %141 : vector<8x32xf32>
    %cst_37 = arith.constant dense<0.000000e+00> : vector<8xf32>
    %143 = vector.multi_reduction <add>, %142, %cst_37 [1] : vector<8x32xf32> to vector<8xf32>
    %144 = vector.shape_cast %143 : vector<8xf32> to vector<8x1xf32>
    %145 = vector.broadcast %14 : vector<1x1xf32> to vector<8x1xf32>
    %146 = arith.addf %144, %145 : vector<8x1xf32>
    %147 = arith.negf %146 : vector<8x1xf32>
    %148 = math.exp %147 : vector<8x1xf32>
    %cst_38 = arith.constant 1.000000e+00 : f32
    %149 = vector.broadcast %cst_38 : f32 to vector<8x1xf32>
    %150 = arith.addf %149, %148 : vector<8x1xf32>
    %151 = arith.divf %149, %150 : vector<8x1xf32>
    %152 = vector.broadcast %151 : vector<8x1xf32> to vector<8x32xf32>
    %153 = arith.mulf %140, %152 : vector<8x32xf32>
    %c0_39 = arith.constant 0 : index
    %c64 = arith.constant 64 : index
    %154 = vector.load %arg7[%c0_39, %c64] : memref<8x512xf32, #tpu.memory_space<vmem>>, vector<8x32xf32>
    tpu.vector_store %arg7[%c0_39, %c64], %153 {strides = array<i32>} : memref<8x512xf32, #tpu.memory_space<vmem>>, vector<8x32xf32>,
    %155 = vector.extract_strided_slice %11 {offsets = [24, 0], sizes = [8, 128], strides = [1, 1]} : vector<128x128xf32> to vector<8x128xf32>
    %cst_40 = arith.constant dense<0.000000e+00> : vector<8x128xf32>
    %156 = tpu.matmul %137, %12, %cst_40 {dimension_numbers = #tpu.dot_dimension_numbers<[1], [0], [0], [1], [0, 0, 1, 1], [], []>} : vector<8x32xf32>, vector<32x128xf32>, vector<8x128xf32> -> vector<8x128xf32>
    %157 = arith.addf %155, %156 : vector<8x128xf32>
    %158 = arith.negf %157 : vector<8x128xf32>
    %159 = math.exp %158 : vector<8x128xf32>
    %cst_41 = arith.constant 1.000000e+00 : f32
    %160 = vector.broadcast %cst_41 : f32 to vector<8x128xf32>
    %161 = arith.addf %160, %159 : vector<8x128xf32>
    %162 = arith.divf %160, %161 : vector<8x128xf32>
    %cst_42 = arith.constant 2.000000e+00 : f32
    %163 = vector.broadcast %cst_42 : f32 to vector<8x128xf32>
    %164 = arith.mulf %163, %162 : vector<8x128xf32>
    %cst_43 = arith.constant 1.000000e+00 : f32
    %165 = vector.broadcast %cst_43 : f32 to vector<8x128xf32>
    %166 = arith.subf %164, %165 : vector<8x128xf32>
    %167 = arith.select %20, %166, %162 : vector<8x128xi1>, vector<8x128xf32>
    %168 = vector.extract_strided_slice %167 {offsets = [0, 0], sizes = [8, 32], strides = [1, 1]} : vector<8x128xf32> to vector<8x32xf32>
    %169 = vector.extract_strided_slice %167 {offsets = [0, 32], sizes = [8, 32], strides = [1, 1]} : vector<8x128xf32> to vector<8x32xf32>
    %170 = vector.extract_strided_slice %167 {offsets = [0, 64], sizes = [8, 32], strides = [1, 1]} : vector<8x128xf32> to vector<8x32xf32>
    %171 = vector.extract_strided_slice %167 {offsets = [0, 96], sizes = [8, 32], strides = [1, 1]} : vector<8x128xf32> to vector<8x32xf32>
    %172 = arith.mulf %169, %138 : vector<8x32xf32>
    %173 = arith.mulf %168, %170 : vector<8x32xf32>
    %174 = arith.addf %172, %173 : vector<8x32xf32>
    %175 = math.tanh %174 : vector<8x32xf32>
    %176 = arith.mulf %171, %175 : vector<8x32xf32>
    %c3_i32 = arith.constant 3 : i32
    %177 = vector.broadcast %c3_i32 : i32 to vector<8x1xi32>
    %178 = arith.cmpi sgt, %1, %177 : vector<8x1xi32>
    %179 = vector.shape_cast %178 : vector<8x1xi1> to vector<8x1xi1>
    %180 = vector.broadcast %179 : vector<8x1xi1> to vector<8x32xi1>
    %181 = arith.select %180, %176, %137 : vector<8x32xi1>, vector<8x32xf32>
    %182 = arith.select %180, %174, %138 : vector<8x32xi1>, vector<8x32xf32>
    %cst_44 = arith.constant 0.000000e+00 : f32
    %183 = vector.broadcast %cst_44 : f32 to vector<8x32xf32>
    %184 = arith.select %180, %176, %183 : vector<8x32xi1>, vector<8x32xf32>
    %185 = vector.broadcast %13 : vector<1x32xf32> to vector<8x32xf32>
    %186 = arith.mulf %184, %185 : vector<8x32xf32>
    %cst_45 = arith.constant dense<0.000000e+00> : vector<8xf32>
    %187 = vector.multi_reduction <add>, %186, %cst_45 [1] : vector<8x32xf32> to vector<8xf32>
    %188 = vector.shape_cast %187 : vector<8xf32> to vector<8x1xf32>
    %189 = vector.broadcast %14 : vector<1x1xf32> to vector<8x1xf32>
    %190 = arith.addf %188, %189 : vector<8x1xf32>
    %191 = arith.negf %190 : vector<8x1xf32>
    %192 = math.exp %191 : vector<8x1xf32>
    %cst_46 = arith.constant 1.000000e+00 : f32
    %193 = vector.broadcast %cst_46 : f32 to vector<8x1xf32>
    %194 = arith.addf %193, %192 : vector<8x1xf32>
    %195 = arith.divf %193, %194 : vector<8x1xf32>
    %196 = vector.broadcast %195 : vector<8x1xf32> to vector<8x32xf32>
    %197 = arith.mulf %184, %196 : vector<8x32xf32>
    %c0_47 = arith.constant 0 : index
    %c96 = arith.constant 96 : index
    %198 = vector.load %arg7[%c0_47, %c96] : memref<8x512xf32, #tpu.memory_space<vmem>>, vector<8x32xf32>
    tpu.vector_store %arg7[%c0_47, %c96], %197 {strides = array<i32>} : memref<8x512xf32, #tpu.memory_space<vmem>>, vector<8x32xf32>,
    %199 = vector.extract_strided_slice %11 {offsets = [32, 0], sizes = [8, 128], strides = [1, 1]} : vector<128x128xf32> to vector<8x128xf32>
    %cst_48 = arith.constant dense<0.000000e+00> : vector<8x128xf32>
    %200 = tpu.matmul %181, %12, %cst_48 {dimension_numbers = #tpu.dot_dimension_numbers<[1], [0], [0], [1], [0, 0, 1, 1], [], []>} : vector<8x32xf32>, vector<32x128xf32>, vector<8x128xf32> -> vector<8x128xf32>
    %201 = arith.addf %199, %200 : vector<8x128xf32>
    %202 = arith.negf %201 : vector<8x128xf32>
    %203 = math.exp %202 : vector<8x128xf32>
    %cst_49 = arith.constant 1.000000e+00 : f32
    %204 = vector.broadcast %cst_49 : f32 to vector<8x128xf32>
    %205 = arith.addf %204, %203 : vector<8x128xf32>
    %206 = arith.divf %204, %205 : vector<8x128xf32>
    %cst_50 = arith.constant 2.000000e+00 : f32
    %207 = vector.broadcast %cst_50 : f32 to vector<8x128xf32>
    %208 = arith.mulf %207, %206 : vector<8x128xf32>
    %cst_51 = arith.constant 1.000000e+00 : f32
    %209 = vector.broadcast %cst_51 : f32 to vector<8x128xf32>
    %210 = arith.subf %208, %209 : vector<8x128xf32>
    %211 = arith.select %20, %210, %206 : vector<8x128xi1>, vector<8x128xf32>
    %212 = vector.extract_strided_slice %211 {offsets = [0, 0], sizes = [8, 32], strides = [1, 1]} : vector<8x128xf32> to vector<8x32xf32>
    %213 = vector.extract_strided_slice %211 {offsets = [0, 32], sizes = [8, 32], strides = [1, 1]} : vector<8x128xf32> to vector<8x32xf32>
    %214 = vector.extract_strided_slice %211 {offsets = [0, 64], sizes = [8, 32], strides = [1, 1]} : vector<8x128xf32> to vector<8x32xf32>
    %215 = vector.extract_strided_slice %211 {offsets = [0, 96], sizes = [8, 32], strides = [1, 1]} : vector<8x128xf32> to vector<8x32xf32>
    %216 = arith.mulf %213, %182 : vector<8x32xf32>
    %217 = arith.mulf %212, %214 : vector<8x32xf32>
    %218 = arith.addf %216, %217 : vector<8x32xf32>
    %219 = math.tanh %218 : vector<8x32xf32>
    %220 = arith.mulf %215, %219 : vector<8x32xf32>
    %c4_i32 = arith.constant 4 : i32
    %221 = vector.broadcast %c4_i32 : i32 to vector<8x1xi32>
    %222 = arith.cmpi sgt, %1, %221 : vector<8x1xi32>
    %223 = vector.shape_cast %222 : vector<8x1xi1> to vector<8x1xi1>
    %224 = vector.broadcast %223 : vector<8x1xi1> to vector<8x32xi1>
    %225 = arith.select %224, %220, %181 : vector<8x32xi1>, vector<8x32xf32>
    %226 = arith.select %224, %218, %182 : vector<8x32xi1>, vector<8x32xf32>
    %cst_52 = arith.constant 0.000000e+00 : f32
    %227 = vector.broadcast %cst_52 : f32 to vector<8x32xf32>
    %228 = arith.select %224, %220, %227 : vector<8x32xi1>, vector<8x32xf32>
    %229 = vector.broadcast %13 : vector<1x32xf32> to vector<8x32xf32>
    %230 = arith.mulf %228, %229 : vector<8x32xf32>
    %cst_53 = arith.constant dense<0.000000e+00> : vector<8xf32>
    %231 = vector.multi_reduction <add>, %230, %cst_53 [1] : vector<8x32xf32> to vector<8xf32>
    %232 = vector.shape_cast %231 : vector<8xf32> to vector<8x1xf32>
    %233 = vector.broadcast %14 : vector<1x1xf32> to vector<8x1xf32>
    %234 = arith.addf %232, %233 : vector<8x1xf32>
    %235 = arith.negf %234 : vector<8x1xf32>
    %236 = math.exp %235 : vector<8x1xf32>
    %cst_54 = arith.constant 1.000000e+00 : f32
    %237 = vector.broadcast %cst_54 : f32 to vector<8x1xf32>
    %238 = arith.addf %237, %236 : vector<8x1xf32>
    %239 = arith.divf %237, %238 : vector<8x1xf32>
    %240 = vector.broadcast %239 : vector<8x1xf32> to vector<8x32xf32>
    %241 = arith.mulf %228, %240 : vector<8x32xf32>
    %c0_55 = arith.constant 0 : index
    %c128 = arith.constant 128 : index
    %242 = vector.load %arg7[%c0_55, %c128] : memref<8x512xf32, #tpu.memory_space<vmem>>, vector<8x32xf32>
    tpu.vector_store %arg7[%c0_55, %c128], %241 {strides = array<i32>} : memref<8x512xf32, #tpu.memory_space<vmem>>, vector<8x32xf32>,
    %243 = vector.extract_strided_slice %11 {offsets = [40, 0], sizes = [8, 128], strides = [1, 1]} : vector<128x128xf32> to vector<8x128xf32>
    %cst_56 = arith.constant dense<0.000000e+00> : vector<8x128xf32>
    %244 = tpu.matmul %225, %12, %cst_56 {dimension_numbers = #tpu.dot_dimension_numbers<[1], [0], [0], [1], [0, 0, 1, 1], [], []>} : vector<8x32xf32>, vector<32x128xf32>, vector<8x128xf32> -> vector<8x128xf32>
    %245 = arith.addf %243, %244 : vector<8x128xf32>
    %246 = arith.negf %245 : vector<8x128xf32>
    %247 = math.exp %246 : vector<8x128xf32>
    %cst_57 = arith.constant 1.000000e+00 : f32
    %248 = vector.broadcast %cst_57 : f32 to vector<8x128xf32>
    %249 = arith.addf %248, %247 : vector<8x128xf32>
    %250 = arith.divf %248, %249 : vector<8x128xf32>
    %cst_58 = arith.constant 2.000000e+00 : f32
    %251 = vector.broadcast %cst_58 : f32 to vector<8x128xf32>
    %252 = arith.mulf %251, %250 : vector<8x128xf32>
    %cst_59 = arith.constant 1.000000e+00 : f32
    %253 = vector.broadcast %cst_59 : f32 to vector<8x128xf32>
    %254 = arith.subf %252, %253 : vector<8x128xf32>
    %255 = arith.select %20, %254, %250 : vector<8x128xi1>, vector<8x128xf32>
    %256 = vector.extract_strided_slice %255 {offsets = [0, 0], sizes = [8, 32], strides = [1, 1]} : vector<8x128xf32> to vector<8x32xf32>
    %257 = vector.extract_strided_slice %255 {offsets = [0, 32], sizes = [8, 32], strides = [1, 1]} : vector<8x128xf32> to vector<8x32xf32>
    %258 = vector.extract_strided_slice %255 {offsets = [0, 64], sizes = [8, 32], strides = [1, 1]} : vector<8x128xf32> to vector<8x32xf32>
    %259 = vector.extract_strided_slice %255 {offsets = [0, 96], sizes = [8, 32], strides = [1, 1]} : vector<8x128xf32> to vector<8x32xf32>
    %260 = arith.mulf %257, %226 : vector<8x32xf32>
    %261 = arith.mulf %256, %258 : vector<8x32xf32>
    %262 = arith.addf %260, %261 : vector<8x32xf32>
    %263 = math.tanh %262 : vector<8x32xf32>
    %264 = arith.mulf %259, %263 : vector<8x32xf32>
    %c5_i32 = arith.constant 5 : i32
    %265 = vector.broadcast %c5_i32 : i32 to vector<8x1xi32>
    %266 = arith.cmpi sgt, %1, %265 : vector<8x1xi32>
    %267 = vector.shape_cast %266 : vector<8x1xi1> to vector<8x1xi1>
    %268 = vector.broadcast %267 : vector<8x1xi1> to vector<8x32xi1>
    %269 = arith.select %268, %264, %225 : vector<8x32xi1>, vector<8x32xf32>
    %270 = arith.select %268, %262, %226 : vector<8x32xi1>, vector<8x32xf32>
    %cst_60 = arith.constant 0.000000e+00 : f32
    %271 = vector.broadcast %cst_60 : f32 to vector<8x32xf32>
    %272 = arith.select %268, %264, %271 : vector<8x32xi1>, vector<8x32xf32>
    %273 = vector.broadcast %13 : vector<1x32xf32> to vector<8x32xf32>
    %274 = arith.mulf %272, %273 : vector<8x32xf32>
    %cst_61 = arith.constant dense<0.000000e+00> : vector<8xf32>
    %275 = vector.multi_reduction <add>, %274, %cst_61 [1] : vector<8x32xf32> to vector<8xf32>
    %276 = vector.shape_cast %275 : vector<8xf32> to vector<8x1xf32>
    %277 = vector.broadcast %14 : vector<1x1xf32> to vector<8x1xf32>
    %278 = arith.addf %276, %277 : vector<8x1xf32>
    %279 = arith.negf %278 : vector<8x1xf32>
    %280 = math.exp %279 : vector<8x1xf32>
    %cst_62 = arith.constant 1.000000e+00 : f32
    %281 = vector.broadcast %cst_62 : f32 to vector<8x1xf32>
    %282 = arith.addf %281, %280 : vector<8x1xf32>
    %283 = arith.divf %281, %282 : vector<8x1xf32>
    %284 = vector.broadcast %283 : vector<8x1xf32> to vector<8x32xf32>
    %285 = arith.mulf %272, %284 : vector<8x32xf32>
    %c0_63 = arith.constant 0 : index
    %c160 = arith.constant 160 : index
    %286 = vector.load %arg7[%c0_63, %c160] : memref<8x512xf32, #tpu.memory_space<vmem>>, vector<8x32xf32>
    tpu.vector_store %arg7[%c0_63, %c160], %285 {strides = array<i32>} : memref<8x512xf32, #tpu.memory_space<vmem>>, vector<8x32xf32>,
    %287 = vector.extract_strided_slice %11 {offsets = [48, 0], sizes = [8, 128], strides = [1, 1]} : vector<128x128xf32> to vector<8x128xf32>
    %cst_64 = arith.constant dense<0.000000e+00> : vector<8x128xf32>
    %288 = tpu.matmul %269, %12, %cst_64 {dimension_numbers = #tpu.dot_dimension_numbers<[1], [0], [0], [1], [0, 0, 1, 1], [], []>} : vector<8x32xf32>, vector<32x128xf32>, vector<8x128xf32> -> vector<8x128xf32>
    %289 = arith.addf %287, %288 : vector<8x128xf32>
    %290 = arith.negf %289 : vector<8x128xf32>
    %291 = math.exp %290 : vector<8x128xf32>
    %cst_65 = arith.constant 1.000000e+00 : f32
    %292 = vector.broadcast %cst_65 : f32 to vector<8x128xf32>
    %293 = arith.addf %292, %291 : vector<8x128xf32>
    %294 = arith.divf %292, %293 : vector<8x128xf32>
    %cst_66 = arith.constant 2.000000e+00 : f32
    %295 = vector.broadcast %cst_66 : f32 to vector<8x128xf32>
    %296 = arith.mulf %295, %294 : vector<8x128xf32>
    %cst_67 = arith.constant 1.000000e+00 : f32
    %297 = vector.broadcast %cst_67 : f32 to vector<8x128xf32>
    %298 = arith.subf %296, %297 : vector<8x128xf32>
    %299 = arith.select %20, %298, %294 : vector<8x128xi1>, vector<8x128xf32>
    %300 = vector.extract_strided_slice %299 {offsets = [0, 0], sizes = [8, 32], strides = [1, 1]} : vector<8x128xf32> to vector<8x32xf32>
    %301 = vector.extract_strided_slice %299 {offsets = [0, 32], sizes = [8, 32], strides = [1, 1]} : vector<8x128xf32> to vector<8x32xf32>
    %302 = vector.extract_strided_slice %299 {offsets = [0, 64], sizes = [8, 32], strides = [1, 1]} : vector<8x128xf32> to vector<8x32xf32>
    %303 = vector.extract_strided_slice %299 {offsets = [0, 96], sizes = [8, 32], strides = [1, 1]} : vector<8x128xf32> to vector<8x32xf32>
    %304 = arith.mulf %301, %270 : vector<8x32xf32>
    %305 = arith.mulf %300, %302 : vector<8x32xf32>
    %306 = arith.addf %304, %305 : vector<8x32xf32>
    %307 = math.tanh %306 : vector<8x32xf32>
    %308 = arith.mulf %303, %307 : vector<8x32xf32>
    %c6_i32 = arith.constant 6 : i32
    %309 = vector.broadcast %c6_i32 : i32 to vector<8x1xi32>
    %310 = arith.cmpi sgt, %1, %309 : vector<8x1xi32>
    %311 = vector.shape_cast %310 : vector<8x1xi1> to vector<8x1xi1>
    %312 = vector.broadcast %311 : vector<8x1xi1> to vector<8x32xi1>
    %313 = arith.select %312, %308, %269 : vector<8x32xi1>, vector<8x32xf32>
    %314 = arith.select %312, %306, %270 : vector<8x32xi1>, vector<8x32xf32>
    %cst_68 = arith.constant 0.000000e+00 : f32
    %315 = vector.broadcast %cst_68 : f32 to vector<8x32xf32>
    %316 = arith.select %312, %308, %315 : vector<8x32xi1>, vector<8x32xf32>
    %317 = vector.broadcast %13 : vector<1x32xf32> to vector<8x32xf32>
    %318 = arith.mulf %316, %317 : vector<8x32xf32>
    %cst_69 = arith.constant dense<0.000000e+00> : vector<8xf32>
    %319 = vector.multi_reduction <add>, %318, %cst_69 [1] : vector<8x32xf32> to vector<8xf32>
    %320 = vector.shape_cast %319 : vector<8xf32> to vector<8x1xf32>
    %321 = vector.broadcast %14 : vector<1x1xf32> to vector<8x1xf32>
    %322 = arith.addf %320, %321 : vector<8x1xf32>
    %323 = arith.negf %322 : vector<8x1xf32>
    %324 = math.exp %323 : vector<8x1xf32>
    %cst_70 = arith.constant 1.000000e+00 : f32
    %325 = vector.broadcast %cst_70 : f32 to vector<8x1xf32>
    %326 = arith.addf %325, %324 : vector<8x1xf32>
    %327 = arith.divf %325, %326 : vector<8x1xf32>
    %328 = vector.broadcast %327 : vector<8x1xf32> to vector<8x32xf32>
    %329 = arith.mulf %316, %328 : vector<8x32xf32>
    %c0_71 = arith.constant 0 : index
    %c192 = arith.constant 192 : index
    %330 = vector.load %arg7[%c0_71, %c192] : memref<8x512xf32, #tpu.memory_space<vmem>>, vector<8x32xf32>
    tpu.vector_store %arg7[%c0_71, %c192], %329 {strides = array<i32>} : memref<8x512xf32, #tpu.memory_space<vmem>>, vector<8x32xf32>,
    %331 = vector.extract_strided_slice %11 {offsets = [56, 0], sizes = [8, 128], strides = [1, 1]} : vector<128x128xf32> to vector<8x128xf32>
    %cst_72 = arith.constant dense<0.000000e+00> : vector<8x128xf32>
    %332 = tpu.matmul %313, %12, %cst_72 {dimension_numbers = #tpu.dot_dimension_numbers<[1], [0], [0], [1], [0, 0, 1, 1], [], []>} : vector<8x32xf32>, vector<32x128xf32>, vector<8x128xf32> -> vector<8x128xf32>
    %333 = arith.addf %331, %332 : vector<8x128xf32>
    %334 = arith.negf %333 : vector<8x128xf32>
    %335 = math.exp %334 : vector<8x128xf32>
    %cst_73 = arith.constant 1.000000e+00 : f32
    %336 = vector.broadcast %cst_73 : f32 to vector<8x128xf32>
    %337 = arith.addf %336, %335 : vector<8x128xf32>
    %338 = arith.divf %336, %337 : vector<8x128xf32>
    %cst_74 = arith.constant 2.000000e+00 : f32
    %339 = vector.broadcast %cst_74 : f32 to vector<8x128xf32>
    %340 = arith.mulf %339, %338 : vector<8x128xf32>
    %cst_75 = arith.constant 1.000000e+00 : f32
    %341 = vector.broadcast %cst_75 : f32 to vector<8x128xf32>
    %342 = arith.subf %340, %341 : vector<8x128xf32>
    %343 = arith.select %20, %342, %338 : vector<8x128xi1>, vector<8x128xf32>
    %344 = vector.extract_strided_slice %343 {offsets = [0, 0], sizes = [8, 32], strides = [1, 1]} : vector<8x128xf32> to vector<8x32xf32>
    %345 = vector.extract_strided_slice %343 {offsets = [0, 32], sizes = [8, 32], strides = [1, 1]} : vector<8x128xf32> to vector<8x32xf32>
    %346 = vector.extract_strided_slice %343 {offsets = [0, 64], sizes = [8, 32], strides = [1, 1]} : vector<8x128xf32> to vector<8x32xf32>
    %347 = vector.extract_strided_slice %343 {offsets = [0, 96], sizes = [8, 32], strides = [1, 1]} : vector<8x128xf32> to vector<8x32xf32>
    %348 = arith.mulf %345, %314 : vector<8x32xf32>
    %349 = arith.mulf %344, %346 : vector<8x32xf32>
    %350 = arith.addf %348, %349 : vector<8x32xf32>
    %351 = math.tanh %350 : vector<8x32xf32>
    %352 = arith.mulf %347, %351 : vector<8x32xf32>
    %c7_i32 = arith.constant 7 : i32
    %353 = vector.broadcast %c7_i32 : i32 to vector<8x1xi32>
    %354 = arith.cmpi sgt, %1, %353 : vector<8x1xi32>
    %355 = vector.shape_cast %354 : vector<8x1xi1> to vector<8x1xi1>
    %356 = vector.broadcast %355 : vector<8x1xi1> to vector<8x32xi1>
    %357 = arith.select %356, %352, %313 : vector<8x32xi1>, vector<8x32xf32>
    %358 = arith.select %356, %350, %314 : vector<8x32xi1>, vector<8x32xf32>
    %cst_76 = arith.constant 0.000000e+00 : f32
    %359 = vector.broadcast %cst_76 : f32 to vector<8x32xf32>
    %360 = arith.select %356, %352, %359 : vector<8x32xi1>, vector<8x32xf32>
    %361 = vector.broadcast %13 : vector<1x32xf32> to vector<8x32xf32>
    %362 = arith.mulf %360, %361 : vector<8x32xf32>
    %cst_77 = arith.constant dense<0.000000e+00> : vector<8xf32>
    %363 = vector.multi_reduction <add>, %362, %cst_77 [1] : vector<8x32xf32> to vector<8xf32>
    %364 = vector.shape_cast %363 : vector<8xf32> to vector<8x1xf32>
    %365 = vector.broadcast %14 : vector<1x1xf32> to vector<8x1xf32>
    %366 = arith.addf %364, %365 : vector<8x1xf32>
    %367 = arith.negf %366 : vector<8x1xf32>
    %368 = math.exp %367 : vector<8x1xf32>
    %cst_78 = arith.constant 1.000000e+00 : f32
    %369 = vector.broadcast %cst_78 : f32 to vector<8x1xf32>
    %370 = arith.addf %369, %368 : vector<8x1xf32>
    %371 = arith.divf %369, %370 : vector<8x1xf32>
    %372 = vector.broadcast %371 : vector<8x1xf32> to vector<8x32xf32>
    %373 = arith.mulf %360, %372 : vector<8x32xf32>
    %c0_79 = arith.constant 0 : index
    %c224 = arith.constant 224 : index
    %374 = vector.load %arg7[%c0_79, %c224] : memref<8x512xf32, #tpu.memory_space<vmem>>, vector<8x32xf32>
    tpu.vector_store %arg7[%c0_79, %c224], %373 {strides = array<i32>} : memref<8x512xf32, #tpu.memory_space<vmem>>, vector<8x32xf32>,
    %375 = vector.extract_strided_slice %11 {offsets = [64, 0], sizes = [8, 128], strides = [1, 1]} : vector<128x128xf32> to vector<8x128xf32>
    %cst_80 = arith.constant dense<0.000000e+00> : vector<8x128xf32>
    %376 = tpu.matmul %357, %12, %cst_80 {dimension_numbers = #tpu.dot_dimension_numbers<[1], [0], [0], [1], [0, 0, 1, 1], [], []>} : vector<8x32xf32>, vector<32x128xf32>, vector<8x128xf32> -> vector<8x128xf32>
    %377 = arith.addf %375, %376 : vector<8x128xf32>
    %378 = arith.negf %377 : vector<8x128xf32>
    %379 = math.exp %378 : vector<8x128xf32>
    %cst_81 = arith.constant 1.000000e+00 : f32
    %380 = vector.broadcast %cst_81 : f32 to vector<8x128xf32>
    %381 = arith.addf %380, %379 : vector<8x128xf32>
    %382 = arith.divf %380, %381 : vector<8x128xf32>
    %cst_82 = arith.constant 2.000000e+00 : f32
    %383 = vector.broadcast %cst_82 : f32 to vector<8x128xf32>
    %384 = arith.mulf %383, %382 : vector<8x128xf32>
    %cst_83 = arith.constant 1.000000e+00 : f32
    %385 = vector.broadcast %cst_83 : f32 to vector<8x128xf32>
    %386 = arith.subf %384, %385 : vector<8x128xf32>
    %387 = arith.select %20, %386, %382 : vector<8x128xi1>, vector<8x128xf32>
    %388 = vector.extract_strided_slice %387 {offsets = [0, 0], sizes = [8, 32], strides = [1, 1]} : vector<8x128xf32> to vector<8x32xf32>
    %389 = vector.extract_strided_slice %387 {offsets = [0, 32], sizes = [8, 32], strides = [1, 1]} : vector<8x128xf32> to vector<8x32xf32>
    %390 = vector.extract_strided_slice %387 {offsets = [0, 64], sizes = [8, 32], strides = [1, 1]} : vector<8x128xf32> to vector<8x32xf32>
    %391 = vector.extract_strided_slice %387 {offsets = [0, 96], sizes = [8, 32], strides = [1, 1]} : vector<8x128xf32> to vector<8x32xf32>
    %392 = arith.mulf %389, %358 : vector<8x32xf32>
    %393 = arith.mulf %388, %390 : vector<8x32xf32>
    %394 = arith.addf %392, %393 : vector<8x32xf32>
    %395 = math.tanh %394 : vector<8x32xf32>
    %396 = arith.mulf %391, %395 : vector<8x32xf32>
    %c8_i32 = arith.constant 8 : i32
    %397 = vector.broadcast %c8_i32 : i32 to vector<8x1xi32>
    %398 = arith.cmpi sgt, %1, %397 : vector<8x1xi32>
    %399 = vector.shape_cast %398 : vector<8x1xi1> to vector<8x1xi1>
    %400 = vector.broadcast %399 : vector<8x1xi1> to vector<8x32xi1>
    %401 = arith.select %400, %396, %357 : vector<8x32xi1>, vector<8x32xf32>
    %402 = arith.select %400, %394, %358 : vector<8x32xi1>, vector<8x32xf32>
    %cst_84 = arith.constant 0.000000e+00 : f32
    %403 = vector.broadcast %cst_84 : f32 to vector<8x32xf32>
    %404 = arith.select %400, %396, %403 : vector<8x32xi1>, vector<8x32xf32>
    %405 = vector.broadcast %13 : vector<1x32xf32> to vector<8x32xf32>
    %406 = arith.mulf %404, %405 : vector<8x32xf32>
    %cst_85 = arith.constant dense<0.000000e+00> : vector<8xf32>
    %407 = vector.multi_reduction <add>, %406, %cst_85 [1] : vector<8x32xf32> to vector<8xf32>
    %408 = vector.shape_cast %407 : vector<8xf32> to vector<8x1xf32>
    %409 = vector.broadcast %14 : vector<1x1xf32> to vector<8x1xf32>
    %410 = arith.addf %408, %409 : vector<8x1xf32>
    %411 = arith.negf %410 : vector<8x1xf32>
    %412 = math.exp %411 : vector<8x1xf32>
    %cst_86 = arith.constant 1.000000e+00 : f32
    %413 = vector.broadcast %cst_86 : f32 to vector<8x1xf32>
    %414 = arith.addf %413, %412 : vector<8x1xf32>
    %415 = arith.divf %413, %414 : vector<8x1xf32>
    %416 = vector.broadcast %415 : vector<8x1xf32> to vector<8x32xf32>
    %417 = arith.mulf %404, %416 : vector<8x32xf32>
    %c0_87 = arith.constant 0 : index
    %c256 = arith.constant 256 : index
    %418 = vector.load %arg7[%c0_87, %c256] : memref<8x512xf32, #tpu.memory_space<vmem>>, vector<8x32xf32>
    tpu.vector_store %arg7[%c0_87, %c256], %417 {strides = array<i32>} : memref<8x512xf32, #tpu.memory_space<vmem>>, vector<8x32xf32>,
    %419 = vector.extract_strided_slice %11 {offsets = [72, 0], sizes = [8, 128], strides = [1, 1]} : vector<128x128xf32> to vector<8x128xf32>
    %cst_88 = arith.constant dense<0.000000e+00> : vector<8x128xf32>
    %420 = tpu.matmul %401, %12, %cst_88 {dimension_numbers = #tpu.dot_dimension_numbers<[1], [0], [0], [1], [0, 0, 1, 1], [], []>} : vector<8x32xf32>, vector<32x128xf32>, vector<8x128xf32> -> vector<8x128xf32>
    %421 = arith.addf %419, %420 : vector<8x128xf32>
    %422 = arith.negf %421 : vector<8x128xf32>
    %423 = math.exp %422 : vector<8x128xf32>
    %cst_89 = arith.constant 1.000000e+00 : f32
    %424 = vector.broadcast %cst_89 : f32 to vector<8x128xf32>
    %425 = arith.addf %424, %423 : vector<8x128xf32>
    %426 = arith.divf %424, %425 : vector<8x128xf32>
    %cst_90 = arith.constant 2.000000e+00 : f32
    %427 = vector.broadcast %cst_90 : f32 to vector<8x128xf32>
    %428 = arith.mulf %427, %426 : vector<8x128xf32>
    %cst_91 = arith.constant 1.000000e+00 : f32
    %429 = vector.broadcast %cst_91 : f32 to vector<8x128xf32>
    %430 = arith.subf %428, %429 : vector<8x128xf32>
    %431 = arith.select %20, %430, %426 : vector<8x128xi1>, vector<8x128xf32>
    %432 = vector.extract_strided_slice %431 {offsets = [0, 0], sizes = [8, 32], strides = [1, 1]} : vector<8x128xf32> to vector<8x32xf32>
    %433 = vector.extract_strided_slice %431 {offsets = [0, 32], sizes = [8, 32], strides = [1, 1]} : vector<8x128xf32> to vector<8x32xf32>
    %434 = vector.extract_strided_slice %431 {offsets = [0, 64], sizes = [8, 32], strides = [1, 1]} : vector<8x128xf32> to vector<8x32xf32>
    %435 = vector.extract_strided_slice %431 {offsets = [0, 96], sizes = [8, 32], strides = [1, 1]} : vector<8x128xf32> to vector<8x32xf32>
    %436 = arith.mulf %433, %402 : vector<8x32xf32>
    %437 = arith.mulf %432, %434 : vector<8x32xf32>
    %438 = arith.addf %436, %437 : vector<8x32xf32>
    %439 = math.tanh %438 : vector<8x32xf32>
    %440 = arith.mulf %435, %439 : vector<8x32xf32>
    %c9_i32 = arith.constant 9 : i32
    %441 = vector.broadcast %c9_i32 : i32 to vector<8x1xi32>
    %442 = arith.cmpi sgt, %1, %441 : vector<8x1xi32>
    %443 = vector.shape_cast %442 : vector<8x1xi1> to vector<8x1xi1>
    %444 = vector.broadcast %443 : vector<8x1xi1> to vector<8x32xi1>
    %445 = arith.select %444, %440, %401 : vector<8x32xi1>, vector<8x32xf32>
    %446 = arith.select %444, %438, %402 : vector<8x32xi1>, vector<8x32xf32>
    %cst_92 = arith.constant 0.000000e+00 : f32
    %447 = vector.broadcast %cst_92 : f32 to vector<8x32xf32>
    %448 = arith.select %444, %440, %447 : vector<8x32xi1>, vector<8x32xf32>
    %449 = vector.broadcast %13 : vector<1x32xf32> to vector<8x32xf32>
    %450 = arith.mulf %448, %449 : vector<8x32xf32>
    %cst_93 = arith.constant dense<0.000000e+00> : vector<8xf32>
    %451 = vector.multi_reduction <add>, %450, %cst_93 [1] : vector<8x32xf32> to vector<8xf32>
    %452 = vector.shape_cast %451 : vector<8xf32> to vector<8x1xf32>
    %453 = vector.broadcast %14 : vector<1x1xf32> to vector<8x1xf32>
    %454 = arith.addf %452, %453 : vector<8x1xf32>
    %455 = arith.negf %454 : vector<8x1xf32>
    %456 = math.exp %455 : vector<8x1xf32>
    %cst_94 = arith.constant 1.000000e+00 : f32
    %457 = vector.broadcast %cst_94 : f32 to vector<8x1xf32>
    %458 = arith.addf %457, %456 : vector<8x1xf32>
    %459 = arith.divf %457, %458 : vector<8x1xf32>
    %460 = vector.broadcast %459 : vector<8x1xf32> to vector<8x32xf32>
    %461 = arith.mulf %448, %460 : vector<8x32xf32>
    %c0_95 = arith.constant 0 : index
    %c288 = arith.constant 288 : index
    %462 = vector.load %arg7[%c0_95, %c288] : memref<8x512xf32, #tpu.memory_space<vmem>>, vector<8x32xf32>
    tpu.vector_store %arg7[%c0_95, %c288], %461 {strides = array<i32>} : memref<8x512xf32, #tpu.memory_space<vmem>>, vector<8x32xf32>,
    %463 = vector.extract_strided_slice %11 {offsets = [80, 0], sizes = [8, 128], strides = [1, 1]} : vector<128x128xf32> to vector<8x128xf32>
    %cst_96 = arith.constant dense<0.000000e+00> : vector<8x128xf32>
    %464 = tpu.matmul %445, %12, %cst_96 {dimension_numbers = #tpu.dot_dimension_numbers<[1], [0], [0], [1], [0, 0, 1, 1], [], []>} : vector<8x32xf32>, vector<32x128xf32>, vector<8x128xf32> -> vector<8x128xf32>
    %465 = arith.addf %463, %464 : vector<8x128xf32>
    %466 = arith.negf %465 : vector<8x128xf32>
    %467 = math.exp %466 : vector<8x128xf32>
    %cst_97 = arith.constant 1.000000e+00 : f32
    %468 = vector.broadcast %cst_97 : f32 to vector<8x128xf32>
    %469 = arith.addf %468, %467 : vector<8x128xf32>
    %470 = arith.divf %468, %469 : vector<8x128xf32>
    %cst_98 = arith.constant 2.000000e+00 : f32
    %471 = vector.broadcast %cst_98 : f32 to vector<8x128xf32>
    %472 = arith.mulf %471, %470 : vector<8x128xf32>
    %cst_99 = arith.constant 1.000000e+00 : f32
    %473 = vector.broadcast %cst_99 : f32 to vector<8x128xf32>
    %474 = arith.subf %472, %473 : vector<8x128xf32>
    %475 = arith.select %20, %474, %470 : vector<8x128xi1>, vector<8x128xf32>
    %476 = vector.extract_strided_slice %475 {offsets = [0, 0], sizes = [8, 32], strides = [1, 1]} : vector<8x128xf32> to vector<8x32xf32>
    %477 = vector.extract_strided_slice %475 {offsets = [0, 32], sizes = [8, 32], strides = [1, 1]} : vector<8x128xf32> to vector<8x32xf32>
    %478 = vector.extract_strided_slice %475 {offsets = [0, 64], sizes = [8, 32], strides = [1, 1]} : vector<8x128xf32> to vector<8x32xf32>
    %479 = vector.extract_strided_slice %475 {offsets = [0, 96], sizes = [8, 32], strides = [1, 1]} : vector<8x128xf32> to vector<8x32xf32>
    %480 = arith.mulf %477, %446 : vector<8x32xf32>
    %481 = arith.mulf %476, %478 : vector<8x32xf32>
    %482 = arith.addf %480, %481 : vector<8x32xf32>
    %483 = math.tanh %482 : vector<8x32xf32>
    %484 = arith.mulf %479, %483 : vector<8x32xf32>
    %c10_i32 = arith.constant 10 : i32
    %485 = vector.broadcast %c10_i32 : i32 to vector<8x1xi32>
    %486 = arith.cmpi sgt, %1, %485 : vector<8x1xi32>
    %487 = vector.shape_cast %486 : vector<8x1xi1> to vector<8x1xi1>
    %488 = vector.broadcast %487 : vector<8x1xi1> to vector<8x32xi1>
    %489 = arith.select %488, %484, %445 : vector<8x32xi1>, vector<8x32xf32>
    %490 = arith.select %488, %482, %446 : vector<8x32xi1>, vector<8x32xf32>
    %cst_100 = arith.constant 0.000000e+00 : f32
    %491 = vector.broadcast %cst_100 : f32 to vector<8x32xf32>
    %492 = arith.select %488, %484, %491 : vector<8x32xi1>, vector<8x32xf32>
    %493 = vector.broadcast %13 : vector<1x32xf32> to vector<8x32xf32>
    %494 = arith.mulf %492, %493 : vector<8x32xf32>
    %cst_101 = arith.constant dense<0.000000e+00> : vector<8xf32>
    %495 = vector.multi_reduction <add>, %494, %cst_101 [1] : vector<8x32xf32> to vector<8xf32>
    %496 = vector.shape_cast %495 : vector<8xf32> to vector<8x1xf32>
    %497 = vector.broadcast %14 : vector<1x1xf32> to vector<8x1xf32>
    %498 = arith.addf %496, %497 : vector<8x1xf32>
    %499 = arith.negf %498 : vector<8x1xf32>
    %500 = math.exp %499 : vector<8x1xf32>
    %cst_102 = arith.constant 1.000000e+00 : f32
    %501 = vector.broadcast %cst_102 : f32 to vector<8x1xf32>
    %502 = arith.addf %501, %500 : vector<8x1xf32>
    %503 = arith.divf %501, %502 : vector<8x1xf32>
    %504 = vector.broadcast %503 : vector<8x1xf32> to vector<8x32xf32>
    %505 = arith.mulf %492, %504 : vector<8x32xf32>
    %c0_103 = arith.constant 0 : index
    %c320 = arith.constant 320 : index
    %506 = vector.load %arg7[%c0_103, %c320] : memref<8x512xf32, #tpu.memory_space<vmem>>, vector<8x32xf32>
    tpu.vector_store %arg7[%c0_103, %c320], %505 {strides = array<i32>} : memref<8x512xf32, #tpu.memory_space<vmem>>, vector<8x32xf32>,
    %507 = vector.extract_strided_slice %11 {offsets = [88, 0], sizes = [8, 128], strides = [1, 1]} : vector<128x128xf32> to vector<8x128xf32>
    %cst_104 = arith.constant dense<0.000000e+00> : vector<8x128xf32>
    %508 = tpu.matmul %489, %12, %cst_104 {dimension_numbers = #tpu.dot_dimension_numbers<[1], [0], [0], [1], [0, 0, 1, 1], [], []>} : vector<8x32xf32>, vector<32x128xf32>, vector<8x128xf32> -> vector<8x128xf32>
    %509 = arith.addf %507, %508 : vector<8x128xf32>
    %510 = arith.negf %509 : vector<8x128xf32>
    %511 = math.exp %510 : vector<8x128xf32>
    %cst_105 = arith.constant 1.000000e+00 : f32
    %512 = vector.broadcast %cst_105 : f32 to vector<8x128xf32>
    %513 = arith.addf %512, %511 : vector<8x128xf32>
    %514 = arith.divf %512, %513 : vector<8x128xf32>
    %cst_106 = arith.constant 2.000000e+00 : f32
    %515 = vector.broadcast %cst_106 : f32 to vector<8x128xf32>
    %516 = arith.mulf %515, %514 : vector<8x128xf32>
    %cst_107 = arith.constant 1.000000e+00 : f32
    %517 = vector.broadcast %cst_107 : f32 to vector<8x128xf32>
    %518 = arith.subf %516, %517 : vector<8x128xf32>
    %519 = arith.select %20, %518, %514 : vector<8x128xi1>, vector<8x128xf32>
    %520 = vector.extract_strided_slice %519 {offsets = [0, 0], sizes = [8, 32], strides = [1, 1]} : vector<8x128xf32> to vector<8x32xf32>
    %521 = vector.extract_strided_slice %519 {offsets = [0, 32], sizes = [8, 32], strides = [1, 1]} : vector<8x128xf32> to vector<8x32xf32>
    %522 = vector.extract_strided_slice %519 {offsets = [0, 64], sizes = [8, 32], strides = [1, 1]} : vector<8x128xf32> to vector<8x32xf32>
    %523 = vector.extract_strided_slice %519 {offsets = [0, 96], sizes = [8, 32], strides = [1, 1]} : vector<8x128xf32> to vector<8x32xf32>
    %524 = arith.mulf %521, %490 : vector<8x32xf32>
    %525 = arith.mulf %520, %522 : vector<8x32xf32>
    %526 = arith.addf %524, %525 : vector<8x32xf32>
    %527 = math.tanh %526 : vector<8x32xf32>
    %528 = arith.mulf %523, %527 : vector<8x32xf32>
    %c11_i32 = arith.constant 11 : i32
    %529 = vector.broadcast %c11_i32 : i32 to vector<8x1xi32>
    %530 = arith.cmpi sgt, %1, %529 : vector<8x1xi32>
    %531 = vector.shape_cast %530 : vector<8x1xi1> to vector<8x1xi1>
    %532 = vector.broadcast %531 : vector<8x1xi1> to vector<8x32xi1>
    %533 = arith.select %532, %528, %489 : vector<8x32xi1>, vector<8x32xf32>
    %534 = arith.select %532, %526, %490 : vector<8x32xi1>, vector<8x32xf32>
    %cst_108 = arith.constant 0.000000e+00 : f32
    %535 = vector.broadcast %cst_108 : f32 to vector<8x32xf32>
    %536 = arith.select %532, %528, %535 : vector<8x32xi1>, vector<8x32xf32>
    %537 = vector.broadcast %13 : vector<1x32xf32> to vector<8x32xf32>
    %538 = arith.mulf %536, %537 : vector<8x32xf32>
    %cst_109 = arith.constant dense<0.000000e+00> : vector<8xf32>
    %539 = vector.multi_reduction <add>, %538, %cst_109 [1] : vector<8x32xf32> to vector<8xf32>
    %540 = vector.shape_cast %539 : vector<8xf32> to vector<8x1xf32>
    %541 = vector.broadcast %14 : vector<1x1xf32> to vector<8x1xf32>
    %542 = arith.addf %540, %541 : vector<8x1xf32>
    %543 = arith.negf %542 : vector<8x1xf32>
    %544 = math.exp %543 : vector<8x1xf32>
    %cst_110 = arith.constant 1.000000e+00 : f32
    %545 = vector.broadcast %cst_110 : f32 to vector<8x1xf32>
    %546 = arith.addf %545, %544 : vector<8x1xf32>
    %547 = arith.divf %545, %546 : vector<8x1xf32>
    %548 = vector.broadcast %547 : vector<8x1xf32> to vector<8x32xf32>
    %549 = arith.mulf %536, %548 : vector<8x32xf32>
    %c0_111 = arith.constant 0 : index
    %c352 = arith.constant 352 : index
    %550 = vector.load %arg7[%c0_111, %c352] : memref<8x512xf32, #tpu.memory_space<vmem>>, vector<8x32xf32>
    tpu.vector_store %arg7[%c0_111, %c352], %549 {strides = array<i32>} : memref<8x512xf32, #tpu.memory_space<vmem>>, vector<8x32xf32>,
    %551 = vector.extract_strided_slice %11 {offsets = [96, 0], sizes = [8, 128], strides = [1, 1]} : vector<128x128xf32> to vector<8x128xf32>
    %cst_112 = arith.constant dense<0.000000e+00> : vector<8x128xf32>
    %552 = tpu.matmul %533, %12, %cst_112 {dimension_numbers = #tpu.dot_dimension_numbers<[1], [0], [0], [1], [0, 0, 1, 1], [], []>} : vector<8x32xf32>, vector<32x128xf32>, vector<8x128xf32> -> vector<8x128xf32>
    %553 = arith.addf %551, %552 : vector<8x128xf32>
    %554 = arith.negf %553 : vector<8x128xf32>
    %555 = math.exp %554 : vector<8x128xf32>
    %cst_113 = arith.constant 1.000000e+00 : f32
    %556 = vector.broadcast %cst_113 : f32 to vector<8x128xf32>
    %557 = arith.addf %556, %555 : vector<8x128xf32>
    %558 = arith.divf %556, %557 : vector<8x128xf32>
    %cst_114 = arith.constant 2.000000e+00 : f32
    %559 = vector.broadcast %cst_114 : f32 to vector<8x128xf32>
    %560 = arith.mulf %559, %558 : vector<8x128xf32>
    %cst_115 = arith.constant 1.000000e+00 : f32
    %561 = vector.broadcast %cst_115 : f32 to vector<8x128xf32>
    %562 = arith.subf %560, %561 : vector<8x128xf32>
    %563 = arith.select %20, %562, %558 : vector<8x128xi1>, vector<8x128xf32>
    %564 = vector.extract_strided_slice %563 {offsets = [0, 0], sizes = [8, 32], strides = [1, 1]} : vector<8x128xf32> to vector<8x32xf32>
    %565 = vector.extract_strided_slice %563 {offsets = [0, 32], sizes = [8, 32], strides = [1, 1]} : vector<8x128xf32> to vector<8x32xf32>
    %566 = vector.extract_strided_slice %563 {offsets = [0, 64], sizes = [8, 32], strides = [1, 1]} : vector<8x128xf32> to vector<8x32xf32>
    %567 = vector.extract_strided_slice %563 {offsets = [0, 96], sizes = [8, 32], strides = [1, 1]} : vector<8x128xf32> to vector<8x32xf32>
    %568 = arith.mulf %565, %534 : vector<8x32xf32>
    %569 = arith.mulf %564, %566 : vector<8x32xf32>
    %570 = arith.addf %568, %569 : vector<8x32xf32>
    %571 = math.tanh %570 : vector<8x32xf32>
    %572 = arith.mulf %567, %571 : vector<8x32xf32>
    %c12_i32 = arith.constant 12 : i32
    %573 = vector.broadcast %c12_i32 : i32 to vector<8x1xi32>
    %574 = arith.cmpi sgt, %1, %573 : vector<8x1xi32>
    %575 = vector.shape_cast %574 : vector<8x1xi1> to vector<8x1xi1>
    %576 = vector.broadcast %575 : vector<8x1xi1> to vector<8x32xi1>
    %577 = arith.select %576, %572, %533 : vector<8x32xi1>, vector<8x32xf32>
    %578 = arith.select %576, %570, %534 : vector<8x32xi1>, vector<8x32xf32>
    %cst_116 = arith.constant 0.000000e+00 : f32
    %579 = vector.broadcast %cst_116 : f32 to vector<8x32xf32>
    %580 = arith.select %576, %572, %579 : vector<8x32xi1>, vector<8x32xf32>
    %581 = vector.broadcast %13 : vector<1x32xf32> to vector<8x32xf32>
    %582 = arith.mulf %580, %581 : vector<8x32xf32>
    %cst_117 = arith.constant dense<0.000000e+00> : vector<8xf32>
    %583 = vector.multi_reduction <add>, %582, %cst_117 [1] : vector<8x32xf32> to vector<8xf32>
    %584 = vector.shape_cast %583 : vector<8xf32> to vector<8x1xf32>
    %585 = vector.broadcast %14 : vector<1x1xf32> to vector<8x1xf32>
    %586 = arith.addf %584, %585 : vector<8x1xf32>
    %587 = arith.negf %586 : vector<8x1xf32>
    %588 = math.exp %587 : vector<8x1xf32>
    %cst_118 = arith.constant 1.000000e+00 : f32
    %589 = vector.broadcast %cst_118 : f32 to vector<8x1xf32>
    %590 = arith.addf %589, %588 : vector<8x1xf32>
    %591 = arith.divf %589, %590 : vector<8x1xf32>
    %592 = vector.broadcast %591 : vector<8x1xf32> to vector<8x32xf32>
    %593 = arith.mulf %580, %592 : vector<8x32xf32>
    %c0_119 = arith.constant 0 : index
    %c384 = arith.constant 384 : index
    %594 = vector.load %arg7[%c0_119, %c384] : memref<8x512xf32, #tpu.memory_space<vmem>>, vector<8x32xf32>
    tpu.vector_store %arg7[%c0_119, %c384], %593 {strides = array<i32>} : memref<8x512xf32, #tpu.memory_space<vmem>>, vector<8x32xf32>,
    %595 = vector.extract_strided_slice %11 {offsets = [104, 0], sizes = [8, 128], strides = [1, 1]} : vector<128x128xf32> to vector<8x128xf32>
    %cst_120 = arith.constant dense<0.000000e+00> : vector<8x128xf32>
    %596 = tpu.matmul %577, %12, %cst_120 {dimension_numbers = #tpu.dot_dimension_numbers<[1], [0], [0], [1], [0, 0, 1, 1], [], []>} : vector<8x32xf32>, vector<32x128xf32>, vector<8x128xf32> -> vector<8x128xf32>
    %597 = arith.addf %595, %596 : vector<8x128xf32>
    %598 = arith.negf %597 : vector<8x128xf32>
    %599 = math.exp %598 : vector<8x128xf32>
    %cst_121 = arith.constant 1.000000e+00 : f32
    %600 = vector.broadcast %cst_121 : f32 to vector<8x128xf32>
    %601 = arith.addf %600, %599 : vector<8x128xf32>
    %602 = arith.divf %600, %601 : vector<8x128xf32>
    %cst_122 = arith.constant 2.000000e+00 : f32
    %603 = vector.broadcast %cst_122 : f32 to vector<8x128xf32>
    %604 = arith.mulf %603, %602 : vector<8x128xf32>
    %cst_123 = arith.constant 1.000000e+00 : f32
    %605 = vector.broadcast %cst_123 : f32 to vector<8x128xf32>
    %606 = arith.subf %604, %605 : vector<8x128xf32>
    %607 = arith.select %20, %606, %602 : vector<8x128xi1>, vector<8x128xf32>
    %608 = vector.extract_strided_slice %607 {offsets = [0, 0], sizes = [8, 32], strides = [1, 1]} : vector<8x128xf32> to vector<8x32xf32>
    %609 = vector.extract_strided_slice %607 {offsets = [0, 32], sizes = [8, 32], strides = [1, 1]} : vector<8x128xf32> to vector<8x32xf32>
    %610 = vector.extract_strided_slice %607 {offsets = [0, 64], sizes = [8, 32], strides = [1, 1]} : vector<8x128xf32> to vector<8x32xf32>
    %611 = vector.extract_strided_slice %607 {offsets = [0, 96], sizes = [8, 32], strides = [1, 1]} : vector<8x128xf32> to vector<8x32xf32>
    %612 = arith.mulf %609, %578 : vector<8x32xf32>
    %613 = arith.mulf %608, %610 : vector<8x32xf32>
    %614 = arith.addf %612, %613 : vector<8x32xf32>
    %615 = math.tanh %614 : vector<8x32xf32>
    %616 = arith.mulf %611, %615 : vector<8x32xf32>
    %c13_i32 = arith.constant 13 : i32
    %617 = vector.broadcast %c13_i32 : i32 to vector<8x1xi32>
    %618 = arith.cmpi sgt, %1, %617 : vector<8x1xi32>
    %619 = vector.shape_cast %618 : vector<8x1xi1> to vector<8x1xi1>
    %620 = vector.broadcast %619 : vector<8x1xi1> to vector<8x32xi1>
    %621 = arith.select %620, %616, %577 : vector<8x32xi1>, vector<8x32xf32>
    %622 = arith.select %620, %614, %578 : vector<8x32xi1>, vector<8x32xf32>
    %cst_124 = arith.constant 0.000000e+00 : f32
    %623 = vector.broadcast %cst_124 : f32 to vector<8x32xf32>
    %624 = arith.select %620, %616, %623 : vector<8x32xi1>, vector<8x32xf32>
    %625 = vector.broadcast %13 : vector<1x32xf32> to vector<8x32xf32>
    %626 = arith.mulf %624, %625 : vector<8x32xf32>
    %cst_125 = arith.constant dense<0.000000e+00> : vector<8xf32>
    %627 = vector.multi_reduction <add>, %626, %cst_125 [1] : vector<8x32xf32> to vector<8xf32>
    %628 = vector.shape_cast %627 : vector<8xf32> to vector<8x1xf32>
    %629 = vector.broadcast %14 : vector<1x1xf32> to vector<8x1xf32>
    %630 = arith.addf %628, %629 : vector<8x1xf32>
    %631 = arith.negf %630 : vector<8x1xf32>
    %632 = math.exp %631 : vector<8x1xf32>
    %cst_126 = arith.constant 1.000000e+00 : f32
    %633 = vector.broadcast %cst_126 : f32 to vector<8x1xf32>
    %634 = arith.addf %633, %632 : vector<8x1xf32>
    %635 = arith.divf %633, %634 : vector<8x1xf32>
    %636 = vector.broadcast %635 : vector<8x1xf32> to vector<8x32xf32>
    %637 = arith.mulf %624, %636 : vector<8x32xf32>
    %c0_127 = arith.constant 0 : index
    %c416 = arith.constant 416 : index
    %638 = vector.load %arg7[%c0_127, %c416] : memref<8x512xf32, #tpu.memory_space<vmem>>, vector<8x32xf32>
    tpu.vector_store %arg7[%c0_127, %c416], %637 {strides = array<i32>} : memref<8x512xf32, #tpu.memory_space<vmem>>, vector<8x32xf32>,
    %639 = vector.extract_strided_slice %11 {offsets = [112, 0], sizes = [8, 128], strides = [1, 1]} : vector<128x128xf32> to vector<8x128xf32>
    %cst_128 = arith.constant dense<0.000000e+00> : vector<8x128xf32>
    %640 = tpu.matmul %621, %12, %cst_128 {dimension_numbers = #tpu.dot_dimension_numbers<[1], [0], [0], [1], [0, 0, 1, 1], [], []>} : vector<8x32xf32>, vector<32x128xf32>, vector<8x128xf32> -> vector<8x128xf32>
    %641 = arith.addf %639, %640 : vector<8x128xf32>
    %642 = arith.negf %641 : vector<8x128xf32>
    %643 = math.exp %642 : vector<8x128xf32>
    %cst_129 = arith.constant 1.000000e+00 : f32
    %644 = vector.broadcast %cst_129 : f32 to vector<8x128xf32>
    %645 = arith.addf %644, %643 : vector<8x128xf32>
    %646 = arith.divf %644, %645 : vector<8x128xf32>
    %cst_130 = arith.constant 2.000000e+00 : f32
    %647 = vector.broadcast %cst_130 : f32 to vector<8x128xf32>
    %648 = arith.mulf %647, %646 : vector<8x128xf32>
    %cst_131 = arith.constant 1.000000e+00 : f32
    %649 = vector.broadcast %cst_131 : f32 to vector<8x128xf32>
    %650 = arith.subf %648, %649 : vector<8x128xf32>
    %651 = arith.select %20, %650, %646 : vector<8x128xi1>, vector<8x128xf32>
    %652 = vector.extract_strided_slice %651 {offsets = [0, 0], sizes = [8, 32], strides = [1, 1]} : vector<8x128xf32> to vector<8x32xf32>
    %653 = vector.extract_strided_slice %651 {offsets = [0, 32], sizes = [8, 32], strides = [1, 1]} : vector<8x128xf32> to vector<8x32xf32>
    %654 = vector.extract_strided_slice %651 {offsets = [0, 64], sizes = [8, 32], strides = [1, 1]} : vector<8x128xf32> to vector<8x32xf32>
    %655 = vector.extract_strided_slice %651 {offsets = [0, 96], sizes = [8, 32], strides = [1, 1]} : vector<8x128xf32> to vector<8x32xf32>
    %656 = arith.mulf %653, %622 : vector<8x32xf32>
    %657 = arith.mulf %652, %654 : vector<8x32xf32>
    %658 = arith.addf %656, %657 : vector<8x32xf32>
    %659 = math.tanh %658 : vector<8x32xf32>
    %660 = arith.mulf %655, %659 : vector<8x32xf32>
    %c14_i32 = arith.constant 14 : i32
    %661 = vector.broadcast %c14_i32 : i32 to vector<8x1xi32>
    %662 = arith.cmpi sgt, %1, %661 : vector<8x1xi32>
    %663 = vector.shape_cast %662 : vector<8x1xi1> to vector<8x1xi1>
    %664 = vector.broadcast %663 : vector<8x1xi1> to vector<8x32xi1>
    %665 = arith.select %664, %660, %621 : vector<8x32xi1>, vector<8x32xf32>
    %666 = arith.select %664, %658, %622 : vector<8x32xi1>, vector<8x32xf32>
    %cst_132 = arith.constant 0.000000e+00 : f32
    %667 = vector.broadcast %cst_132 : f32 to vector<8x32xf32>
    %668 = arith.select %664, %660, %667 : vector<8x32xi1>, vector<8x32xf32>
    %669 = vector.broadcast %13 : vector<1x32xf32> to vector<8x32xf32>
    %670 = arith.mulf %668, %669 : vector<8x32xf32>
    %cst_133 = arith.constant dense<0.000000e+00> : vector<8xf32>
    %671 = vector.multi_reduction <add>, %670, %cst_133 [1] : vector<8x32xf32> to vector<8xf32>
    %672 = vector.shape_cast %671 : vector<8xf32> to vector<8x1xf32>
    %673 = vector.broadcast %14 : vector<1x1xf32> to vector<8x1xf32>
    %674 = arith.addf %672, %673 : vector<8x1xf32>
    %675 = arith.negf %674 : vector<8x1xf32>
    %676 = math.exp %675 : vector<8x1xf32>
    %cst_134 = arith.constant 1.000000e+00 : f32
    %677 = vector.broadcast %cst_134 : f32 to vector<8x1xf32>
    %678 = arith.addf %677, %676 : vector<8x1xf32>
    %679 = arith.divf %677, %678 : vector<8x1xf32>
    %680 = vector.broadcast %679 : vector<8x1xf32> to vector<8x32xf32>
    %681 = arith.mulf %668, %680 : vector<8x32xf32>
    %c0_135 = arith.constant 0 : index
    %c448 = arith.constant 448 : index
    %682 = vector.load %arg7[%c0_135, %c448] : memref<8x512xf32, #tpu.memory_space<vmem>>, vector<8x32xf32>
    tpu.vector_store %arg7[%c0_135, %c448], %681 {strides = array<i32>} : memref<8x512xf32, #tpu.memory_space<vmem>>, vector<8x32xf32>,
    %683 = vector.extract_strided_slice %11 {offsets = [120, 0], sizes = [8, 128], strides = [1, 1]} : vector<128x128xf32> to vector<8x128xf32>
    %cst_136 = arith.constant dense<0.000000e+00> : vector<8x128xf32>
    %684 = tpu.matmul %665, %12, %cst_136 {dimension_numbers = #tpu.dot_dimension_numbers<[1], [0], [0], [1], [0, 0, 1, 1], [], []>} : vector<8x32xf32>, vector<32x128xf32>, vector<8x128xf32> -> vector<8x128xf32>
    %685 = arith.addf %683, %684 : vector<8x128xf32>
    %686 = arith.negf %685 : vector<8x128xf32>
    %687 = math.exp %686 : vector<8x128xf32>
    %cst_137 = arith.constant 1.000000e+00 : f32
    %688 = vector.broadcast %cst_137 : f32 to vector<8x128xf32>
    %689 = arith.addf %688, %687 : vector<8x128xf32>
    %690 = arith.divf %688, %689 : vector<8x128xf32>
    %cst_138 = arith.constant 2.000000e+00 : f32
    %691 = vector.broadcast %cst_138 : f32 to vector<8x128xf32>
    %692 = arith.mulf %691, %690 : vector<8x128xf32>
    %cst_139 = arith.constant 1.000000e+00 : f32
    %693 = vector.broadcast %cst_139 : f32 to vector<8x128xf32>
    %694 = arith.subf %692, %693 : vector<8x128xf32>
    %695 = arith.select %20, %694, %690 : vector<8x128xi1>, vector<8x128xf32>
    %696 = vector.extract_strided_slice %695 {offsets = [0, 0], sizes = [8, 32], strides = [1, 1]} : vector<8x128xf32> to vector<8x32xf32>
    %697 = vector.extract_strided_slice %695 {offsets = [0, 32], sizes = [8, 32], strides = [1, 1]} : vector<8x128xf32> to vector<8x32xf32>
    %698 = vector.extract_strided_slice %695 {offsets = [0, 64], sizes = [8, 32], strides = [1, 1]} : vector<8x128xf32> to vector<8x32xf32>
    %699 = vector.extract_strided_slice %695 {offsets = [0, 96], sizes = [8, 32], strides = [1, 1]} : vector<8x128xf32> to vector<8x32xf32>
    %700 = arith.mulf %697, %666 : vector<8x32xf32>
    %701 = arith.mulf %696, %698 : vector<8x32xf32>
    %702 = arith.addf %700, %701 : vector<8x32xf32>
    %703 = math.tanh %702 : vector<8x32xf32>
    %704 = arith.mulf %699, %703 : vector<8x32xf32>
    %c15_i32 = arith.constant 15 : i32
    %705 = vector.broadcast %c15_i32 : i32 to vector<8x1xi32>
    %706 = arith.cmpi sgt, %1, %705 : vector<8x1xi32>
    %707 = vector.shape_cast %706 : vector<8x1xi1> to vector<8x1xi1>
    %708 = vector.broadcast %707 : vector<8x1xi1> to vector<8x32xi1>
    %709 = arith.select %708, %704, %665 : vector<8x32xi1>, vector<8x32xf32>
    %710 = arith.select %708, %702, %666 : vector<8x32xi1>, vector<8x32xf32>
    %cst_140 = arith.constant 0.000000e+00 : f32
    %711 = vector.broadcast %cst_140 : f32 to vector<8x32xf32>
    %712 = arith.select %708, %704, %711 : vector<8x32xi1>, vector<8x32xf32>
    %713 = vector.broadcast %13 : vector<1x32xf32> to vector<8x32xf32>
    %714 = arith.mulf %712, %713 : vector<8x32xf32>
    %cst_141 = arith.constant dense<0.000000e+00> : vector<8xf32>
    %715 = vector.multi_reduction <add>, %714, %cst_141 [1] : vector<8x32xf32> to vector<8xf32>
    %716 = vector.shape_cast %715 : vector<8xf32> to vector<8x1xf32>
    %717 = vector.broadcast %14 : vector<1x1xf32> to vector<8x1xf32>
    %718 = arith.addf %716, %717 : vector<8x1xf32>
    %719 = arith.negf %718 : vector<8x1xf32>
    %720 = math.exp %719 : vector<8x1xf32>
    %cst_142 = arith.constant 1.000000e+00 : f32
    %721 = vector.broadcast %cst_142 : f32 to vector<8x1xf32>
    %722 = arith.addf %721, %720 : vector<8x1xf32>
    %723 = arith.divf %721, %722 : vector<8x1xf32>
    %724 = vector.broadcast %723 : vector<8x1xf32> to vector<8x32xf32>
    %725 = arith.mulf %712, %724 : vector<8x32xf32>
    %c0_143 = arith.constant 0 : index
    %c480 = arith.constant 480 : index
    %726 = vector.load %arg7[%c0_143, %c480] : memref<8x512xf32, #tpu.memory_space<vmem>>, vector<8x32xf32>
    tpu.vector_store %arg7[%c0_143, %c480], %725 {strides = array<i32>} : memref<8x512xf32, #tpu.memory_space<vmem>>, vector<8x32xf32>,
    %c0_144 = arith.constant 0 : index
    %c0_145 = arith.constant 0 : index
    %727 = vector.load %arg8[%c0_144, %c0_145] : memref<8x32xf32, #tpu.memory_space<vmem>>, vector<8x32xf32>
    tpu.vector_store %arg8[%c0_144, %c0_145], %709 {strides = array<i32>} : memref<8x32xf32, #tpu.memory_space<vmem>>, vector<8x32xf32>,
    %c0_146 = arith.constant 0 : index
    %c0_147 = arith.constant 0 : index
    %728 = vector.load %arg9[%c0_146, %c0_147] : memref<8x32xf32, #tpu.memory_space<vmem>>, vector<8x32xf32>
    tpu.vector_store %arg9[%c0_146, %c0_147], %710 {strides = array<i32>} : memref<8x32xf32, #tpu.memory_space<vmem>>, vector<8x32xf32>,
    return
  }
}

</mosaic_0001>

<llo_original>
// kernel: gated_rnn_encoder_forward.1
$region0: #{gated_rnn_encoder_forward.1}
  #allocation0 [shape = 'u32[]', space=smem, size = 0x4, offset = 0x4, fixed_abs, tag = 'smem constant byte address 0x4 - core index']
  #allocation1 [shape = 'u32[144,128]{1,0:T(1,128)}', space=vmem, size = 0x12000, scoped, tag = 'internal scratch']
  #allocation2 [shape = 'f32[1,1]{1,0:T(1,128)S(1)}', space=vmem, size = 0x200, scoped, tag = 'scoped memory for gated_rnn_encoder_forward.1']
  %s0 = inlined_call_operand.vmem [shape: s32[128,1], index: 0, kind: input, shape index: {}]
  %s1 = inlined_call_operand.vmem [shape: s32[8,1], index: 1, kind: input, shape index: {}]
  %s2 = inlined_call_operand.vmem [shape: f32[64,128], index: 2, kind: input, shape index: {}]
  %s3 = inlined_call_operand.vmem [shape: f32[32,128], index: 3, kind: input, shape index: {}]
  %s4 = inlined_call_operand.vmem [shape: f32[1,128], index: 4, kind: input, shape index: {}]
  %s5 = inlined_call_operand.vmem [shape: f32[1,32], index: 5, kind: input, shape index: {}]
  %s6 = inlined_call_operand.<no memory space> [shape: f32[1,1], index: 6, kind: input, shape index: {}]
  %s7 = inlined_call_operand.vmem [shape: f32[8,512], index: 7, kind: output, shape index: {0}]
  %s8 = inlined_call_operand.vmem [shape: f32[8,32], index: 8, kind: output, shape index: {1}]
  %s9 = inlined_call_operand.vmem [shape: f32[8,32], index: 9, kind: output, shape index: {2}]
  %10 = xla_tuple %s7, %s8, %s9
  %s11 = sld [smem:[#allocation0]]
  $region54: #{gated_rnn_encoder_forward.1} parent=0
    _
  %s13 = ssub.s32 1, %s11
  %s14 = scalar_select 0, %s13, %s11
  %v15 = vstv %s6
  %16 = vst [vmem:[#allocation2] sm:$0x1] %v15
  // Predicated region
  $region2: #{gated_rnn_encoder_forward.1} parent=0 // pred_check
    _
  $region3: #{gated_rnn_encoder_forward.1} parent=0 // pred_check_branch
    %18 = sbr.rel (0) target = $region5
  $region4: #{gated_rnn_encoder_forward.1} parent=0 // pred_region
    _
  $region5: #{gated_rnn_encoder_forward.1} parent=0 // pred_fallthru
    _
  // Predicated region
  $region6: #{gated_rnn_encoder_forward.1} parent=0 // pred_check
    _
  $region7: #{gated_rnn_encoder_forward.1} parent=0 // pred_check_branch
    %20 = sbr.rel (0) target = $region9
  $region8: #{gated_rnn_encoder_forward.1} parent=0 // pred_region
    _
  $region9: #{gated_rnn_encoder_forward.1} parent=0 // pred_fallthru
    _
  // Predicated region
  $region10: #{gated_rnn_encoder_forward.1} parent=0 // pred_check
    _
  $region11: #{gated_rnn_encoder_forward.1} parent=0 // pred_check_branch
    %22 = sbr.rel (0) target = $region13
  $region12: #{gated_rnn_encoder_forward.1} parent=0 // pred_region
    _
  $region13: #{gated_rnn_encoder_forward.1} parent=0 // pred_fallthru
    _
  // Predicated region
  $region14: #{gated_rnn_encoder_forward.1} parent=0 // pred_check
    _
  $region15: #{gated_rnn_encoder_forward.1} parent=0 // pred_check_branch
    %24 = sbr.rel (0) target = $region17
  $region16: #{gated_rnn_encoder_forward.1} parent=0 // pred_region
    _
  $region17: #{gated_rnn_encoder_forward.1} parent=0 // pred_fallthru
    _
  // Predicated region
  $region18: #{gated_rnn_encoder_forward.1} parent=0 // pred_check
    _
  $region19: #{gated_rnn_encoder_forward.1} parent=0 // pred_check_branch
    %26 = sbr.rel (0) target = $region21
  $region20: #{gated_rnn_encoder_forward.1} parent=0 // pred_region
    _
  $region21: #{gated_rnn_encoder_forward.1} parent=0 // pred_fallthru
    _
  // Predicated region
  $region22: #{gated_rnn_encoder_forward.1} parent=0 // pred_check
    _
  $region23: #{gated_rnn_encoder_forward.1} parent=0 // pred_check_branch
    %28 = sbr.rel (0) target = $region25
  $region24: #{gated_rnn_encoder_forward.1} parent=0 // pred_region
    _
  $region25: #{gated_rnn_encoder_forward.1} parent=0 // pred_fallthru
    _
  // Predicated region
  $region26: #{gated_rnn_encoder_forward.1} parent=0 // pred_check
    _
  $region27: #{gated_rnn_encoder_forward.1} parent=0 // pred_check_branch
    %30 = sbr.rel (0) target = $region29
  $region28: #{gated_rnn_encoder_forward.1} parent=0 // pred_region
    _
  $region29: #{gated_rnn_encoder_forward.1} parent=0 // pred_fallthru
    _
  %v31 = vld [vmem:[%s0] sm:$0xff]
  %v32 = vld [vmem:[%s0 + $0x8] sm:$0xff]
  %v33 = vld [vmem:[%s0 + $0x10] sm:$0xff]
  %v34 = vld [vmem:[%s0 + $0x18] sm:$0xff]
  %v35 = vld [vmem:[%s0 + $0x20] sm:$0xff]
  %v36 = vld [vmem:[%s0 + $0x28] sm:$0xff]
  %v37 = vld [vmem:[%s0 + $0x30] sm:$0xff]
  %v38 = vld [vmem:[%s0 + $0x38] sm:$0xff]
  %v39 = vld [vmem:[%s0 + $0x40] sm:$0xff]
  %v40 = vld [vmem:[%s0 + $0x48] sm:$0xff]
  %v41 = vld [vmem:[%s0 + $0x50] sm:$0xff]
  %v42 = vld [vmem:[%s0 + $0x58] sm:$0xff]
  %v43 = vld [vmem:[%s0 + $0x60] sm:$0xff]
  %v44 = vld [vmem:[%s0 + $0x68] sm:$0xff]
  %v45 = vld [vmem:[%s0 + $0x70] sm:$0xff]
  %v46 = vld [vmem:[%s0 + $0x78] sm:$0xff]
  %v47 = vld [vmem:[%s1] sm:$0xff]
  %v48 = vlaneseq
  %v49 = vand.u32 %v48, 127
  %50 = vset.pattern.permute.xlu0 0
  %51 = vperm.xlu0 %50, %v31
  %v52 = vpop.permute.xlu0 %51
  %53 = vset.pattern.permute.xlu0 0
  %54 = vperm.xlu0 %53, %v32
  %v55 = vpop.permute.xlu0 %54
  %56 = vset.pattern.permute.xlu0 0
  %57 = vperm.xlu0 %56, %v33
  %v58 = vpop.permute.xlu0 %57
  %59 = vset.pattern.permute.xlu0 0
  %60 = vperm.xlu0 %59, %v34
  %v61 = vpop.permute.xlu0 %60
  %62 = vset.pattern.permute.xlu0 0
  %63 = vperm.xlu0 %62, %v35
  %v64 = vpop.permute.xlu0 %63
  %65 = vset.pattern.permute.xlu0 0
  %66 = vperm.xlu0 %65, %v36
  %v67 = vpop.permute.xlu0 %66
  %68 = vset.pattern.permute.xlu0 0
  %69 = vperm.xlu0 %68, %v37
  %v70 = vpop.permute.xlu0 %69
  %71 = vset.pattern.permute.xlu0 0
  %72 = vperm.xlu0 %71, %v38
  %v73 = vpop.permute.xlu0 %72
  %74 = vset.pattern.permute.xlu0 0
  %75 = vperm.xlu0 %74, %v39
  %v76 = vpop.permute.xlu0 %75
  %77 = vset.pattern.permute.xlu0 0
  %78 = vperm.xlu0 %77, %v40
  %v79 = vpop.permute.xlu0 %78
  %80 = vset.pattern.permute.xlu0 0
  %81 = vperm.xlu0 %80, %v41
  %v82 = vpop.permute.xlu0 %81
  %83 = vset.pattern.permute.xlu0 0
  %84 = vperm.xlu0 %83, %v42
  %v85 = vpop.permute.xlu0 %84
  %86 = vset.pattern.permute.xlu0 0
  %87 = vperm.xlu0 %86, %v43
  %v88 = vpop.permute.xlu0 %87
  %89 = vset.pattern.permute.xlu0 0
  %90 = vperm.xlu0 %89, %v44
  %v91 = vpop.permute.xlu0 %90
  %92 = vset.pattern.permute.xlu0 0
  %93 = vperm.xlu0 %92, %v45
  %v94 = vpop.permute.xlu0 %93
  %95 = vset.pattern.permute.xlu0 0
  %96 = vperm.xlu0 %95, %v46
  %v97 = vpop.permute.xlu0 %96
  %vm98 = vcmp.eq.s32.totalorder %v49, %v52
  %vm99 = vcmp.eq.s32.totalorder %v49, %v55
  %vm100 = vcmp.eq.s32.totalorder %v49, %v58
  %vm101 = vcmp.eq.s32.totalorder %v49, %v61
  %vm102 = vcmp.eq.s32.totalorder %v49, %v64
  %vm103 = vcmp.eq.s32.totalorder %v49, %v67
  %vm104 = vcmp.eq.s32.totalorder %v49, %v70
  %vm105 = vcmp.eq.s32.totalorder %v49, %v73
  %vm106 = vcmp.eq.s32.totalorder %v49, %v76
  %vm107 = vcmp.eq.s32.totalorder %v49, %v79
  %vm108 = vcmp.eq.s32.totalorder %v49, %v82
  %vm109 = vcmp.eq.s32.totalorder %v49, %v85
  %vm110 = vcmp.eq.s32.totalorder %v49, %v88
  %vm111 = vcmp.eq.s32.totalorder %v49, %v91
  %vm112 = vcmp.eq.s32.totalorder %v49, %v94
  %vm113 = vcmp.eq.s32.totalorder %v49, %v97
  %v114 = vsel %vm98, 1, 0
  %v115 = vsel %vm99, 1, 0
  %v116 = vsel %vm100, 1, 0
  %v117 = vsel %vm101, 1, 0
  %v118 = vsel %vm102, 1, 0
  %v119 = vsel %vm103, 1, 0
  %v120 = vsel %vm104, 1, 0
  %v121 = vsel %vm105, 1, 0
  %v122 = vsel %vm106, 1, 0
  %v123 = vsel %vm107, 1, 0
  %v124 = vsel %vm108, 1, 0
  %v125 = vsel %vm109, 1, 0
  %v126 = vsel %vm110, 1, 0
  %v127 = vsel %vm111, 1, 0
  %v128 = vsel %vm112, 1, 0
  %v129 = vsel %vm113, 1, 0
  %v130 = vcvt.s32.f32 %v114
  %v131 = vcvt.s32.f32 %v115
  %v132 = vcvt.s32.f32 %v116
  %v133 = vcvt.s32.f32 %v117
  %v134 = vcvt.s32.f32 %v118
  %v135 = vcvt.s32.f32 %v119
  %v136 = vcvt.s32.f32 %v120
  %v137 = vcvt.s32.f32 %v121
  %v138 = vcvt.s32.f32 %v122
  %v139 = vcvt.s32.f32 %v123
  %v140 = vcvt.s32.f32 %v124
  %v141 = vcvt.s32.f32 %v125
  %v142 = vcvt.s32.f32 %v126
  %v143 = vcvt.s32.f32 %v127
  %v144 = vcvt.s32.f32 %v128
  %v145 = vcvt.s32.f32 %v129
  %v146 = vld [vmem:[%s2] sm:$0xff]
  %v147 = vld [vmem:[%s2 + $0x8] sm:$0xff]
  %v148 = vld [vmem:[%s2 + $0x10] sm:$0xff]
  %v149 = vld [vmem:[%s2 + $0x18] sm:$0xff]
  %v150 = vld [vmem:[%s2 + $0x20] sm:$0xff]
  %v151 = vld [vmem:[%s2 + $0x28] sm:$0xff]
  %v152 = vld [vmem:[%s2 + $0x30] sm:$0xff]
  %v153 = vld [vmem:[%s2 + $0x38] sm:$0xff]
  %v154 = vld [vmem:[%s4] sm:$0x1]
  %v156 = vlaneseq
  %v157 = vshrl.u32 %v156, 7
  %v158 = vsub.s32 0, %v157
  %v159 = vrot.slane %v154, %v158
  %vm161 = vcmask 523264
  %v163 = vsel %vm161, %v130, 0
  %v166 = vsel %vm161, %v131, 0
  %v169 = vsel %vm161, %v132, 0
  %v172 = vsel %vm161, %v133, 0
  %v175 = vsel %vm161, %v134, 0
  %v178 = vsel %vm161, %v135, 0
  %v181 = vsel %vm161, %v136, 0
  %v184 = vsel %vm161, %v137, 0
  %v187 = vsel %vm161, %v138, 0
  %v190 = vsel %vm161, %v139, 0
  %v193 = vsel %vm161, %v140, 0
  %v196 = vsel %vm161, %v141, 0
  %v199 = vsel %vm161, %v142, 0
  %v202 = vsel %vm161, %v143, 0
  %v205 = vsel %vm161, %v144, 0
  %v208 = vsel %vm161, %v145, 0
  %210 = vmatprep.subr.mxu0 0.0
  %211 = vmatpush1.msra.mxu0 %v146
  %212 = vmatprep.subr.mxu0 0.0
  %213 = vmatpush1.msra.mxu0 %v147
  %214 = vmatprep.subr.mxu0 0.0
  %215 = vmatpush1.msra.mxu0 %v148
  %216 = vmatprep.subr.mxu0 0.0
  %217 = vmatpush1.msra.mxu0 %v149
  %218 = vmatprep.subr.mxu0 0.0
  %219 = vmatpush1.msra.mxu0 %v150
  %220 = vmatprep.subr.mxu0 0.0
  %221 = vmatpush1.msra.mxu0 %v151
  %222 = vmatprep.subr.mxu0 0.0
  %223 = vmatpush1.msra.mxu0 %v152
  %224 = vmatprep.subr.mxu0 0.0
  %225 = vmatpush1.msra.mxu0 %v153
  %226 = vmatprep.subr.mxu0 0.0
  %227 = vmatpush1.msra.mxu0 0.0
  %228 = vmatprep.subr.mxu0 0.0
  %229 = vmatpush1.msra.mxu0 0.0
  %230 = vmatprep.subr.mxu0 0.0
  %231 = vmatpush1.msra.mxu0 0.0
  %232 = vmatprep.subr.mxu0 0.0
  %233 = vmatpush1.msra.mxu0 0.0
  %234 = vmatprep.subr.mxu0 0.0
  %235 = vmatpush1.msra.mxu0 0.0
  %236 = vmatprep.subr.mxu0 0.0
  %237 = vmatpush1.msra.mxu0 0.0
  %238 = vmatprep.subr.mxu0 0.0
  %239 = vmatpush1.msra.mxu0 0.0
  %240 = vmatprep.subr.mxu0 0.0
  %241 = vmatpush1.msra.mxu0 0.0
  %242 = vmatprep.subr.mxu0 0.0
  %243 = vmatpush1.msra.mxu0 0.0
  %244 = vmatprep.subr.mxu0 0.0
  %245 = vmatpush1.msra.mxu0 0.0
  %246 = vmatprep.subr.mxu0 0.0
  %247 = vmatpush1.msra.mxu0 0.0
  %248 = vmatprep.subr.mxu0 0.0
  %249 = vmatpush1.msra.mxu0 0.0
  %250 = vmatprep.subr.mxu0 0.0
  %251 = vmatpush1.msra.mxu0 0.0
  %252 = vmatprep.subr.mxu0 0.0
  %253 = vmatpush1.msra.mxu0 0.0
  %254 = vmatprep.subr.mxu0 0.0
  %255 = vmatpush1.msra.mxu0 0.0
  %256 = vmatprep.subr.mxu0 0.0
  %257 = vmatpush1.msra.mxu0 0.0
  %258 = vmatprep.subr.mxu0 0.0
  %259 = vmatpush1.msra.mxu0 0.0
  %260 = vmatprep.subr.mxu0 0.0
  %261 = vmatpush1.msra.mxu0 0.0
  %262 = vmatprep.subr.mxu0 0.0
  %263 = vmatpush1.msra.mxu0 0.0
  %264 = vmatprep.subr.mxu0 0.0
  %265 = vmatpush1.msra.mxu0 0.0
  %266 = vmatprep.subr.mxu0 0.0
  %267 = vmatpush1.msra.mxu0 0.0
  %268 = vmatprep.subr.mxu0 0.0
  %269 = vmatpush1.msra.mxu0 0.0
  %270 = vmatprep.subr.mxu0 0.0
  %271 = vmatpush1.msra.mxu0 0.0
  %272 = vmatprep.subr.mxu0 0.0
  %273 = vmatpush1.msra.mxu0 0.0
  %274 = vmatprep.mubr.f32.mxu0 0.0
  %275 = vmatmul.mubr.f32.gmra.mrb[0].mxu0 %v163
  %v276 = vpop.f32.mrb[0].mxu0
  %v277 = vadd.f32 %v159, %v276
  %v278 = vpop.f32.mrb[0].mxu0
  %279 = vmatprep.mubr.f32.mxu0 0.0
  %280 = vmatmul.mubr.f32.gmra.mrb[0].mxu0 %v166
  %v281 = vpop.f32.mrb[0].mxu0
  %v282 = vadd.f32 %v159, %v281
  %v283 = vpop.f32.mrb[0].mxu0
  %284 = vmatprep.mubr.f32.mxu0 0.0
  %285 = vmatmul.mubr.f32.gmra.mrb[0].mxu0 %v169
  %v286 = vpop.f32.mrb[0].mxu0
  %v287 = vadd.f32 %v159, %v286
  %v288 = vpop.f32.mrb[0].mxu0
  %289 = vmatprep.mubr.f32.mxu0 0.0
  %290 = vmatmul.mubr.f32.gmra.mrb[0].mxu0 %v172
  %v291 = vpop.f32.mrb[0].mxu0
  %v292 = vadd.f32 %v159, %v291
  %v293 = vpop.f32.mrb[0].mxu0
  %294 = vmatprep.mubr.f32.mxu0 0.0
  %295 = vmatmul.mubr.f32.gmra.mrb[0].mxu0 %v175
  %v296 = vpop.f32.mrb[0].mxu0
  %v297 = vadd.f32 %v159, %v296
  %v298 = vpop.f32.mrb[0].mxu0
  %299 = vmatprep.mubr.f32.mxu0 0.0
  %300 = vmatmul.mubr.f32.gmra.mrb[0].mxu0 %v178
  %v301 = vpop.f32.mrb[0].mxu0
  %v302 = vadd.f32 %v159, %v301
  %v303 = vpop.f32.mrb[0].mxu0
  %304 = vmatprep.mubr.f32.mxu0 0.0
  %305 = vmatmul.mubr.f32.gmra.mrb[0].mxu0 %v181
  %v306 = vpop.f32.mrb[0].mxu0
  %v307 = vadd.f32 %v159, %v306
  %v308 = vpop.f32.mrb[0].mxu0
  %309 = vmatprep.mubr.f32.mxu0 0.0
  %310 = vmatmul.mubr.f32.gmra.mrb[0].mxu0 %v184
  %v311 = vpop.f32.mrb[0].mxu0
  %v312 = vadd.f32 %v159, %v311
  %v313 = vpop.f32.mrb[0].mxu0
  %314 = vmatprep.mubr.f32.mxu0 0.0
  %315 = vmatmul.mubr.f32.gmra.mrb[0].mxu0 %v187
  %v316 = vpop.f32.mrb[0].mxu0
  %v317 = vadd.f32 %v159, %v316
  %v318 = vpop.f32.mrb[0].mxu0
  %319 = vmatprep.mubr.f32.mxu0 0.0
  %320 = vmatmul.mubr.f32.gmra.mrb[0].mxu0 %v190
  %v321 = vpop.f32.mrb[0].mxu0
  %v322 = vadd.f32 %v159, %v321
  %v323 = vpop.f32.mrb[0].mxu0
  %324 = vmatprep.mubr.f32.mxu0 0.0
  %325 = vmatmul.mubr.f32.gmra.mrb[0].mxu0 %v193
  %v326 = vpop.f32.mrb[0].mxu0
  %v327 = vadd.f32 %v159, %v326
  %v328 = vpop.f32.mrb[0].mxu0
  %329 = vmatprep.mubr.f32.mxu0 0.0
  %330 = vmatmul.mubr.f32.gmra.mrb[0].mxu0 %v196
  %v331 = vpop.f32.mrb[0].mxu0
  %v332 = vadd.f32 %v159, %v331
  %v333 = vpop.f32.mrb[0].mxu0
  %334 = vmatprep.mubr.f32.mxu0 0.0
  %335 = vmatmul.mubr.f32.gmra.mrb[0].mxu0 %v199
  %v336 = vpop.f32.mrb[0].mxu0
  %v337 = vadd.f32 %v159, %v336
  %v338 = vpop.f32.mrb[0].mxu0
  %339 = vmatprep.mubr.f32.mxu0 0.0
  %340 = vmatmul.mubr.f32.gmra.mrb[0].mxu0 %v202
  %v341 = vpop.f32.mrb[0].mxu0
  %v342 = vadd.f32 %v159, %v341
  %v343 = vpop.f32.mrb[0].mxu0
  %344 = vmatprep.mubr.f32.mxu0 0.0
  %345 = vmatmul.mubr.f32.gmra.mrb[0].mxu0 %v205
  %v346 = vpop.f32.mrb[0].mxu0
  %v347 = vadd.f32 %v159, %v346
  %v348 = vpop.f32.mrb[0].mxu0
  %349 = vmatprep.mubr.f32.mxu0 0.0
  %350 = vmatmul.mubr.f32.gmra.mrb[0].mxu0 %v208
  %v351 = vpop.f32.mrb[0].mxu0
  %v352 = vadd.f32 %v159, %v351
  %v353 = vpop.f32.mrb[0].mxu0
  %354 = vdwg.mxu0
  %v355 = vld [vmem:[%s3] sm:$0xff]
  %v356 = vld [vmem:[%s3 + $0x8] sm:$0xff]
  %v357 = vld [vmem:[%s3 + $0x10] sm:$0xff]
  %v358 = vld [vmem:[%s3 + $0x18] sm:$0xff]
  %v359 = vld [vmem:[%s5] sm:$0x1]
  %v360 = vld [vmem:[#allocation2] sm:$0x1]
  %vm361 = vcmp.ge.s32.totalorder %v49, 64
  %vm362 = vcmp.lt.s32.totalorder %v49, 96
  %vm363 = vmand %vm361, %vm362
  %vm364 = vcmask 261120
  %v366 = vsel %vm364, 0.0, 0
  %368 = vmatprep.subr.mxu0 0.0
  %369 = vmatpush1.msra.mxu0 %v355
  %370 = vmatprep.subr.mxu0 0.0
  %371 = vmatpush1.msra.mxu0 %v356
  %372 = vmatprep.subr.mxu0 0.0
  %373 = vmatpush1.msra.mxu0 %v357
  %374 = vmatprep.subr.mxu0 0.0
  %375 = vmatpush1.msra.mxu0 %v358
  %376 = vmatprep.subr.mxu0 0.0
  %377 = vmatpush1.msra.mxu0 0.0
  %378 = vmatprep.subr.mxu0 0.0
  %379 = vmatpush1.msra.mxu0 0.0
  %380 = vmatprep.subr.mxu0 0.0
  %381 = vmatpush1.msra.mxu0 0.0
  %382 = vmatprep.subr.mxu0 0.0
  %383 = vmatpush1.msra.mxu0 0.0
  %384 = vmatprep.subr.mxu0 0.0
  %385 = vmatpush1.msra.mxu0 0.0
  %386 = vmatprep.subr.mxu0 0.0
  %387 = vmatpush1.msra.mxu0 0.0
  %388 = vmatprep.subr.mxu0 0.0
  %389 = vmatpush1.msra.mxu0 0.0
  %390 = vmatprep.subr.mxu0 0.0
  %391 = vmatpush1.msra.mxu0 0.0
  %392 = vmatprep.subr.mxu0 0.0
  %393 = vmatpush1.msra.mxu0 0.0
  %394 = vmatprep.subr.mxu0 0.0
  %395 = vmatpush1.msra.mxu0 0.0
  %396 = vmatprep.subr.mxu0 0.0
  %397 = vmatpush1.msra.mxu0 0.0
  %398 = vmatprep.subr.mxu0 0.0
  %399 = vmatpush1.msra.mxu0 0.0
  %400 = vmatprep.subr.mxu0 0.0
  %401 = vmatpush1.msra.mxu0 0.0
  %402 = vmatprep.subr.mxu0 0.0
  %403 = vmatpush1.msra.mxu0 0.0
  %404 = vmatprep.subr.mxu0 0.0
  %405 = vmatpush1.msra.mxu0 0.0
  %406 = vmatprep.subr.mxu0 0.0
  %407 = vmatpush1.msra.mxu0 0.0
  %408 = vmatprep.subr.mxu0 0.0
  %409 = vmatpush1.msra.mxu0 0.0
  %410 = vmatprep.subr.mxu0 0.0
  %411 = vmatpush1.msra.mxu0 0.0
  %412 = vmatprep.subr.mxu0 0.0
  %413 = vmatpush1.msra.mxu0 0.0
  %414 = vmatprep.subr.mxu0 0.0
  %415 = vmatpush1.msra.mxu0 0.0
  %416 = vmatprep.subr.mxu0 0.0
  %417 = vmatpush1.msra.mxu0 0.0
  %418 = vmatprep.subr.mxu0 0.0
  %419 = vmatpush1.msra.mxu0 0.0
  %420 = vmatprep.subr.mxu0 0.0
  %421 = vmatpush1.msra.mxu0 0.0
  %422 = vmatprep.subr.mxu0 0.0
  %423 = vmatpush1.msra.mxu0 0.0
  %424 = vmatprep.subr.mxu0 0.0
  %425 = vmatpush1.msra.mxu0 0.0
  %426 = vmatprep.subr.mxu0 0.0
  %427 = vmatpush1.msra.mxu0 0.0
  %428 = vmatprep.subr.mxu0 0.0
  %429 = vmatpush1.msra.mxu0 0.0
  %430 = vmatprep.subr.mxu0 0.0
  %431 = vmatpush1.msra.mxu0 0.0
  %432 = vmatprep.mubr.f32.mxu0 0.0
  %433 = vmatmul.mubr.f32.gmra.mrb[0].mxu0 %v366
  %v434 = vpop.f32.mrb[0].mxu0
  %v435 = vadd.f32 0.0, %v434
  %v436 = vpop.f32.mrb[0].mxu0
  %437 = vdwg.mxu0
  %v438 = vadd.f32 %v277, %v435
  %v439 = vxor.u32 %v438, 2147483648
  %v440 = vmul.f32 %v439, 1.442695
  %v441 = vpow.pop %v440
  %v442 = vadd.f32 %v441, 1.0
  %v443 = vrcp.pop %v442
  %v444 = vmul.f32 1.0, %v443
  %v445 = vmul.f32 %v444, 2.0
  %v446 = vsub.f32 %v445, 1.0
  %v447 = vsel %vm363, %v446, %v444
  %v448 = vmul.f32 %v447, 0.0
  %450 = vrot.lane.b32.xlu0 %v447, 64
  %v451 = vpop.permute.xlu0 %450
  %v453 = vmul.f32 %v447, %v451
  %455 = vrot.lane.b32.xlu0 %v453, 32
  %v456 = vpop.permute.xlu0 %455
  %v458 = vadd.f32 %v448, %v456
  %v459 = vtanh.pop %v458
  %461 = vrot.lane.b32.xlu0 %v459, 64
  %v462 = vpop.permute.xlu0 %461
  %v464 = vmul.f32 %v447, %v462
  %vm465 = vcmp.gt.s32.totalorder %v47, 0
  %v466 = vsel %vm465, 1, 0
  %467 = vset.pattern.permute.xlu0 0
  %468 = vperm.xlu0 %467, %v466
  %v469 = vpop.permute.xlu0 %468
  %vm470 = vcmp.eq.s32.totalorder %v469, 1
  %v471 = vsel %vm470, %v464, 0.0
  %v472 = vsel %vm470, %v458, 0.0
  %v474 = vlaneseq
  %v475 = vshrl.u32 %v474, 7
  %v476 = vsub.s32 0, %v475
  %v477 = vrot.slane %v359, %v476
  %478 = vrot.lane.b32.xlu0 %v477, 96
  %v479 = vpop.permute.xlu0 %478
  %v481 = vmul.f32 %v471, %v479
  %483 = vrot.lane.b32.xlu0 %v481, 32
  %v484 = vpop.permute.xlu0 %483
  %v486 = vsel %vm364, %v484, 0.0
  %487 = vadd.xlane.f32.xlu0 %v486
  %v488 = vpop.xlane.xlu0 %487
  %v490 = vlaneseq
  %v491 = vshrl.u32 %v490, 7
  %v492 = vsub.s32 0, %v491
  %v493 = vrot.slane %v360, %v492
  %v495 = vadd.f32 %v488, %v493
  %v496 = vxor.u32 %v495, 2147483648
  %v497 = vmul.f32 %v496, 1.442695
  %v498 = vpow.pop %v497
  %v499 = vadd.f32 %v498, 1.0
  %v500 = vrcp.pop %v499
  %v501 = vmul.f32 1.0, %v500
  %503 = vset.pattern.permute.xlu0 0
  %504 = vperm.xlu0 %503, %v501
  %v505 = vpop.permute.xlu0 %504
  %v507 = vmul.f32 %v471, %v505
  %509 = vrot.lane.b32.xlu0 %v507, 32
  %v510 = vpop.permute.xlu0 %509
  %512 = vst.msk [vmem:[%s7] sm:$0xff] %vm364, %v510
  %514 = vrot.lane.b32.xlu0 %v471, 32
  %v515 = vpop.permute.xlu0 %514
  %v516 = vsel %vm364, %v515, 0
  %518 = vmatprep.subr.mxu0 0.0
  %519 = vmatpush1.msra.mxu0 %v355
  %520 = vmatprep.subr.mxu0 0.0
  %521 = vmatpush1.msra.mxu0 %v356
  %522 = vmatprep.subr.mxu0 0.0
  %523 = vmatpush1.msra.mxu0 %v357
  %524 = vmatprep.subr.mxu0 0.0
  %525 = vmatpush1.msra.mxu0 %v358
  %526 = vmatprep.subr.mxu0 0.0
  %527 = vmatpush1.msra.mxu0 0.0
  %528 = vmatprep.subr.mxu0 0.0
  %529 = vmatpush1.msra.mxu0 0.0
  %530 = vmatprep.subr.mxu0 0.0
  %531 = vmatpush1.msra.mxu0 0.0
  %532 = vmatprep.subr.mxu0 0.0
  %533 = vmatpush1.msra.mxu0 0.0
  %534 = vmatprep.subr.mxu0 0.0
  %535 = vmatpush1.msra.mxu0 0.0
  %536 = vmatprep.subr.mxu0 0.0
  %537 = vmatpush1.msra.mxu0 0.0
  %538 = vmatprep.subr.mxu0 0.0
  %539 = vmatpush1.msra.mxu0 0.0
  %540 = vmatprep.subr.mxu0 0.0
  %541 = vmatpush1.msra.mxu0 0.0
  %542 = vmatprep.subr.mxu0 0.0
  %543 = vmatpush1.msra.mxu0 0.0
  %544 = vmatprep.subr.mxu0 0.0
  %545 = vmatpush1.msra.mxu0 0.0
  %546 = vmatprep.subr.mxu0 0.0
  %547 = vmatpush1.msra.mxu0 0.0
  %548 = vmatprep.subr.mxu0 0.0
  %549 = vmatpush1.msra.mxu0 0.0
  %550 = vmatprep.subr.mxu0 0.0
  %551 = vmatpush1.msra.mxu0 0.0
  %552 = vmatprep.subr.mxu0 0.0
  %553 = vmatpush1.msra.mxu0 0.0
  %554 = vmatprep.subr.mxu0 0.0
  %555 = vmatpush1.msra.mxu0 0.0
  %556 = vmatprep.subr.mxu0 0.0
  %557 = vmatpush1.msra.mxu0 0.0
  %558 = vmatprep.subr.mxu0 0.0
  %559 = vmatpush1.msra.mxu0 0.0
  %560 = vmatprep.subr.mxu0 0.0
  %561 = vmatpush1.msra.mxu0 0.0
  %562 = vmatprep.subr.mxu0 0.0
  %563 = vmatpush1.msra.mxu0 0.0
  %564 = vmatprep.subr.mxu0 0.0
  %565 = vmatpush1.msra.mxu0 0.0
  %566 = vmatprep.subr.mxu0 0.0
  %567 = vmatpush1.msra.mxu0 0.0
  %568 = vmatprep.subr.mxu0 0.0
  %569 = vmatpush1.msra.mxu0 0.0
  %570 = vmatprep.subr.mxu0 0.0
  %571 = vmatpush1.msra.mxu0 0.0
  %572 = vmatprep.subr.mxu0 0.0
  %573 = vmatpush1.msra.mxu0 0.0
  %574 = vmatprep.subr.mxu0 0.0
  %575 = vmatpush1.msra.mxu0 0.0
  %576 = vmatprep.subr.mxu0 0.0
  %577 = vmatpush1.msra.mxu0 0.0
  %578 = vmatprep.subr.mxu0 0.0
  %579 = vmatpush1.msra.mxu0 0.0
  %580 = vmatprep.subr.mxu0 0.0
  %581 = vmatpush1.msra.mxu0 0.0
  %582 = vmatprep.mubr.f32.mxu0 0.0
  %583 = vmatmul.mubr.f32.gmra.mrb[0].mxu0 %v516
  %v584 = vpop.f32.mrb[0].mxu0
  %v585 = vadd.f32 0.0, %v584
  %v586 = vpop.f32.mrb[0].mxu0
  %587 = vdwg.mxu0
  %v588 = vadd.f32 %v282, %v585
  %v589 = vxor.u32 %v588, 2147483648
  %v590 = vmul.f32 %v589, 1.442695
  %v591 = vpow.pop %v590
  %v592 = vadd.f32 %v591, 1.0
  %v593 = vrcp.pop %v592
  %v594 = vmul.f32 1.0, %v593
  %v595 = vmul.f32 %v594, 2.0
  %v596 = vsub.f32 %v595, 1.0
  %v597 = vsel %vm363, %v596, %v594
  %v598 = vmul.f32 %v597, %v472
  %600 = vrot.lane.b32.xlu0 %v597, 64
  %v601 = vpop.permute.xlu0 %600
  %v603 = vmul.f32 %v597, %v601
  %605 = vrot.lane.b32.xlu0 %v603, 32
  %v606 = vpop.permute.xlu0 %605
  %v608 = vadd.f32 %v598, %v606
  %v609 = vtanh.pop %v608
  %611 = vrot.lane.b32.xlu0 %v609, 64
  %v612 = vpop.permute.xlu0 %611
  %v614 = vmul.f32 %v597, %v612
  %vm615 = vcmp.gt.s32.totalorder %v47, 1
  %v616 = vsel %vm615, 1, 0
  %617 = vset.pattern.permute.xlu0 0
  %618 = vperm.xlu0 %617, %v616
  %v619 = vpop.permute.xlu0 %618
  %vm620 = vcmp.eq.s32.totalorder %v619, 1
  %v621 = vsel %vm620, %v614, %v471
  %v622 = vsel %vm620, %v608, %v472
  %v623 = vsel %vm620, %v614, 0.0
  %v624 = vmul.f32 %v623, %v479
  %626 = vrot.lane.b32.xlu0 %v624, 32
  %v627 = vpop.permute.xlu0 %626
  %v629 = vsel %vm364, %v627, 0.0
  %630 = vadd.xlane.f32.xlu0 %v629
  %v631 = vpop.xlane.xlu0 %630
  %v632 = vadd.f32 %v631, %v493
  %v633 = vxor.u32 %v632, 2147483648
  %v634 = vmul.f32 %v633, 1.442695
  %v635 = vpow.pop %v634
  %v636 = vadd.f32 %v635, 1.0
  %v637 = vrcp.pop %v636
  %v638 = vmul.f32 1.0, %v637
  %640 = vset.pattern.permute.xlu0 0
  %641 = vperm.xlu0 %640, %v638
  %v642 = vpop.permute.xlu0 %641
  %v644 = vmul.f32 %v623, %v642
  %646 = vrot.lane.b32.xlu0 %v644, 64
  %v647 = vpop.permute.xlu0 %646
  %vm649 = vcmask 523520
  %650 = vst.msk [vmem:[%s7] sm:$0xff] %vm649, %v647
  %652 = vrot.lane.b32.xlu0 %v621, 32
  %v653 = vpop.permute.xlu0 %652
  %v654 = vsel %vm364, %v653, 0
  %656 = vmatprep.subr.mxu0 0.0
  %657 = vmatpush1.msra.mxu0 %v355
  %658 = vmatprep.subr.mxu0 0.0
  %659 = vmatpush1.msra.mxu0 %v356
  %660 = vmatprep.subr.mxu0 0.0
  %661 = vmatpush1.msra.mxu0 %v357
  %662 = vmatprep.subr.mxu0 0.0
  %663 = vmatpush1.msra.mxu0 %v358
  %664 = vmatprep.subr.mxu0 0.0
  %665 = vmatpush1.msra.mxu0 0.0
  %666 = vmatprep.subr.mxu0 0.0
  %667 = vmatpush1.msra.mxu0 0.0
  %668 = vmatprep.subr.mxu0 0.0
  %669 = vmatpush1.msra.mxu0 0.0
  %670 = vmatprep.subr.mxu0 0.0
  %671 = vmatpush1.msra.mxu0 0.0
  %672 = vmatprep.subr.mxu0 0.0
  %673 = vmatpush1.msra.mxu0 0.0
  %674 = vmatprep.subr.mxu0 0.0
  %675 = vmatpush1.msra.mxu0 0.0
  %676 = vmatprep.subr.mxu0 0.0
  %677 = vmatpush1.msra.mxu0 0.0
  %678 = vmatprep.subr.mxu0 0.0
  %679 = vmatpush1.msra.mxu0 0.0
  %680 = vmatprep.subr.mxu0 0.0
  %681 = vmatpush1.msra.mxu0 0.0
  %682 = vmatprep.subr.mxu0 0.0
  %683 = vmatpush1.msra.mxu0 0.0
  %684 = vmatprep.subr.mxu0 0.0
  %685 = vmatpush1.msra.mxu0 0.0
  %686 = vmatprep.subr.mxu0 0.0
  %687 = vmatpush1.msra.mxu0 0.0
  %688 = vmatprep.subr.mxu0 0.0
  %689 = vmatpush1.msra.mxu0 0.0
  %690 = vmatprep.subr.mxu0 0.0
  %691 = vmatpush1.msra.mxu0 0.0
  %692 = vmatprep.subr.mxu0 0.0
  %693 = vmatpush1.msra.mxu0 0.0
  %694 = vmatprep.subr.mxu0 0.0
  %695 = vmatpush1.msra.mxu0 0.0
  %696 = vmatprep.subr.mxu0 0.0
  %697 = vmatpush1.msra.mxu0 0.0
  %698 = vmatprep.subr.mxu0 0.0
  %699 = vmatpush1.msra.mxu0 0.0
  %700 = vmatprep.subr.mxu0 0.0
  %701 = vmatpush1.msra.mxu0 0.0
  %702 = vmatprep.subr.mxu0 0.0
  %703 = vmatpush1.msra.mxu0 0.0
  %704 = vmatprep.subr.mxu0 0.0
  %705 = vmatpush1.msra.mxu0 0.0
  %706 = vmatprep.subr.mxu0 0.0
  %707 = vmatpush1.msra.mxu0 0.0
  %708 = vmatprep.subr.mxu0 0.0
  %709 = vmatpush1.msra.mxu0 0.0
  %710 = vmatprep.subr.mxu0 0.0
  %711 = vmatpush1.msra.mxu0 0.0
  %712 = vmatprep.subr.mxu0 0.0
  %713 = vmatpush1.msra.mxu0 0.0
  %714 = vmatprep.subr.mxu0 0.0
  %715 = vmatpush1.msra.mxu0 0.0
  %716 = vmatprep.subr.mxu0 0.0
  %717 = vmatpush1.msra.mxu0 0.0
  %718 = vmatprep.subr.mxu0 0.0
  %719 = vmatpush1.msra.mxu0 0.0
  %720 = vmatprep.mubr.f32.mxu0 0.0
  %721 = vmatmul.mubr.f32.gmra.mrb[0].mxu0 %v654
  %v722 = vpop.f32.mrb[0].mxu0
  %v723 = vadd.f32 0.0, %v722
  %v724 = vpop.f32.mrb[0].mxu0
  %725 = vdwg.mxu0
  %v726 = vadd.f32 %v287, %v723
  %v727 = vxor.u32 %v726, 2147483648
  %v728 = vmul.f32 %v727, 1.442695
  %v729 = vpow.pop %v728
  %v730 = vadd.f32 %v729, 1.0
  %v731 = vrcp.pop %v730
  %v732 = vmul.f32 1.0, %v731
  %v733 = vmul.f32 %v732, 2.0
  %v734 = vsub.f32 %v733, 1.0
  %v735 = vsel %vm363, %v734, %v732
  %v736 = vmul.f32 %v735, %v622
  %738 = vrot.lane.b32.xlu0 %v735, 64
  %v739 = vpop.permute.xlu0 %738
  %v741 = vmul.f32 %v735, %v739
  %743 = vrot.lane.b32.xlu0 %v741, 32
  %v744 = vpop.permute.xlu0 %743
  %v746 = vadd.f32 %v736, %v744
  %v747 = vtanh.pop %v746
  %749 = vrot.lane.b32.xlu0 %v747, 64
  %v750 = vpop.permute.xlu0 %749
  %v752 = vmul.f32 %v735, %v750
  %vm753 = vcmp.gt.s32.totalorder %v47, 2
  %v754 = vsel %vm753, 1, 0
  %755 = vset.pattern.permute.xlu0 0
  %756 = vperm.xlu0 %755, %v754
  %v757 = vpop.permute.xlu0 %756
  %vm758 = vcmp.eq.s32.totalorder %v757, 1
  %v759 = vsel %vm758, %v752, %v621
  %v760 = vsel %vm758, %v746, %v622
  %v761 = vsel %vm758, %v752, 0.0
  %v762 = vmul.f32 %v761, %v479
  %764 = vrot.lane.b32.xlu0 %v762, 32
  %v765 = vpop.permute.xlu0 %764
  %v767 = vsel %vm364, %v765, 0.0
  %768 = vadd.xlane.f32.xlu0 %v767
  %v769 = vpop.xlane.xlu0 %768
  %v770 = vadd.f32 %v769, %v493
  %v771 = vxor.u32 %v770, 2147483648
  %v772 = vmul.f32 %v771, 1.442695
  %v773 = vpow.pop %v772
  %v774 = vadd.f32 %v773, 1.0
  %v775 = vrcp.pop %v774
  %v776 = vmul.f32 1.0, %v775
  %778 = vset.pattern.permute.xlu0 0
  %779 = vperm.xlu0 %778, %v776
  %v780 = vpop.permute.xlu0 %779
  %v782 = vmul.f32 %v761, %v780
  %784 = vrot.lane.b32.xlu0 %v782, 96
  %v785 = vpop.permute.xlu0 %784
  %vm787 = vcmask 785920
  %788 = vst.msk [vmem:[%s7] sm:$0xff] %vm787, %v785
  %790 = vrot.lane.b32.xlu0 %v759, 32
  %v791 = vpop.permute.xlu0 %790
  %v792 = vsel %vm364, %v791, 0
  %794 = vmatprep.subr.mxu0 0.0
  %795 = vmatpush1.msra.mxu0 %v355
  %796 = vmatprep.subr.mxu0 0.0
  %797 = vmatpush1.msra.mxu0 %v356
  %798 = vmatprep.subr.mxu0 0.0
  %799 = vmatpush1.msra.mxu0 %v357
  %800 = vmatprep.subr.mxu0 0.0
  %801 = vmatpush1.msra.mxu0 %v358
  %802 = vmatprep.subr.mxu0 0.0
  %803 = vmatpush1.msra.mxu0 0.0
  %804 = vmatprep.subr.mxu0 0.0
  %805 = vmatpush1.msra.mxu0 0.0
  %806 = vmatprep.subr.mxu0 0.0
  %807 = vmatpush1.msra.mxu0 0.0
  %808 = vmatprep.subr.mxu0 0.0
  %809 = vmatpush1.msra.mxu0 0.0
  %810 = vmatprep.subr.mxu0 0.0
  %811 = vmatpush1.msra.mxu0 0.0
  %812 = vmatprep.subr.mxu0 0.0
  %813 = vmatpush1.msra.mxu0 0.0
  %814 = vmatprep.subr.mxu0 0.0
  %815 = vmatpush1.msra.mxu0 0.0
  %816 = vmatprep.subr.mxu0 0.0
  %817 = vmatpush1.msra.mxu0 0.0
  %818 = vmatprep.subr.mxu0 0.0
  %819 = vmatpush1.msra.mxu0 0.0
  %820 = vmatprep.subr.mxu0 0.0
  %821 = vmatpush1.msra.mxu0 0.0
  %822 = vmatprep.subr.mxu0 0.0
  %823 = vmatpush1.msra.mxu0 0.0
  %824 = vmatprep.subr.mxu0 0.0
  %825 = vmatpush1.msra.mxu0 0.0
  %826 = vmatprep.subr.mxu0 0.0
  %827 = vmatpush1.msra.mxu0 0.0
  %828 = vmatprep.subr.mxu0 0.0
  %829 = vmatpush1.msra.mxu0 0.0
  %830 = vmatprep.subr.mxu0 0.0
  %831 = vmatpush1.msra.mxu0 0.0
  %832 = vmatprep.subr.mxu0 0.0
  %833 = vmatpush1.msra.mxu0 0.0
  %834 = vmatprep.subr.mxu0 0.0
  %835 = vmatpush1.msra.mxu0 0.0
  %836 = vmatprep.subr.mxu0 0.0
  %837 = vmatpush1.msra.mxu0 0.0
  %838 = vmatprep.subr.mxu0 0.0
  %839 = vmatpush1.msra.mxu0 0.0
  %840 = vmatprep.subr.mxu0 0.0
  %841 = vmatpush1.msra.mxu0 0.0
  %842 = vmatprep.subr.mxu0 0.0
  %843 = vmatpush1.msra.mxu0 0.0
  %844 = vmatprep.subr.mxu0 0.0
  %845 = vmatpush1.msra.mxu0 0.0
  %846 = vmatprep.subr.mxu0 0.0
  %847 = vmatpush1.msra.mxu0 0.0
  %848 = vmatprep.subr.mxu0 0.0
  %849 = vmatpush1.msra.mxu0 0.0
  %850 = vmatprep.subr.mxu0 0.0
  %851 = vmatpush1.msra.mxu0 0.0
  %852 = vmatprep.subr.mxu0 0.0
  %853 = vmatpush1.msra.mxu0 0.0
  %854 = vmatprep.subr.mxu0 0.0
  %855 = vmatpush1.msra.mxu0 0.0
  %856 = vmatprep.subr.mxu0 0.0
  %857 = vmatpush1.msra.mxu0 0.0
  %858 = vmatprep.mubr.f32.mxu0 0.0
  %859 = vmatmul.mubr.f32.gmra.mrb[0].mxu0 %v792
  %v860 = vpop.f32.mrb[0].mxu0
  %v861 = vadd.f32 0.0, %v860
  %v862 = vpop.f32.mrb[0].mxu0
  %863 = vdwg.mxu0
  %v864 = vadd.f32 %v292, %v861
  %v865 = vxor.u32 %v864, 2147483648
  %v866 = vmul.f32 %v865, 1.442695
  %v867 = vpow.pop %v866
  %v868 = vadd.f32 %v867, 1.0
  %v869 = vrcp.pop %v868
  %v870 = vmul.f32 1.0, %v869
  %v871 = vmul.f32 %v870, 2.0
  %v872 = vsub.f32 %v871, 1.0
  %v873 = vsel %vm363, %v872, %v870
  %v874 = vmul.f32 %v873, %v760
  %876 = vrot.lane.b32.xlu0 %v873, 64
  %v877 = vpop.permute.xlu0 %876
  %v879 = vmul.f32 %v873, %v877
  %881 = vrot.lane.b32.xlu0 %v879, 32
  %v882 = vpop.permute.xlu0 %881
  %v884 = vadd.f32 %v874, %v882
  %v885 = vtanh.pop %v884
  %887 = vrot.lane.b32.xlu0 %v885, 64
  %v888 = vpop.permute.xlu0 %887
  %v890 = vmul.f32 %v873, %v888
  %vm891 = vcmp.gt.s32.totalorder %v47, 3
  %v892 = vsel %vm891, 1, 0
  %893 = vset.pattern.permute.xlu0 0
  %894 = vperm.xlu0 %893, %v892
  %v895 = vpop.permute.xlu0 %894
  %vm896 = vcmp.eq.s32.totalorder %v895, 1
  %v897 = vsel %vm896, %v890, %v759
  %v898 = vsel %vm896, %v884, %v760
  %v899 = vsel %vm896, %v890, 0.0
  %v900 = vmul.f32 %v899, %v479
  %902 = vrot.lane.b32.xlu0 %v900, 32
  %v903 = vpop.permute.xlu0 %902
  %v905 = vsel %vm364, %v903, 0.0
  %906 = vadd.xlane.f32.xlu0 %v905
  %v907 = vpop.xlane.xlu0 %906
  %v908 = vadd.f32 %v907, %v493
  %v909 = vxor.u32 %v908, 2147483648
  %v910 = vmul.f32 %v909, 1.442695
  %v911 = vpow.pop %v910
  %v912 = vadd.f32 %v911, 1.0
  %v913 = vrcp.pop %v912
  %v914 = vmul.f32 1.0, %v913
  %916 = vset.pattern.permute.xlu0 0
  %917 = vperm.xlu0 %916, %v914
  %v918 = vpop.permute.xlu0 %917
  %v920 = vmul.f32 %v899, %v918
  %vm921 = vcmask 1048320
  %922 = vst.msk [vmem:[%s7] sm:$0xff] %vm921, %v920
  %924 = vrot.lane.b32.xlu0 %v897, 32
  %v925 = vpop.permute.xlu0 %924
  %v926 = vsel %vm364, %v925, 0
  %928 = vmatprep.subr.mxu0 0.0
  %929 = vmatpush1.msra.mxu0 %v355
  %930 = vmatprep.subr.mxu0 0.0
  %931 = vmatpush1.msra.mxu0 %v356
  %932 = vmatprep.subr.mxu0 0.0
  %933 = vmatpush1.msra.mxu0 %v357
  %934 = vmatprep.subr.mxu0 0.0
  %935 = vmatpush1.msra.mxu0 %v358
  %936 = vmatprep.subr.mxu0 0.0
  %937 = vmatpush1.msra.mxu0 0.0
  %938 = vmatprep.subr.mxu0 0.0
  %939 = vmatpush1.msra.mxu0 0.0
  %940 = vmatprep.subr.mxu0 0.0
  %941 = vmatpush1.msra.mxu0 0.0
  %942 = vmatprep.subr.mxu0 0.0
  %943 = vmatpush1.msra.mxu0 0.0
  %944 = vmatprep.subr.mxu0 0.0
  %945 = vmatpush1.msra.mxu0 0.0
  %946 = vmatprep.subr.mxu0 0.0
  %947 = vmatpush1.msra.mxu0 0.0
  %948 = vmatprep.subr.mxu0 0.0
  %949 = vmatpush1.msra.mxu0 0.0
  %950 = vmatprep.subr.mxu0 0.0
  %951 = vmatpush1.msra.mxu0 0.0
  %952 = vmatprep.subr.mxu0 0.0
  %953 = vmatpush1.msra.mxu0 0.0
  %954 = vmatprep.subr.mxu0 0.0
  %955 = vmatpush1.msra.mxu0 0.0
  %956 = vmatprep.subr.mxu0 0.0
  %957 = vmatpush1.msra.mxu0 0.0
  %958 = vmatprep.subr.mxu0 0.0
  %959 = vmatpush1.msra.mxu0 0.0
  %960 = vmatprep.subr.mxu0 0.0
  %961 = vmatpush1.msra.mxu0 0.0
  %962 = vmatprep.subr.mxu0 0.0
  %963 = vmatpush1.msra.mxu0 0.0
  %964 = vmatprep.subr.mxu0 0.0
  %965 = vmatpush1.msra.mxu0 0.0
  %966 = vmatprep.subr.mxu0 0.0
  %967 = vmatpush1.msra.mxu0 0.0
  %968 = vmatprep.subr.mxu0 0.0
  %969 = vmatpush1.msra.mxu0 0.0
  %970 = vmatprep.subr.mxu0 0.0
  %971 = vmatpush1.msra.mxu0 0.0
  %972 = vmatprep.subr.mxu0 0.0
  %973 = vmatpush1.msra.mxu0 0.0
  %974 = vmatprep.subr.mxu0 0.0
  %975 = vmatpush1.msra.mxu0 0.0
  %976 = vmatprep.subr.mxu0 0.0
  %977 = vmatpush1.msra.mxu0 0.0
  %978 = vmatprep.subr.mxu0 0.0
  %979 = vmatpush1.msra.mxu0 0.0
  %980 = vmatprep.subr.mxu0 0.0
  %981 = vmatpush1.msra.mxu0 0.0
  %982 = vmatprep.subr.mxu0 0.0
  %983 = vmatpush1.msra.mxu0 0.0
  %984 = vmatprep.subr.mxu0 0.0
  %985 = vmatpush1.msra.mxu0 0.0
  %986 = vmatprep.subr.mxu0 0.0
  %987 = vmatpush1.msra.mxu0 0.0
  %988 = vmatprep.subr.mxu0 0.0
  %989 = vmatpush1.msra.mxu0 0.0
  %990 = vmatprep.subr.mxu0 0.0
  %991 = vmatpush1.msra.mxu0 0.0
  %992 = vmatprep.mubr.f32.mxu0 0.0
  %993 = vmatmul.mubr.f32.gmra.mrb[0].mxu0 %v926
  %v994 = vpop.f32.mrb[0].mxu0
  %v995 = vadd.f32 0.0, %v994
  %v996 = vpop.f32.mrb[0].mxu0
  %997 = vdwg.mxu0
  %v998 = vadd.f32 %v297, %v995
  %v999 = vxor.u32 %v998, 2147483648
  %v1000 = vmul.f32 %v999, 1.442695
  %v1001 = vpow.pop %v1000
  %v1002 = vadd.f32 %v1001, 1.0
  %v1003 = vrcp.pop %v1002
  %v1004 = vmul.f32 1.0, %v1003
  %v1005 = vmul.f32 %v1004, 2.0
  %v1006 = vsub.f32 %v1005, 1.0
  %v1007 = vsel %vm363, %v1006, %v1004
  %v1008 = vmul.f32 %v1007, %v898
  %1010 = vrot.lane.b32.xlu0 %v1007, 64
  %v1011 = vpop.permute.xlu0 %1010
  %v1013 = vmul.f32 %v1007, %v1011
  %1015 = vrot.lane.b32.xlu0 %v1013, 32
  %v1016 = vpop.permute.xlu0 %1015
  %v1018 = vadd.f32 %v1008, %v1016
  %v1019 = vtanh.pop %v1018
  %1021 = vrot.lane.b32.xlu0 %v1019, 64
  %v1022 = vpop.permute.xlu0 %1021
  %v1024 = vmul.f32 %v1007, %v1022
  %vm1025 = vcmp.gt.s32.totalorder %v47, 4
  %v1026 = vsel %vm1025, 1, 0
  %1027 = vset.pattern.permute.xlu0 0
  %1028 = vperm.xlu0 %1027, %v1026
  %v1029 = vpop.permute.xlu0 %1028
  %vm1030 = vcmp.eq.s32.totalorder %v1029, 1
  %v1031 = vsel %vm1030, %v1024, %v897
  %v1032 = vsel %vm1030, %v1018, %v898
  %v1033 = vsel %vm1030, %v1024, 0.0
  %v1034 = vmul.f32 %v1033, %v479
  %1036 = vrot.lane.b32.xlu0 %v1034, 32
  %v1037 = vpop.permute.xlu0 %1036
  %v1039 = vsel %vm364, %v1037, 0.0
  %1040 = vadd.xlane.f32.xlu0 %v1039
  %v1041 = vpop.xlane.xlu0 %1040
  %v1042 = vadd.f32 %v1041, %v493
  %v1043 = vxor.u32 %v1042, 2147483648
  %v1044 = vmul.f32 %v1043, 1.442695
  %v1045 = vpow.pop %v1044
  %v1046 = vadd.f32 %v1045, 1.0
  %v1047 = vrcp.pop %v1046
  %v1048 = vmul.f32 1.0, %v1047
  %1050 = vset.pattern.permute.xlu0 0
  %1051 = vperm.xlu0 %1050, %v1048
  %v1052 = vpop.permute.xlu0 %1051
  %v1054 = vmul.f32 %v1033, %v1052
  %1056 = vrot.lane.b32.xlu0 %v1054, 32
  %v1057 = vpop.permute.xlu0 %1056
  %1059 = vst.msk [vmem:[%s7 + $0x8] sm:$0xff] %vm364, %v1057
  %1061 = vrot.lane.b32.xlu0 %v1031, 32
  %v1062 = vpop.permute.xlu0 %1061
  %v1063 = vsel %vm364, %v1062, 0
  %1065 = vmatprep.subr.mxu0 0.0
  %1066 = vmatpush1.msra.mxu0 %v355
  %1067 = vmatprep.subr.mxu0 0.0
  %1068 = vmatpush1.msra.mxu0 %v356
  %1069 = vmatprep.subr.mxu0 0.0
  %1070 = vmatpush1.msra.mxu0 %v357
  %1071 = vmatprep.subr.mxu0 0.0
  %1072 = vmatpush1.msra.mxu0 %v358
  %1073 = vmatprep.subr.mxu0 0.0
  %1074 = vmatpush1.msra.mxu0 0.0
  %1075 = vmatprep.subr.mxu0 0.0
  %1076 = vmatpush1.msra.mxu0 0.0
  %1077 = vmatprep.subr.mxu0 0.0
  %1078 = vmatpush1.msra.mxu0 0.0
  %1079 = vmatprep.subr.mxu0 0.0
  %1080 = vmatpush1.msra.mxu0 0.0
  %1081 = vmatprep.subr.mxu0 0.0
  %1082 = vmatpush1.msra.mxu0 0.0
  %1083 = vmatprep.subr.mxu0 0.0
  %1084 = vmatpush1.msra.mxu0 0.0
  %1085 = vmatprep.subr.mxu0 0.0
  %1086 = vmatpush1.msra.mxu0 0.0
  %1087 = vmatprep.subr.mxu0 0.0
  %1088 = vmatpush1.msra.mxu0 0.0
  %1089 = vmatprep.subr.mxu0 0.0
  %1090 = vmatpush1.msra.mxu0 0.0
  %1091 = vmatprep.subr.mxu0 0.0
  %1092 = vmatpush1.msra.mxu0 0.0
  %1093 = vmatprep.subr.mxu0 0.0
  %1094 = vmatpush1.msra.mxu0 0.0
  %1095 = vmatprep.subr.mxu0 0.0
  %1096 = vmatpush1.msra.mxu0 0.0
  %1097 = vmatprep.subr.mxu0 0.0
  %1098 = vmatpush1.msra.mxu0 0.0
  %1099 = vmatprep.subr.mxu0 0.0
  %1100 = vmatpush1.msra.mxu0 0.0
  %1101 = vmatprep.subr.mxu0 0.0
  %1102 = vmatpush1.msra.mxu0 0.0
  %1103 = vmatprep.subr.mxu0 0.0
  %1104 = vmatpush1.msra.mxu0 0.0
  %1105 = vmatprep.subr.mxu0 0.0
  %1106 = vmatpush1.msra.mxu0 0.0
  %1107 = vmatprep.subr.mxu0 0.0
  %1108 = vmatpush1.msra.mxu0 0.0
  %1109 = vmatprep.subr.mxu0 0.0
  %1110 = vmatpush1.msra.mxu0 0.0
  %1111 = vmatprep.subr.mxu0 0.0
  %1112 = vmatpush1.msra.mxu0 0.0
  %1113 = vmatprep.subr.mxu0 0.0
  %1114 = vmatpush1.msra.mxu0 0.0
  %1115 = vmatprep.subr.mxu0 0.0
  %1116 = vmatpush1.msra.mxu0 0.0
  %1117 = vmatprep.subr.mxu0 0.0
  %1118 = vmatpush1.msra.mxu0 0.0
  %1119 = vmatprep.subr.mxu0 0.0
  %1120 = vmatpush1.msra.mxu0 0.0
  %1121 = vmatprep.subr.mxu0 0.0
  %1122 = vmatpush1.msra.mxu0 0.0
  %1123 = vmatprep.subr.mxu0 0.0
  %1124 = vmatpush1.msra.mxu0 0.0
  %1125 = vmatprep.subr.mxu0 0.0
  %1126 = vmatpush1.msra.mxu0 0.0
  %1127 = vmatprep.subr.mxu0 0.0
  %1128 = vmatpush1.msra.mxu0 0.0
  %1129 = vmatprep.mubr.f32.mxu0 0.0
  %1130 = vmatmul.mubr.f32.gmra.mrb[0].mxu0 %v1063
  %v1131 = vpop.f32.mrb[0].mxu0
  %v1132 = vadd.f32 0.0, %v1131
  %v1133 = vpop.f32.mrb[0].mxu0
  %1134 = vdwg.mxu0
  %v1135 = vadd.f32 %v302, %v1132
  %v1136 = vxor.u32 %v1135, 2147483648
  %v1137 = vmul.f32 %v1136, 1.442695
  %v1138 = vpow.pop %v1137
  %v1139 = vadd.f32 %v1138, 1.0
  %v1140 = vrcp.pop %v1139
  %v1141 = vmul.f32 1.0, %v1140
  %v1142 = vmul.f32 %v1141, 2.0
  %v1143 = vsub.f32 %v1142, 1.0
  %v1144 = vsel %vm363, %v1143, %v1141
  %v1145 = vmul.f32 %v1144, %v1032
  %1147 = vrot.lane.b32.xlu0 %v1144, 64
  %v1148 = vpop.permute.xlu0 %1147
  %v1150 = vmul.f32 %v1144, %v1148
  %1152 = vrot.lane.b32.xlu0 %v1150, 32
  %v1153 = vpop.permute.xlu0 %1152
  %v1155 = vadd.f32 %v1145, %v1153
  %v1156 = vtanh.pop %v1155
  %1158 = vrot.lane.b32.xlu0 %v1156, 64
  %v1159 = vpop.permute.xlu0 %1158
  %v1161 = vmul.f32 %v1144, %v1159
  %vm1162 = vcmp.gt.s32.totalorder %v47, 5
  %v1163 = vsel %vm1162, 1, 0
  %1164 = vset.pattern.permute.xlu0 0
  %1165 = vperm.xlu0 %1164, %v1163
  %v1166 = vpop.permute.xlu0 %1165
  %vm1167 = vcmp.eq.s32.totalorder %v1166, 1
  %v1168 = vsel %vm1167, %v1161, %v1031
  %v1169 = vsel %vm1167, %v1155, %v1032
  %v1170 = vsel %vm1167, %v1161, 0.0
  %v1171 = vmul.f32 %v1170, %v479
  %1173 = vrot.lane.b32.xlu0 %v1171, 32
  %v1174 = vpop.permute.xlu0 %1173
  %v1176 = vsel %vm364, %v1174, 0.0
  %1177 = vadd.xlane.f32.xlu0 %v1176
  %v1178 = vpop.xlane.xlu0 %1177
  %v1179 = vadd.f32 %v1178, %v493
  %v1180 = vxor.u32 %v1179, 2147483648
  %v1181 = vmul.f32 %v1180, 1.442695
  %v1182 = vpow.pop %v1181
  %v1183 = vadd.f32 %v1182, 1.0
  %v1184 = vrcp.pop %v1183
  %v1185 = vmul.f32 1.0, %v1184
  %1187 = vset.pattern.permute.xlu0 0
  %1188 = vperm.xlu0 %1187, %v1185
  %v1189 = vpop.permute.xlu0 %1188
  %v1191 = vmul.f32 %v1170, %v1189
  %1193 = vrot.lane.b32.xlu0 %v1191, 64
  %v1194 = vpop.permute.xlu0 %1193
  %1196 = vst.msk [vmem:[%s7 + $0x8] sm:$0xff] %vm649, %v1194
  %1198 = vrot.lane.b32.xlu0 %v1168, 32
  %v1199 = vpop.permute.xlu0 %1198
  %v1200 = vsel %vm364, %v1199, 0
  %1202 = vmatprep.subr.mxu0 0.0
  %1203 = vmatpush1.msra.mxu0 %v355
  %1204 = vmatprep.subr.mxu0 0.0
  %1205 = vmatpush1.msra.mxu0 %v356
  %1206 = vmatprep.subr.mxu0 0.0
  %1207 = vmatpush1.msra.mxu0 %v357
  %1208 = vmatprep.subr.mxu0 0.0
  %1209 = vmatpush1.msra.mxu0 %v358
  %1210 = vmatprep.subr.mxu0 0.0
  %1211 = vmatpush1.msra.mxu0 0.0
  %1212 = vmatprep.subr.mxu0 0.0
  %1213 = vmatpush1.msra.mxu0 0.0
  %1214 = vmatprep.subr.mxu0 0.0
  %1215 = vmatpush1.msra.mxu0 0.0
  %1216 = vmatprep.subr.mxu0 0.0
  %1217 = vmatpush1.msra.mxu0 0.0
  %1218 = vmatprep.subr.mxu0 0.0
  %1219 = vmatpush1.msra.mxu0 0.0
  %1220 = vmatprep.subr.mxu0 0.0
  %1221 = vmatpush1.msra.mxu0 0.0
  %1222 = vmatprep.subr.mxu0 0.0
  %1223 = vmatpush1.msra.mxu0 0.0
  %1224 = vmatprep.subr.mxu0 0.0
  %1225 = vmatpush1.msra.mxu0 0.0
  %1226 = vmatprep.subr.mxu0 0.0
  %1227 = vmatpush1.msra.mxu0 0.0
  %1228 = vmatprep.subr.mxu0 0.0
  %1229 = vmatpush1.msra.mxu0 0.0
  %1230 = vmatprep.subr.mxu0 0.0
  %1231 = vmatpush1.msra.mxu0 0.0
  %1232 = vmatprep.subr.mxu0 0.0
  %1233 = vmatpush1.msra.mxu0 0.0
  %1234 = vmatprep.subr.mxu0 0.0
  %1235 = vmatpush1.msra.mxu0 0.0
  %1236 = vmatprep.subr.mxu0 0.0
  %1237 = vmatpush1.msra.mxu0 0.0
  %1238 = vmatprep.subr.mxu0 0.0
  %1239 = vmatpush1.msra.mxu0 0.0
  %1240 = vmatprep.subr.mxu0 0.0
  %1241 = vmatpush1.msra.mxu0 0.0
  %1242 = vmatprep.subr.mxu0 0.0
  %1243 = vmatpush1.msra.mxu0 0.0
  %1244 = vmatprep.subr.mxu0 0.0
  %1245 = vmatpush1.msra.mxu0 0.0
  %1246 = vmatprep.subr.mxu0 0.0
  %1247 = vmatpush1.msra.mxu0 0.0
  %1248 = vmatprep.subr.mxu0 0.0
  %1249 = vmatpush1.msra.mxu0 0.0
  %1250 = vmatprep.subr.mxu0 0.0
  %1251 = vmatpush1.msra.mxu0 0.0
  %1252 = vmatprep.subr.mxu0 0.0
  %1253 = vmatpush1.msra.mxu0 0.0
  %1254 = vmatprep.subr.mxu0 0.0
  %1255 = vmatpush1.msra.mxu0 0.0
  %1256 = vmatprep.subr.mxu0 0.0
  %1257 = vmatpush1.msra.mxu0 0.0
  %1258 = vmatprep.subr.mxu0 0.0
  %1259 = vmatpush1.msra.mxu0 0.0
  %1260 = vmatprep.subr.mxu0 0.0
  %1261 = vmatpush1.msra.mxu0 0.0
  %1262 = vmatprep.subr.mxu0 0.0
  %1263 = vmatpush1.msra.mxu0 0.0
  %1264 = vmatprep.subr.mxu0 0.0
  %1265 = vmatpush1.msra.mxu0 0.0
  %1266 = vmatprep.mubr.f32.mxu0 0.0
  %1267 = vmatmul.mubr.f32.gmra.mrb[0].mxu0 %v1200
  %v1268 = vpop.f32.mrb[0].mxu0
  %v1269 = vadd.f32 0.0, %v1268
  %v1270 = vpop.f32.mrb[0].mxu0
  %1271 = vdwg.mxu0
  %v1272 = vadd.f32 %v307, %v1269
  %v1273 = vxor.u32 %v1272, 2147483648
  %v1274 = vmul.f32 %v1273, 1.442695
  %v1275 = vpow.pop %v1274
  %v1276 = vadd.f32 %v1275, 1.0
  %v1277 = vrcp.pop %v1276
  %v1278 = vmul.f32 1.0, %v1277
  %v1279 = vmul.f32 %v1278, 2.0
  %v1280 = vsub.f32 %v1279, 1.0
  %v1281 = vsel %vm363, %v1280, %v1278
  %v1282 = vmul.f32 %v1281, %v1169
  %1284 = vrot.lane.b32.xlu0 %v1281, 64
  %v1285 = vpop.permute.xlu0 %1284
  %v1287 = vmul.f32 %v1281, %v1285
  %1289 = vrot.lane.b32.xlu0 %v1287, 32
  %v1290 = vpop.permute.xlu0 %1289
  %v1292 = vadd.f32 %v1282, %v1290
  %v1293 = vtanh.pop %v1292
  %1295 = vrot.lane.b32.xlu0 %v1293, 64
  %v1296 = vpop.permute.xlu0 %1295
  %v1298 = vmul.f32 %v1281, %v1296
  %vm1299 = vcmp.gt.s32.totalorder %v47, 6
  %v1300 = vsel %vm1299, 1, 0
  %1301 = vset.pattern.permute.xlu0 0
  %1302 = vperm.xlu0 %1301, %v1300
  %v1303 = vpop.permute.xlu0 %1302
  %vm1304 = vcmp.eq.s32.totalorder %v1303, 1
  %v1305 = vsel %vm1304, %v1298, %v1168
  %v1306 = vsel %vm1304, %v1292, %v1169
  %v1307 = vsel %vm1304, %v1298, 0.0
  %v1308 = vmul.f32 %v1307, %v479
  %1310 = vrot.lane.b32.xlu0 %v1308, 32
  %v1311 = vpop.permute.xlu0 %1310
  %v1313 = vsel %vm364, %v1311, 0.0
  %1314 = vadd.xlane.f32.xlu0 %v1313
  %v1315 = vpop.xlane.xlu0 %1314
  %v1316 = vadd.f32 %v1315, %v493
  %v1317 = vxor.u32 %v1316, 2147483648
  %v1318 = vmul.f32 %v1317, 1.442695
  %v1319 = vpow.pop %v1318
  %v1320 = vadd.f32 %v1319, 1.0
  %v1321 = vrcp.pop %v1320
  %v1322 = vmul.f32 1.0, %v1321
  %1324 = vset.pattern.permute.xlu0 0
  %1325 = vperm.xlu0 %1324, %v1322
  %v1326 = vpop.permute.xlu0 %1325
  %v1328 = vmul.f32 %v1307, %v1326
  %1330 = vrot.lane.b32.xlu0 %v1328, 96
  %v1331 = vpop.permute.xlu0 %1330
  %1333 = vst.msk [vmem:[%s7 + $0x8] sm:$0xff] %vm787, %v1331
  %1335 = vrot.lane.b32.xlu0 %v1305, 32
  %v1336 = vpop.permute.xlu0 %1335
  %v1337 = vsel %vm364, %v1336, 0
  %1339 = vmatprep.subr.mxu0 0.0
  %1340 = vmatpush1.msra.mxu0 %v355
  %1341 = vmatprep.subr.mxu0 0.0
  %1342 = vmatpush1.msra.mxu0 %v356
  %1343 = vmatprep.subr.mxu0 0.0
  %1344 = vmatpush1.msra.mxu0 %v357
  %1345 = vmatprep.subr.mxu0 0.0
  %1346 = vmatpush1.msra.mxu0 %v358
  %1347 = vmatprep.subr.mxu0 0.0
  %1348 = vmatpush1.msra.mxu0 0.0
  %1349 = vmatprep.subr.mxu0 0.0
  %1350 = vmatpush1.msra.mxu0 0.0
  %1351 = vmatprep.subr.mxu0 0.0
  %1352 = vmatpush1.msra.mxu0 0.0
  %1353 = vmatprep.subr.mxu0 0.0
  %1354 = vmatpush1.msra.mxu0 0.0
  %1355 = vmatprep.subr.mxu0 0.0
  %1356 = vmatpush1.msra.mxu0 0.0
  %1357 = vmatprep.subr.mxu0 0.0
  %1358 = vmatpush1.msra.mxu0 0.0
  %1359 = vmatprep.subr.mxu0 0.0
  %1360 = vmatpush1.msra.mxu0 0.0
  %1361 = vmatprep.subr.mxu0 0.0
  %1362 = vmatpush1.msra.mxu0 0.0
  %1363 = vmatprep.subr.mxu0 0.0
  %1364 = vmatpush1.msra.mxu0 0.0
  %1365 = vmatprep.subr.mxu0 0.0
  %1366 = vmatpush1.msra.mxu0 0.0
  %1367 = vmatprep.subr.mxu0 0.0
  %1368 = vmatpush1.msra.mxu0 0.0
  %1369 = vmatprep.subr.mxu0 0.0
  %1370 = vmatpush1.msra.mxu0 0.0
  %1371 = vmatprep.subr.mxu0 0.0
  %1372 = vmatpush1.msra.mxu0 0.0
  %1373 = vmatprep.subr.mxu0 0.0
  %1374 = vmatpush1.msra.mxu0 0.0
  %1375 = vmatprep.subr.mxu0 0.0
  %1376 = vmatpush1.msra.mxu0 0.0
  %1377 = vmatprep.subr.mxu0 0.0
  %1378 = vmatpush1.msra.mxu0 0.0
  %1379 = vmatprep.subr.mxu0 0.0
  %1380 = vmatpush1.msra.mxu0 0.0
  %1381 = vmatprep.subr.mxu0 0.0
  %1382 = vmatpush1.msra.mxu0 0.0
  %1383 = vmatprep.subr.mxu0 0.0
  %1384 = vmatpush1.msra.mxu0 0.0
  %1385 = vmatprep.subr.mxu0 0.0
  %1386 = vmatpush1.msra.mxu0 0.0
  %1387 = vmatprep.subr.mxu0 0.0
  %1388 = vmatpush1.msra.mxu0 0.0
  %1389 = vmatprep.subr.mxu0 0.0
  %1390 = vmatpush1.msra.mxu0 0.0
  %1391 = vmatprep.subr.mxu0 0.0
  %1392 = vmatpush1.msra.mxu0 0.0
  %1393 = vmatprep.subr.mxu0 0.0
  %1394 = vmatpush1.msra.mxu0 0.0
  %1395 = vmatprep.subr.mxu0 0.0
  %1396 = vmatpush1.msra.mxu0 0.0
  %1397 = vmatprep.subr.mxu0 0.0
  %1398 = vmatpush1.msra.mxu0 0.0
  %1399 = vmatprep.subr.mxu0 0.0
  %1400 = vmatpush1.msra.mxu0 0.0
  %1401 = vmatprep.subr.mxu0 0.0
  %1402 = vmatpush1.msra.mxu0 0.0
  %1403 = vmatprep.mubr.f32.mxu0 0.0
  %1404 = vmatmul.mubr.f32.gmra.mrb[0].mxu0 %v1337
  %v1405 = vpop.f32.mrb[0].mxu0
  %v1406 = vadd.f32 0.0, %v1405
  %v1407 = vpop.f32.mrb[0].mxu0
  %1408 = vdwg.mxu0
  %v1409 = vadd.f32 %v312, %v1406
  %v1410 = vxor.u32 %v1409, 2147483648
  %v1411 = vmul.f32 %v1410, 1.442695
  %v1412 = vpow.pop %v1411
  %v1413 = vadd.f32 %v1412, 1.0
  %v1414 = vrcp.pop %v1413
  %v1415 = vmul.f32 1.0, %v1414
  %v1416 = vmul.f32 %v1415, 2.0
  %v1417 = vsub.f32 %v1416, 1.0
  %v1418 = vsel %vm363, %v1417, %v1415
  %v1419 = vmul.f32 %v1418, %v1306
  %1421 = vrot.lane.b32.xlu0 %v1418, 64
  %v1422 = vpop.permute.xlu0 %1421
  %v1424 = vmul.f32 %v1418, %v1422
  %1426 = vrot.lane.b32.xlu0 %v1424, 32
  %v1427 = vpop.permute.xlu0 %1426
  %v1429 = vadd.f32 %v1419, %v1427
  %v1430 = vtanh.pop %v1429
  %1432 = vrot.lane.b32.xlu0 %v1430, 64
  %v1433 = vpop.permute.xlu0 %1432
  %v1435 = vmul.f32 %v1418, %v1433
  %vm1436 = vcmp.gt.s32.totalorder %v47, 7
  %v1437 = vsel %vm1436, 1, 0
  %1438 = vset.pattern.permute.xlu0 0
  %1439 = vperm.xlu0 %1438, %v1437
  %v1440 = vpop.permute.xlu0 %1439
  %vm1441 = vcmp.eq.s32.totalorder %v1440, 1
  %v1442 = vsel %vm1441, %v1435, %v1305
  %v1443 = vsel %vm1441, %v1429, %v1306
  %v1444 = vsel %vm1441, %v1435, 0.0
  %v1445 = vmul.f32 %v1444, %v479
  %1447 = vrot.lane.b32.xlu0 %v1445, 32
  %v1448 = vpop.permute.xlu0 %1447
  %v1450 = vsel %vm364, %v1448, 0.0
  %1451 = vadd.xlane.f32.xlu0 %v1450
  %v1452 = vpop.xlane.xlu0 %1451
  %v1453 = vadd.f32 %v1452, %v493
  %v1454 = vxor.u32 %v1453, 2147483648
  %v1455 = vmul.f32 %v1454, 1.442695
  %v1456 = vpow.pop %v1455
  %v1457 = vadd.f32 %v1456, 1.0
  %v1458 = vrcp.pop %v1457
  %v1459 = vmul.f32 1.0, %v1458
  %1461 = vset.pattern.permute.xlu0 0
  %1462 = vperm.xlu0 %1461, %v1459
  %v1463 = vpop.permute.xlu0 %1462
  %v1465 = vmul.f32 %v1444, %v1463
  %1466 = vst.msk [vmem:[%s7 + $0x8] sm:$0xff] %vm921, %v1465
  %1468 = vrot.lane.b32.xlu0 %v1442, 32
  %v1469 = vpop.permute.xlu0 %1468
  %v1470 = vsel %vm364, %v1469, 0
  %1472 = vmatprep.subr.mxu0 0.0
  %1473 = vmatpush1.msra.mxu0 %v355
  %1474 = vmatprep.subr.mxu0 0.0
  %1475 = vmatpush1.msra.mxu0 %v356
  %1476 = vmatprep.subr.mxu0 0.0
  %1477 = vmatpush1.msra.mxu0 %v357
  %1478 = vmatprep.subr.mxu0 0.0
  %1479 = vmatpush1.msra.mxu0 %v358
  %1480 = vmatprep.subr.mxu0 0.0
  %1481 = vmatpush1.msra.mxu0 0.0
  %1482 = vmatprep.subr.mxu0 0.0
  %1483 = vmatpush1.msra.mxu0 0.0
  %1484 = vmatprep.subr.mxu0 0.0
  %1485 = vmatpush1.msra.mxu0 0.0
  %1486 = vmatprep.subr.mxu0 0.0
  %1487 = vmatpush1.msra.mxu0 0.0
  %1488 = vmatprep.subr.mxu0 0.0
  %1489 = vmatpush1.msra.mxu0 0.0
  %1490 = vmatprep.subr.mxu0 0.0
  %1491 = vmatpush1.msra.mxu0 0.0
  %1492 = vmatprep.subr.mxu0 0.0
  %1493 = vmatpush1.msra.mxu0 0.0
  %1494 = vmatprep.subr.mxu0 0.0
  %1495 = vmatpush1.msra.mxu0 0.0
  %1496 = vmatprep.subr.mxu0 0.0
  %1497 = vmatpush1.msra.mxu0 0.0
  %1498 = vmatprep.subr.mxu0 0.0
  %1499 = vmatpush1.msra.mxu0 0.0
  %1500 = vmatprep.subr.mxu0 0.0
  %1501 = vmatpush1.msra.mxu0 0.0
  %1502 = vmatprep.subr.mxu0 0.0
  %1503 = vmatpush1.msra.mxu0 0.0
  %1504 = vmatprep.subr.mxu0 0.0
  %1505 = vmatpush1.msra.mxu0 0.0
  %1506 = vmatprep.subr.mxu0 0.0
  %1507 = vmatpush1.msra.mxu0 0.0
  %1508 = vmatprep.subr.mxu0 0.0
  %1509 = vmatpush1.msra.mxu0 0.0
  %1510 = vmatprep.subr.mxu0 0.0
  %1511 = vmatpush1.msra.mxu0 0.0
  %1512 = vmatprep.subr.mxu0 0.0
  %1513 = vmatpush1.msra.mxu0 0.0
  %1514 = vmatprep.subr.mxu0 0.0
  %1515 = vmatpush1.msra.mxu0 0.0
  %1516 = vmatprep.subr.mxu0 0.0
  %1517 = vmatpush1.msra.mxu0 0.0
  %1518 = vmatprep.subr.mxu0 0.0
  %1519 = vmatpush1.msra.mxu0 0.0
  %1520 = vmatprep.subr.mxu0 0.0
  %1521 = vmatpush1.msra.mxu0 0.0
  %1522 = vmatprep.subr.mxu0 0.0
  %1523 = vmatpush1.msra.mxu0 0.0
  %1524 = vmatprep.subr.mxu0 0.0
  %1525 = vmatpush1.msra.mxu0 0.0
  %1526 = vmatprep.subr.mxu0 0.0
  %1527 = vmatpush1.msra.mxu0 0.0
  %1528 = vmatprep.subr.mxu0 0.0
  %1529 = vmatpush1.msra.mxu0 0.0
  %1530 = vmatprep.subr.mxu0 0.0
  %1531 = vmatpush1.msra.mxu0 0.0
  %1532 = vmatprep.subr.mxu0 0.0
  %1533 = vmatpush1.msra.mxu0 0.0
  %1534 = vmatprep.subr.mxu0 0.0
  %1535 = vmatpush1.msra.mxu0 0.0
  %1536 = vmatprep.mubr.f32.mxu0 0.0
  %1537 = vmatmul.mubr.f32.gmra.mrb[0].mxu0 %v1470
  %v1538 = vpop.f32.mrb[0].mxu0
  %v1539 = vadd.f32 0.0, %v1538
  %v1540 = vpop.f32.mrb[0].mxu0
  %1541 = vdwg.mxu0
  %v1542 = vadd.f32 %v317, %v1539
  %v1543 = vxor.u32 %v1542, 2147483648
  %v1544 = vmul.f32 %v1543, 1.442695
  %v1545 = vpow.pop %v1544
  %v1546 = vadd.f32 %v1545, 1.0
  %v1547 = vrcp.pop %v1546
  %v1548 = vmul.f32 1.0, %v1547
  %v1549 = vmul.f32 %v1548, 2.0
  %v1550 = vsub.f32 %v1549, 1.0
  %v1551 = vsel %vm363, %v1550, %v1548
  %v1552 = vmul.f32 %v1551, %v1443
  %1554 = vrot.lane.b32.xlu0 %v1551, 64
  %v1555 = vpop.permute.xlu0 %1554
  %v1557 = vmul.f32 %v1551, %v1555
  %1559 = vrot.lane.b32.xlu0 %v1557, 32
  %v1560 = vpop.permute.xlu0 %1559
  %v1562 = vadd.f32 %v1552, %v1560
  %v1563 = vtanh.pop %v1562
  %1565 = vrot.lane.b32.xlu0 %v1563, 64
  %v1566 = vpop.permute.xlu0 %1565
  %v1568 = vmul.f32 %v1551, %v1566
  %vm1569 = vcmp.gt.s32.totalorder %v47, 8
  %v1570 = vsel %vm1569, 1, 0
  %1571 = vset.pattern.permute.xlu0 0
  %1572 = vperm.xlu0 %1571, %v1570
  %v1573 = vpop.permute.xlu0 %1572
  %vm1574 = vcmp.eq.s32.totalorder %v1573, 1
  %v1575 = vsel %vm1574, %v1568, %v1442
  %v1576 = vsel %vm1574, %v1562, %v1443
  %v1577 = vsel %vm1574, %v1568, 0.0
  %v1578 = vmul.f32 %v1577, %v479
  %1580 = vrot.lane.b32.xlu0 %v1578, 32
  %v1581 = vpop.permute.xlu0 %1580
  %v1583 = vsel %vm364, %v1581, 0.0
  %1584 = vadd.xlane.f32.xlu0 %v1583
  %v1585 = vpop.xlane.xlu0 %1584
  %v1586 = vadd.f32 %v1585, %v493
  %v1587 = vxor.u32 %v1586, 2147483648
  %v1588 = vmul.f32 %v1587, 1.442695
  %v1589 = vpow.pop %v1588
  %v1590 = vadd.f32 %v1589, 1.0
  %v1591 = vrcp.pop %v1590
  %v1592 = vmul.f32 1.0, %v1591
  %1594 = vset.pattern.permute.xlu0 0
  %1595 = vperm.xlu0 %1594, %v1592
  %v1596 = vpop.permute.xlu0 %1595
  %v1598 = vmul.f32 %v1577, %v1596
  %1600 = vrot.lane.b32.xlu0 %v1598, 32
  %v1601 = vpop.permute.xlu0 %1600
  %1603 = vst.msk [vmem:[%s7 + $0x10] sm:$0xff] %vm364, %v1601
  %1605 = vrot.lane.b32.xlu0 %v1575, 32
  %v1606 = vpop.permute.xlu0 %1605
  %v1607 = vsel %vm364, %v1606, 0
  %1609 = vmatprep.subr.mxu0 0.0
  %1610 = vmatpush1.msra.mxu0 %v355
  %1611 = vmatprep.subr.mxu0 0.0
  %1612 = vmatpush1.msra.mxu0 %v356
  %1613 = vmatprep.subr.mxu0 0.0
  %1614 = vmatpush1.msra.mxu0 %v357
  %1615 = vmatprep.subr.mxu0 0.0
  %1616 = vmatpush1.msra.mxu0 %v358
  %1617 = vmatprep.subr.mxu0 0.0
  %1618 = vmatpush1.msra.mxu0 0.0
  %1619 = vmatprep.subr.mxu0 0.0
  %1620 = vmatpush1.msra.mxu0 0.0
  %1621 = vmatprep.subr.mxu0 0.0
  %1622 = vmatpush1.msra.mxu0 0.0
  %1623 = vmatprep.subr.mxu0 0.0
  %1624 = vmatpush1.msra.mxu0 0.0
  %1625 = vmatprep.subr.mxu0 0.0
  %1626 = vmatpush1.msra.mxu0 0.0
  %1627 = vmatprep.subr.mxu0 0.0
  %1628 = vmatpush1.msra.mxu0 0.0
  %1629 = vmatprep.subr.mxu0 0.0
  %1630 = vmatpush1.msra.mxu0 0.0
  %1631 = vmatprep.subr.mxu0 0.0
  %1632 = vmatpush1.msra.mxu0 0.0
  %1633 = vmatprep.subr.mxu0 0.0
  %1634 = vmatpush1.msra.mxu0 0.0
  %1635 = vmatprep.subr.mxu0 0.0
  %1636 = vmatpush1.msra.mxu0 0.0
  %1637 = vmatprep.subr.mxu0 0.0
  %1638 = vmatpush1.msra.mxu0 0.0
  %1639 = vmatprep.subr.mxu0 0.0
  %1640 = vmatpush1.msra.mxu0 0.0
  %1641 = vmatprep.subr.mxu0 0.0
  %1642 = vmatpush1.msra.mxu0 0.0
  %1643 = vmatprep.subr.mxu0 0.0
  %1644 = vmatpush1.msra.mxu0 0.0
  %1645 = vmatprep.subr.mxu0 0.0
  %1646 = vmatpush1.msra.mxu0 0.0
  %1647 = vmatprep.subr.mxu0 0.0
  %1648 = vmatpush1.msra.mxu0 0.0
  %1649 = vmatprep.subr.mxu0 0.0
  %1650 = vmatpush1.msra.mxu0 0.0
  %1651 = vmatprep.subr.mxu0 0.0
  %1652 = vmatpush1.msra.mxu0 0.0
  %1653 = vmatprep.subr.mxu0 0.0
  %1654 = vmatpush1.msra.mxu0 0.0
  %1655 = vmatprep.subr.mxu0 0.0
  %1656 = vmatpush1.msra.mxu0 0.0
  %1657 = vmatprep.subr.mxu0 0.0
  %1658 = vmatpush1.msra.mxu0 0.0
  %1659 = vmatprep.subr.mxu0 0.0
  %1660 = vmatpush1.msra.mxu0 0.0
  %1661 = vmatprep.subr.mxu0 0.0
  %1662 = vmatpush1.msra.mxu0 0.0
  %1663 = vmatprep.subr.mxu0 0.0
  %1664 = vmatpush1.msra.mxu0 0.0
  %1665 = vmatprep.subr.mxu0 0.0
  %1666 = vmatpush1.msra.mxu0 0.0
  %1667 = vmatprep.subr.mxu0 0.0
  %1668 = vmatpush1.msra.mxu0 0.0
  %1669 = vmatprep.subr.mxu0 0.0
  %1670 = vmatpush1.msra.mxu0 0.0
  %1671 = vmatprep.subr.mxu0 0.0
  %1672 = vmatpush1.msra.mxu0 0.0
  %1673 = vmatprep.mubr.f32.mxu0 0.0
  %1674 = vmatmul.mubr.f32.gmra.mrb[0].mxu0 %v1607
  %v1675 = vpop.f32.mrb[0].mxu0
  %v1676 = vadd.f32 0.0, %v1675
  %v1677 = vpop.f32.mrb[0].mxu0
  %1678 = vdwg.mxu0
  %v1679 = vadd.f32 %v322, %v1676
  %v1680 = vxor.u32 %v1679, 2147483648
  %v1681 = vmul.f32 %v1680, 1.442695
  %v1682 = vpow.pop %v1681
  %v1683 = vadd.f32 %v1682, 1.0
  %v1684 = vrcp.pop %v1683
  %v1685 = vmul.f32 1.0, %v1684
  %v1686 = vmul.f32 %v1685, 2.0
  %v1687 = vsub.f32 %v1686, 1.0
  %v1688 = vsel %vm363, %v1687, %v1685
  %v1689 = vmul.f32 %v1688, %v1576
  %1691 = vrot.lane.b32.xlu0 %v1688, 64
  %v1692 = vpop.permute.xlu0 %1691
  %v1694 = vmul.f32 %v1688, %v1692
  %1696 = vrot.lane.b32.xlu0 %v1694, 32
  %v1697 = vpop.permute.xlu0 %1696
  %v1699 = vadd.f32 %v1689, %v1697
  %v1700 = vtanh.pop %v1699
  %1702 = vrot.lane.b32.xlu0 %v1700, 64
  %v1703 = vpop.permute.xlu0 %1702
  %v1705 = vmul.f32 %v1688, %v1703
  %vm1706 = vcmp.gt.s32.totalorder %v47, 9
  %v1707 = vsel %vm1706, 1, 0
  %1708 = vset.pattern.permute.xlu0 0
  %1709 = vperm.xlu0 %1708, %v1707
  %v1710 = vpop.permute.xlu0 %1709
  %vm1711 = vcmp.eq.s32.totalorder %v1710, 1
  %v1712 = vsel %vm1711, %v1705, %v1575
  %v1713 = vsel %vm1711, %v1699, %v1576
  %v1714 = vsel %vm1711, %v1705, 0.0
  %v1715 = vmul.f32 %v1714, %v479
  %1717 = vrot.lane.b32.xlu0 %v1715, 32
  %v1718 = vpop.permute.xlu0 %1717
  %v1720 = vsel %vm364, %v1718, 0.0
  %1721 = vadd.xlane.f32.xlu0 %v1720
  %v1722 = vpop.xlane.xlu0 %1721
  %v1723 = vadd.f32 %v1722, %v493
  %v1724 = vxor.u32 %v1723, 2147483648
  %v1725 = vmul.f32 %v1724, 1.442695
  %v1726 = vpow.pop %v1725
  %v1727 = vadd.f32 %v1726, 1.0
  %v1728 = vrcp.pop %v1727
  %v1729 = vmul.f32 1.0, %v1728
  %1731 = vset.pattern.permute.xlu0 0
  %1732 = vperm.xlu0 %1731, %v1729
  %v1733 = vpop.permute.xlu0 %1732
  %v1735 = vmul.f32 %v1714, %v1733
  %1737 = vrot.lane.b32.xlu0 %v1735, 64
  %v1738 = vpop.permute.xlu0 %1737
  %1740 = vst.msk [vmem:[%s7 + $0x10] sm:$0xff] %vm649, %v1738
  %1742 = vrot.lane.b32.xlu0 %v1712, 32
  %v1743 = vpop.permute.xlu0 %1742
  %v1744 = vsel %vm364, %v1743, 0
  %1746 = vmatprep.subr.mxu0 0.0
  %1747 = vmatpush1.msra.mxu0 %v355
  %1748 = vmatprep.subr.mxu0 0.0
  %1749 = vmatpush1.msra.mxu0 %v356
  %1750 = vmatprep.subr.mxu0 0.0
  %1751 = vmatpush1.msra.mxu0 %v357
  %1752 = vmatprep.subr.mxu0 0.0
  %1753 = vmatpush1.msra.mxu0 %v358
  %1754 = vmatprep.subr.mxu0 0.0
  %1755 = vmatpush1.msra.mxu0 0.0
  %1756 = vmatprep.subr.mxu0 0.0
  %1757 = vmatpush1.msra.mxu0 0.0
  %1758 = vmatprep.subr.mxu0 0.0
  %1759 = vmatpush1.msra.mxu0 0.0
  %1760 = vmatprep.subr.mxu0 0.0
  %1761 = vmatpush1.msra.mxu0 0.0
  %1762 = vmatprep.subr.mxu0 0.0
  %1763 = vmatpush1.msra.mxu0 0.0
  %1764 = vmatprep.subr.mxu0 0.0
  %1765 = vmatpush1.msra.mxu0 0.0
  %1766 = vmatprep.subr.mxu0 0.0
  %1767 = vmatpush1.msra.mxu0 0.0
  %1768 = vmatprep.subr.mxu0 0.0
  %1769 = vmatpush1.msra.mxu0 0.0
  %1770 = vmatprep.subr.mxu0 0.0
  %1771 = vmatpush1.msra.mxu0 0.0
  %1772 = vmatprep.subr.mxu0 0.0
  %1773 = vmatpush1.msra.mxu0 0.0
  %1774 = vmatprep.subr.mxu0 0.0
  %1775 = vmatpush1.msra.mxu0 0.0
  %1776 = vmatprep.subr.mxu0 0.0
  %1777 = vmatpush1.msra.mxu0 0.0
  %1778 = vmatprep.subr.mxu0 0.0
  %1779 = vmatpush1.msra.mxu0 0.0
  %1780 = vmatprep.subr.mxu0 0.0
  %1781 = vmatpush1.msra.mxu0 0.0
  %1782 = vmatprep.subr.mxu0 0.0
  %1783 = vmatpush1.msra.mxu0 0.0
  %1784 = vmatprep.subr.mxu0 0.0
  %1785 = vmatpush1.msra.mxu0 0.0
  %1786 = vmatprep.subr.mxu0 0.0
  %1787 = vmatpush1.msra.mxu0 0.0
  %1788 = vmatprep.subr.mxu0 0.0
  %1789 = vmatpush1.msra.mxu0 0.0
  %1790 = vmatprep.subr.mxu0 0.0
  %1791 = vmatpush1.msra.mxu0 0.0
  %1792 = vmatprep.subr.mxu0 0.0
  %1793 = vmatpush1.msra.mxu0 0.0
  %1794 = vmatprep.subr.mxu0 0.0
  %1795 = vmatpush1.msra.mxu0 0.0
  %1796 = vmatprep.subr.mxu0 0.0
  %1797 = vmatpush1.msra.mxu0 0.0
  %1798 = vmatprep.subr.mxu0 0.0
  %1799 = vmatpush1.msra.mxu0 0.0
  %1800 = vmatprep.subr.mxu0 0.0
  %1801 = vmatpush1.msra.mxu0 0.0
  %1802 = vmatprep.subr.mxu0 0.0
  %1803 = vmatpush1.msra.mxu0 0.0
  %1804 = vmatprep.subr.mxu0 0.0
  %1805 = vmatpush1.msra.mxu0 0.0
  %1806 = vmatprep.subr.mxu0 0.0
  %1807 = vmatpush1.msra.mxu0 0.0
  %1808 = vmatprep.subr.mxu0 0.0
  %1809 = vmatpush1.msra.mxu0 0.0
  %1810 = vmatprep.mubr.f32.mxu0 0.0
  %1811 = vmatmul.mubr.f32.gmra.mrb[0].mxu0 %v1744
  %v1812 = vpop.f32.mrb[0].mxu0
  %v1813 = vadd.f32 0.0, %v1812
  %v1814 = vpop.f32.mrb[0].mxu0
  %1815 = vdwg.mxu0
  %v1816 = vadd.f32 %v327, %v1813
  %v1817 = vxor.u32 %v1816, 2147483648
  %v1818 = vmul.f32 %v1817, 1.442695
  %v1819 = vpow.pop %v1818
  %v1820 = vadd.f32 %v1819, 1.0
  %v1821 = vrcp.pop %v1820
  %v1822 = vmul.f32 1.0, %v1821
  %v1823 = vmul.f32 %v1822, 2.0
  %v1824 = vsub.f32 %v1823, 1.0
  %v1825 = vsel %vm363, %v1824, %v1822
  %v1826 = vmul.f32 %v1825, %v1713
  %1828 = vrot.lane.b32.xlu0 %v1825, 64
  %v1829 = vpop.permute.xlu0 %1828
  %v1831 = vmul.f32 %v1825, %v1829
  %1833 = vrot.lane.b32.xlu0 %v1831, 32
  %v1834 = vpop.permute.xlu0 %1833
  %v1836 = vadd.f32 %v1826, %v1834
  %v1837 = vtanh.pop %v1836
  %1839 = vrot.lane.b32.xlu0 %v1837, 64
  %v1840 = vpop.permute.xlu0 %1839
  %v1842 = vmul.f32 %v1825, %v1840
  %vm1843 = vcmp.gt.s32.totalorder %v47, 10
  %v1844 = vsel %vm1843, 1, 0
  %1845 = vset.pattern.permute.xlu0 0
  %1846 = vperm.xlu0 %1845, %v1844
  %v1847 = vpop.permute.xlu0 %1846
  %vm1848 = vcmp.eq.s32.totalorder %v1847, 1
  %v1849 = vsel %vm1848, %v1842, %v1712
  %v1850 = vsel %vm1848, %v1836, %v1713
  %v1851 = vsel %vm1848, %v1842, 0.0
  %v1852 = vmul.f32 %v1851, %v479
  %1854 = vrot.lane.b32.xlu0 %v1852, 32
  %v1855 = vpop.permute.xlu0 %1854
  %v1857 = vsel %vm364, %v1855, 0.0
  %1858 = vadd.xlane.f32.xlu0 %v1857
  %v1859 = vpop.xlane.xlu0 %1858
  %v1860 = vadd.f32 %v1859, %v493
  %v1861 = vxor.u32 %v1860, 2147483648
  %v1862 = vmul.f32 %v1861, 1.442695
  %v1863 = vpow.pop %v1862
  %v1864 = vadd.f32 %v1863, 1.0
  %v1865 = vrcp.pop %v1864
  %v1866 = vmul.f32 1.0, %v1865
  %1868 = vset.pattern.permute.xlu0 0
  %1869 = vperm.xlu0 %1868, %v1866
  %v1870 = vpop.permute.xlu0 %1869
  %v1872 = vmul.f32 %v1851, %v1870
  %1874 = vrot.lane.b32.xlu0 %v1872, 96
  %v1875 = vpop.permute.xlu0 %1874
  %1877 = vst.msk [vmem:[%s7 + $0x10] sm:$0xff] %vm787, %v1875
  %1879 = vrot.lane.b32.xlu0 %v1849, 32
  %v1880 = vpop.permute.xlu0 %1879
  %v1881 = vsel %vm364, %v1880, 0
  %1883 = vmatprep.subr.mxu0 0.0
  %1884 = vmatpush1.msra.mxu0 %v355
  %1885 = vmatprep.subr.mxu0 0.0
  %1886 = vmatpush1.msra.mxu0 %v356
  %1887 = vmatprep.subr.mxu0 0.0
  %1888 = vmatpush1.msra.mxu0 %v357
  %1889 = vmatprep.subr.mxu0 0.0
  %1890 = vmatpush1.msra.mxu0 %v358
  %1891 = vmatprep.subr.mxu0 0.0
  %1892 = vmatpush1.msra.mxu0 0.0
  %1893 = vmatprep.subr.mxu0 0.0
  %1894 = vmatpush1.msra.mxu0 0.0
  %1895 = vmatprep.subr.mxu0 0.0
  %1896 = vmatpush1.msra.mxu0 0.0
  %1897 = vmatprep.subr.mxu0 0.0
  %1898 = vmatpush1.msra.mxu0 0.0
  %1899 = vmatprep.subr.mxu0 0.0
  %1900 = vmatpush1.msra.mxu0 0.0
  %1901 = vmatprep.subr.mxu0 0.0
  %1902 = vmatpush1.msra.mxu0 0.0
  %1903 = vmatprep.subr.mxu0 0.0
  %1904 = vmatpush1.msra.mxu0 0.0
  %1905 = vmatprep.subr.mxu0 0.0
  %1906 = vmatpush1.msra.mxu0 0.0
  %1907 = vmatprep.subr.mxu0 0.0
  %1908 = vmatpush1.msra.mxu0 0.0
  %1909 = vmatprep.subr.mxu0 0.0
  %1910 = vmatpush1.msra.mxu0 0.0
  %1911 = vmatprep.subr.mxu0 0.0
  %1912 = vmatpush1.msra.mxu0 0.0
  %1913 = vmatprep.subr.mxu0 0.0
  %1914 = vmatpush1.msra.mxu0 0.0
  %1915 = vmatprep.subr.mxu0 0.0
  %1916 = vmatpush1.msra.mxu0 0.0
  %1917 = vmatprep.subr.mxu0 0.0
  %1918 = vmatpush1.msra.mxu0 0.0
  %1919 = vmatprep.subr.mxu0 0.0
  %1920 = vmatpush1.msra.mxu0 0.0
  %1921 = vmatprep.subr.mxu0 0.0
  %1922 = vmatpush1.msra.mxu0 0.0
  %1923 = vmatprep.subr.mxu0 0.0
  %1924 = vmatpush1.msra.mxu0 0.0
  %1925 = vmatprep.subr.mxu0 0.0
  %1926 = vmatpush1.msra.mxu0 0.0
  %1927 = vmatprep.subr.mxu0 0.0
  %1928 = vmatpush1.msra.mxu0 0.0
  %1929 = vmatprep.subr.mxu0 0.0
  %1930 = vmatpush1.msra.mxu0 0.0
  %1931 = vmatprep.subr.mxu0 0.0
  %1932 = vmatpush1.msra.mxu0 0.0
  %1933 = vmatprep.subr.mxu0 0.0
  %1934 = vmatpush1.msra.mxu0 0.0
  %1935 = vmatprep.subr.mxu0 0.0
  %1936 = vmatpush1.msra.mxu0 0.0
  %1937 = vmatprep.subr.mxu0 0.0
  %1938 = vmatpush1.msra.mxu0 0.0
  %1939 = vmatprep.subr.mxu0 0.0
  %1940 = vmatpush1.msra.mxu0 0.0
  %1941 = vmatprep.subr.mxu0 0.0
  %1942 = vmatpush1.msra.mxu0 0.0
  %1943 = vmatprep.subr.mxu0 0.0
  %1944 = vmatpush1.msra.mxu0 0.0
  %1945 = vmatprep.subr.mxu0 0.0
  %1946 = vmatpush1.msra.mxu0 0.0
  %1947 = vmatprep.mubr.f32.mxu0 0.0
  %1948 = vmatmul.mubr.f32.gmra.mrb[0].mxu0 %v1881
  %v1949 = vpop.f32.mrb[0].mxu0
  %v1950 = vadd.f32 0.0, %v1949
  %v1951 = vpop.f32.mrb[0].mxu0
  %1952 = vdwg.mxu0
  %v1953 = vadd.f32 %v332, %v1950
  %v1954 = vxor.u32 %v1953, 2147483648
  %v1955 = vmul.f32 %v1954, 1.442695
  %v1956 = vpow.pop %v1955
  %v1957 = vadd.f32 %v1956, 1.0
  %v1958 = vrcp.pop %v1957
  %v1959 = vmul.f32 1.0, %v1958
  %v1960 = vmul.f32 %v1959, 2.0
  %v1961 = vsub.f32 %v1960, 1.0
  %v1962 = vsel %vm363, %v1961, %v1959
  %v1963 = vmul.f32 %v1962, %v1850
  %1965 = vrot.lane.b32.xlu0 %v1962, 64
  %v1966 = vpop.permute.xlu0 %1965
  %v1968 = vmul.f32 %v1962, %v1966
  %1970 = vrot.lane.b32.xlu0 %v1968, 32
  %v1971 = vpop.permute.xlu0 %1970
  %v1973 = vadd.f32 %v1963, %v1971
  %v1974 = vtanh.pop %v1973
  %1976 = vrot.lane.b32.xlu0 %v1974, 64
  %v1977 = vpop.permute.xlu0 %1976
  %v1979 = vmul.f32 %v1962, %v1977
  %vm1980 = vcmp.gt.s32.totalorder %v47, 11
  %v1981 = vsel %vm1980, 1, 0
  %1982 = vset.pattern.permute.xlu0 0
  %1983 = vperm.xlu0 %1982, %v1981
  %v1984 = vpop.permute.xlu0 %1983
  %vm1985 = vcmp.eq.s32.totalorder %v1984, 1
  %v1986 = vsel %vm1985, %v1979, %v1849
  %v1987 = vsel %vm1985, %v1973, %v1850
  %v1988 = vsel %vm1985, %v1979, 0.0
  %v1989 = vmul.f32 %v1988, %v479
  %1991 = vrot.lane.b32.xlu0 %v1989, 32
  %v1992 = vpop.permute.xlu0 %1991
  %v1994 = vsel %vm364, %v1992, 0.0
  %1995 = vadd.xlane.f32.xlu0 %v1994
  %v1996 = vpop.xlane.xlu0 %1995
  %v1997 = vadd.f32 %v1996, %v493
  %v1998 = vxor.u32 %v1997, 2147483648
  %v1999 = vmul.f32 %v1998, 1.442695
  %v2000 = vpow.pop %v1999
  %v2001 = vadd.f32 %v2000, 1.0
  %v2002 = vrcp.pop %v2001
  %v2003 = vmul.f32 1.0, %v2002
  %2005 = vset.pattern.permute.xlu0 0
  %2006 = vperm.xlu0 %2005, %v2003
  %v2007 = vpop.permute.xlu0 %2006
  %v2009 = vmul.f32 %v1988, %v2007
  %2010 = vst.msk [vmem:[%s7 + $0x10] sm:$0xff] %vm921, %v2009
  %2012 = vrot.lane.b32.xlu0 %v1986, 32
  %v2013 = vpop.permute.xlu0 %2012
  %v2014 = vsel %vm364, %v2013, 0
  %2016 = vmatprep.subr.mxu0 0.0
  %2017 = vmatpush1.msra.mxu0 %v355
  %2018 = vmatprep.subr.mxu0 0.0
  %2019 = vmatpush1.msra.mxu0 %v356
  %2020 = vmatprep.subr.mxu0 0.0
  %2021 = vmatpush1.msra.mxu0 %v357
  %2022 = vmatprep.subr.mxu0 0.0
  %2023 = vmatpush1.msra.mxu0 %v358
  %2024 = vmatprep.subr.mxu0 0.0
  %2025 = vmatpush1.msra.mxu0 0.0
  %2026 = vmatprep.subr.mxu0 0.0
  %2027 = vmatpush1.msra.mxu0 0.0
  %2028 = vmatprep.subr.mxu0 0.0
  %2029 = vmatpush1.msra.mxu0 0.0
  %2030 = vmatprep.subr.mxu0 0.0
  %2031 = vmatpush1.msra.mxu0 0.0
  %2032 = vmatprep.subr.mxu0 0.0
  %2033 = vmatpush1.msra.mxu0 0.0
  %2034 = vmatprep.subr.mxu0 0.0
  %2035 = vmatpush1.msra.mxu0 0.0
  %2036 = vmatprep.subr.mxu0 0.0
  %2037 = vmatpush1.msra.mxu0 0.0
  %2038 = vmatprep.subr.mxu0 0.0
  %2039 = vmatpush1.msra.mxu0 0.0
  %2040 = vmatprep.subr.mxu0 0.0
  %2041 = vmatpush1.msra.mxu0 0.0
  %2042 = vmatprep.subr.mxu0 0.0
  %2043 = vmatpush1.msra.mxu0 0.0
  %2044 = vmatprep.subr.mxu0 0.0
  %2045 = vmatpush1.msra.mxu0 0.0
  %2046 = vmatprep.subr.mxu0 0.0
  %2047 = vmatpush1.msra.mxu0 0.0
  %2048 = vmatprep.subr.mxu0 0.0
  %2049 = vmatpush1.msra.mxu0 0.0
  %2050 = vmatprep.subr.mxu0 0.0
  %2051 = vmatpush1.msra.mxu0 0.0
  %2052 = vmatprep.subr.mxu0 0.0
  %2053 = vmatpush1.msra.mxu0 0.0
  %2054 = vmatprep.subr.mxu0 0.0
  %2055 = vmatpush1.msra.mxu0 0.0
  %2056 = vmatprep.subr.mxu0 0.0
  %2057 = vmatpush1.msra.mxu0 0.0
  %2058 = vmatprep.subr.mxu0 0.0
  %2059 = vmatpush1.msra.mxu0 0.0
  %2060 = vmatprep.subr.mxu0 0.0
  %2061 = vmatpush1.msra.mxu0 0.0
  %2062 = vmatprep.subr.mxu0 0.0
  %2063 = vmatpush1.msra.mxu0 0.0
  %2064 = vmatprep.subr.mxu0 0.0
  %2065 = vmatpush1.msra.mxu0 0.0
  %2066 = vmatprep.subr.mxu0 0.0
  %2067 = vmatpush1.msra.mxu0 0.0
  %2068 = vmatprep.subr.mxu0 0.0
  %2069 = vmatpush1.msra.mxu0 0.0
  %2070 = vmatprep.subr.mxu0 0.0
  %2071 = vmatpush1.msra.mxu0 0.0
  %2072 = vmatprep.subr.mxu0 0.0
  %2073 = vmatpush1.msra.mxu0 0.0
  %2074 = vmatprep.subr.mxu0 0.0
  %2075 = vmatpush1.msra.mxu0 0.0
  %2076 = vmatprep.subr.mxu0 0.0
  %2077 = vmatpush1.msra.mxu0 0.0
  %2078 = vmatprep.subr.mxu0 0.0
  %2079 = vmatpush1.msra.mxu0 0.0
  %2080 = vmatprep.mubr.f32.mxu0 0.0
  %2081 = vmatmul.mubr.f32.gmra.mrb[0].mxu0 %v2014
  %v2082 = vpop.f32.mrb[0].mxu0
  %v2083 = vadd.f32 0.0, %v2082
  %v2084 = vpop.f32.mrb[0].mxu0
  %2085 = vdwg.mxu0
  %v2086 = vadd.f32 %v337, %v2083
  %v2087 = vxor.u32 %v2086, 2147483648
  %v2088 = vmul.f32 %v2087, 1.442695
  %v2089 = vpow.pop %v2088
  %v2090 = vadd.f32 %v2089, 1.0
  %v2091 = vrcp.pop %v2090
  %v2092 = vmul.f32 1.0, %v2091
  %v2093 = vmul.f32 %v2092, 2.0
  %v2094 = vsub.f32 %v2093, 1.0
  %v2095 = vsel %vm363, %v2094, %v2092
  %v2096 = vmul.f32 %v2095, %v1987
  %2098 = vrot.lane.b32.xlu0 %v2095, 64
  %v2099 = vpop.permute.xlu0 %2098
  %v2101 = vmul.f32 %v2095, %v2099
  %2103 = vrot.lane.b32.xlu0 %v2101, 32
  %v2104 = vpop.permute.xlu0 %2103
  %v2106 = vadd.f32 %v2096, %v2104
  %v2107 = vtanh.pop %v2106
  %2109 = vrot.lane.b32.xlu0 %v2107, 64
  %v2110 = vpop.permute.xlu0 %2109
  %v2112 = vmul.f32 %v2095, %v2110
  %vm2113 = vcmp.gt.s32.totalorder %v47, 12
  %v2114 = vsel %vm2113, 1, 0
  %2115 = vset.pattern.permute.xlu0 0
  %2116 = vperm.xlu0 %2115, %v2114
  %v2117 = vpop.permute.xlu0 %2116
  %vm2118 = vcmp.eq.s32.totalorder %v2117, 1
  %v2119 = vsel %vm2118, %v2112, %v1986
  %v2120 = vsel %vm2118, %v2106, %v1987
  %v2121 = vsel %vm2118, %v2112, 0.0
  %v2122 = vmul.f32 %v2121, %v479
  %2124 = vrot.lane.b32.xlu0 %v2122, 32
  %v2125 = vpop.permute.xlu0 %2124
  %v2127 = vsel %vm364, %v2125, 0.0
  %2128 = vadd.xlane.f32.xlu0 %v2127
  %v2129 = vpop.xlane.xlu0 %2128
  %v2130 = vadd.f32 %v2129, %v493
  %v2131 = vxor.u32 %v2130, 2147483648
  %v2132 = vmul.f32 %v2131, 1.442695
  %v2133 = vpow.pop %v2132
  %v2134 = vadd.f32 %v2133, 1.0
  %v2135 = vrcp.pop %v2134
  %v2136 = vmul.f32 1.0, %v2135
  %2138 = vset.pattern.permute.xlu0 0
  %2139 = vperm.xlu0 %2138, %v2136
  %v2140 = vpop.permute.xlu0 %2139
  %v2142 = vmul.f32 %v2121, %v2140
  %2144 = vrot.lane.b32.xlu0 %v2142, 32
  %v2145 = vpop.permute.xlu0 %2144
  %2147 = vst.msk [vmem:[%s7 + $0x18] sm:$0xff] %vm364, %v2145
  %2149 = vrot.lane.b32.xlu0 %v2119, 32
  %v2150 = vpop.permute.xlu0 %2149
  %v2151 = vsel %vm364, %v2150, 0
  %2153 = vmatprep.subr.mxu0 0.0
  %2154 = vmatpush1.msra.mxu0 %v355
  %2155 = vmatprep.subr.mxu0 0.0
  %2156 = vmatpush1.msra.mxu0 %v356
  %2157 = vmatprep.subr.mxu0 0.0
  %2158 = vmatpush1.msra.mxu0 %v357
  %2159 = vmatprep.subr.mxu0 0.0
  %2160 = vmatpush1.msra.mxu0 %v358
  %2161 = vmatprep.subr.mxu0 0.0
  %2162 = vmatpush1.msra.mxu0 0.0
  %2163 = vmatprep.subr.mxu0 0.0
  %2164 = vmatpush1.msra.mxu0 0.0
  %2165 = vmatprep.subr.mxu0 0.0
  %2166 = vmatpush1.msra.mxu0 0.0
  %2167 = vmatprep.subr.mxu0 0.0
  %2168 = vmatpush1.msra.mxu0 0.0
  %2169 = vmatprep.subr.mxu0 0.0
  %2170 = vmatpush1.msra.mxu0 0.0
  %2171 = vmatprep.subr.mxu0 0.0
  %2172 = vmatpush1.msra.mxu0 0.0
  %2173 = vmatprep.subr.mxu0 0.0
  %2174 = vmatpush1.msra.mxu0 0.0
  %2175 = vmatprep.subr.mxu0 0.0
  %2176 = vmatpush1.msra.mxu0 0.0
  %2177 = vmatprep.subr.mxu0 0.0
  %2178 = vmatpush1.msra.mxu0 0.0
  %2179 = vmatprep.subr.mxu0 0.0
  %2180 = vmatpush1.msra.mxu0 0.0
  %2181 = vmatprep.subr.mxu0 0.0
  %2182 = vmatpush1.msra.mxu0 0.0
  %2183 = vmatprep.subr.mxu0 0.0
  %2184 = vmatpush1.msra.mxu0 0.0
  %2185 = vmatprep.subr.mxu0 0.0
  %2186 = vmatpush1.msra.mxu0 0.0
  %2187 = vmatprep.subr.mxu0 0.0
  %2188 = vmatpush1.msra.mxu0 0.0
  %2189 = vmatprep.subr.mxu0 0.0
  %2190 = vmatpush1.msra.mxu0 0.0
  %2191 = vmatprep.subr.mxu0 0.0
  %2192 = vmatpush1.msra.mxu0 0.0
  %2193 = vmatprep.subr.mxu0 0.0
  %2194 = vmatpush1.msra.mxu0 0.0
  %2195 = vmatprep.subr.mxu0 0.0
  %2196 = vmatpush1.msra.mxu0 0.0
  %2197 = vmatprep.subr.mxu0 0.0
  %2198 = vmatpush1.msra.mxu0 0.0
  %2199 = vmatprep.subr.mxu0 0.0
  %2200 = vmatpush1.msra.mxu0 0.0
  %2201 = vmatprep.subr.mxu0 0.0
  %2202 = vmatpush1.msra.mxu0 0.0
  %2203 = vmatprep.subr.mxu0 0.0
  %2204 = vmatpush1.msra.mxu0 0.0
  %2205 = vmatprep.subr.mxu0 0.0
  %2206 = vmatpush1.msra.mxu0 0.0
  %2207 = vmatprep.subr.mxu0 0.0
  %2208 = vmatpush1.msra.mxu0 0.0
  %2209 = vmatprep.subr.mxu0 0.0
  %2210 = vmatpush1.msra.mxu0 0.0
  %2211 = vmatprep.subr.mxu0 0.0
  %2212 = vmatpush1.msra.mxu0 0.0
  %2213 = vmatprep.subr.mxu0 0.0
  %2214 = vmatpush1.msra.mxu0 0.0
  %2215 = vmatprep.subr.mxu0 0.0
  %2216 = vmatpush1.msra.mxu0 0.0
  %2217 = vmatprep.mubr.f32.mxu0 0.0
  %2218 = vmatmul.mubr.f32.gmra.mrb[0].mxu0 %v2151
  %v2219 = vpop.f32.mrb[0].mxu0
  %v2220 = vadd.f32 0.0, %v2219
  %v2221 = vpop.f32.mrb[0].mxu0
  %2222 = vdwg.mxu0
  %v2223 = vadd.f32 %v342, %v2220
  %v2224 = vxor.u32 %v2223, 2147483648
  %v2225 = vmul.f32 %v2224, 1.442695
  %v2226 = vpow.pop %v2225
  %v2227 = vadd.f32 %v2226, 1.0
  %v2228 = vrcp.pop %v2227
  %v2229 = vmul.f32 1.0, %v2228
  %v2230 = vmul.f32 %v2229, 2.0
  %v2231 = vsub.f32 %v2230, 1.0
  %v2232 = vsel %vm363, %v2231, %v2229
  %v2233 = vmul.f32 %v2232, %v2120
  %2235 = vrot.lane.b32.xlu0 %v2232, 64
  %v2236 = vpop.permute.xlu0 %2235
  %v2238 = vmul.f32 %v2232, %v2236
  %2240 = vrot.lane.b32.xlu0 %v2238, 32
  %v2241 = vpop.permute.xlu0 %2240
  %v2243 = vadd.f32 %v2233, %v2241
  %v2244 = vtanh.pop %v2243
  %2246 = vrot.lane.b32.xlu0 %v2244, 64
  %v2247 = vpop.permute.xlu0 %2246
  %v2249 = vmul.f32 %v2232, %v2247
  %vm2250 = vcmp.gt.s32.totalorder %v47, 13
  %v2251 = vsel %vm2250, 1, 0
  %2252 = vset.pattern.permute.xlu0 0
  %2253 = vperm.xlu0 %2252, %v2251
  %v2254 = vpop.permute.xlu0 %2253
  %vm2255 = vcmp.eq.s32.totalorder %v2254, 1
  %v2256 = vsel %vm2255, %v2249, %v2119
  %v2257 = vsel %vm2255, %v2243, %v2120
  %v2258 = vsel %vm2255, %v2249, 0.0
  %v2259 = vmul.f32 %v2258, %v479
  %2261 = vrot.lane.b32.xlu0 %v2259, 32
  %v2262 = vpop.permute.xlu0 %2261
  %v2264 = vsel %vm364, %v2262, 0.0
  %2265 = vadd.xlane.f32.xlu0 %v2264
  %v2266 = vpop.xlane.xlu0 %2265
  %v2267 = vadd.f32 %v2266, %v493
  %v2268 = vxor.u32 %v2267, 2147483648
  %v2269 = vmul.f32 %v2268, 1.442695
  %v2270 = vpow.pop %v2269
  %v2271 = vadd.f32 %v2270, 1.0
  %v2272 = vrcp.pop %v2271
  %v2273 = vmul.f32 1.0, %v2272
  %2275 = vset.pattern.permute.xlu0 0
  %2276 = vperm.xlu0 %2275, %v2273
  %v2277 = vpop.permute.xlu0 %2276
  %v2279 = vmul.f32 %v2258, %v2277
  %2281 = vrot.lane.b32.xlu0 %v2279, 64
  %v2282 = vpop.permute.xlu0 %2281
  %2284 = vst.msk [vmem:[%s7 + $0x18] sm:$0xff] %vm649, %v2282
  %2286 = vrot.lane.b32.xlu0 %v2256, 32
  %v2287 = vpop.permute.xlu0 %2286
  %v2288 = vsel %vm364, %v2287, 0
  %2290 = vmatprep.subr.mxu0 0.0
  %2291 = vmatpush1.msra.mxu0 %v355
  %2292 = vmatprep.subr.mxu0 0.0
  %2293 = vmatpush1.msra.mxu0 %v356
  %2294 = vmatprep.subr.mxu0 0.0
  %2295 = vmatpush1.msra.mxu0 %v357
  %2296 = vmatprep.subr.mxu0 0.0
  %2297 = vmatpush1.msra.mxu0 %v358
  %2298 = vmatprep.subr.mxu0 0.0
  %2299 = vmatpush1.msra.mxu0 0.0
  %2300 = vmatprep.subr.mxu0 0.0
  %2301 = vmatpush1.msra.mxu0 0.0
  %2302 = vmatprep.subr.mxu0 0.0
  %2303 = vmatpush1.msra.mxu0 0.0
  %2304 = vmatprep.subr.mxu0 0.0
  %2305 = vmatpush1.msra.mxu0 0.0
  %2306 = vmatprep.subr.mxu0 0.0
  %2307 = vmatpush1.msra.mxu0 0.0
  %2308 = vmatprep.subr.mxu0 0.0
  %2309 = vmatpush1.msra.mxu0 0.0
  %2310 = vmatprep.subr.mxu0 0.0
  %2311 = vmatpush1.msra.mxu0 0.0
  %2312 = vmatprep.subr.mxu0 0.0
  %2313 = vmatpush1.msra.mxu0 0.0
  %2314 = vmatprep.subr.mxu0 0.0
  %2315 = vmatpush1.msra.mxu0 0.0
  %2316 = vmatprep.subr.mxu0 0.0
  %2317 = vmatpush1.msra.mxu0 0.0
  %2318 = vmatprep.subr.mxu0 0.0
  %2319 = vmatpush1.msra.mxu0 0.0
  %2320 = vmatprep.subr.mxu0 0.0
  %2321 = vmatpush1.msra.mxu0 0.0
  %2322 = vmatprep.subr.mxu0 0.0
  %2323 = vmatpush1.msra.mxu0 0.0
  %2324 = vmatprep.subr.mxu0 0.0
  %2325 = vmatpush1.msra.mxu0 0.0
  %2326 = vmatprep.subr.mxu0 0.0
  %2327 = vmatpush1.msra.mxu0 0.0
  %2328 = vmatprep.subr.mxu0 0.0
  %2329 = vmatpush1.msra.mxu0 0.0
  %2330 = vmatprep.subr.mxu0 0.0
  %2331 = vmatpush1.msra.mxu0 0.0
  %2332 = vmatprep.subr.mxu0 0.0
  %2333 = vmatpush1.msra.mxu0 0.0
  %2334 = vmatprep.subr.mxu0 0.0
  %2335 = vmatpush1.msra.mxu0 0.0
  %2336 = vmatprep.subr.mxu0 0.0
  %2337 = vmatpush1.msra.mxu0 0.0
  %2338 = vmatprep.subr.mxu0 0.0
  %2339 = vmatpush1.msra.mxu0 0.0
  %2340 = vmatprep.subr.mxu0 0.0
  %2341 = vmatpush1.msra.mxu0 0.0
  %2342 = vmatprep.subr.mxu0 0.0
  %2343 = vmatpush1.msra.mxu0 0.0
  %2344 = vmatprep.subr.mxu0 0.0
  %2345 = vmatpush1.msra.mxu0 0.0
  %2346 = vmatprep.subr.mxu0 0.0
  %2347 = vmatpush1.msra.mxu0 0.0
  %2348 = vmatprep.subr.mxu0 0.0
  %2349 = vmatpush1.msra.mxu0 0.0
  %2350 = vmatprep.subr.mxu0 0.0
  %2351 = vmatpush1.msra.mxu0 0.0
  %2352 = vmatprep.subr.mxu0 0.0
  %2353 = vmatpush1.msra.mxu0 0.0
  %2354 = vmatprep.mubr.f32.mxu0 0.0
  %2355 = vmatmul.mubr.f32.gmra.mrb[0].mxu0 %v2288
  %v2356 = vpop.f32.mrb[0].mxu0
  %v2357 = vadd.f32 0.0, %v2356
  %v2358 = vpop.f32.mrb[0].mxu0
  %2359 = vdwg.mxu0
  %v2360 = vadd.f32 %v347, %v2357
  %v2361 = vxor.u32 %v2360, 2147483648
  %v2362 = vmul.f32 %v2361, 1.442695
  %v2363 = vpow.pop %v2362
  %v2364 = vadd.f32 %v2363, 1.0
  %v2365 = vrcp.pop %v2364
  %v2366 = vmul.f32 1.0, %v2365
  %v2367 = vmul.f32 %v2366, 2.0
  %v2368 = vsub.f32 %v2367, 1.0
  %v2369 = vsel %vm363, %v2368, %v2366
  %v2370 = vmul.f32 %v2369, %v2257
  %2372 = vrot.lane.b32.xlu0 %v2369, 64
  %v2373 = vpop.permute.xlu0 %2372
  %v2375 = vmul.f32 %v2369, %v2373
  %2377 = vrot.lane.b32.xlu0 %v2375, 32
  %v2378 = vpop.permute.xlu0 %2377
  %v2380 = vadd.f32 %v2370, %v2378
  %v2381 = vtanh.pop %v2380
  %2383 = vrot.lane.b32.xlu0 %v2381, 64
  %v2384 = vpop.permute.xlu0 %2383
  %v2386 = vmul.f32 %v2369, %v2384
  %vm2387 = vcmp.gt.s32.totalorder %v47, 14
  %v2388 = vsel %vm2387, 1, 0
  %2389 = vset.pattern.permute.xlu0 0
  %2390 = vperm.xlu0 %2389, %v2388
  %v2391 = vpop.permute.xlu0 %2390
  %vm2392 = vcmp.eq.s32.totalorder %v2391, 1
  %v2393 = vsel %vm2392, %v2386, %v2256
  %v2394 = vsel %vm2392, %v2380, %v2257
  %v2395 = vsel %vm2392, %v2386, 0.0
  %v2396 = vmul.f32 %v2395, %v479
  %2398 = vrot.lane.b32.xlu0 %v2396, 32
  %v2399 = vpop.permute.xlu0 %2398
  %v2401 = vsel %vm364, %v2399, 0.0
  %2402 = vadd.xlane.f32.xlu0 %v2401
  %v2403 = vpop.xlane.xlu0 %2402
  %v2404 = vadd.f32 %v2403, %v493
  %v2405 = vxor.u32 %v2404, 2147483648
  %v2406 = vmul.f32 %v2405, 1.442695
  %v2407 = vpow.pop %v2406
  %v2408 = vadd.f32 %v2407, 1.0
  %v2409 = vrcp.pop %v2408
  %v2410 = vmul.f32 1.0, %v2409
  %2412 = vset.pattern.permute.xlu0 0
  %2413 = vperm.xlu0 %2412, %v2410
  %v2414 = vpop.permute.xlu0 %2413
  %v2416 = vmul.f32 %v2395, %v2414
  %2418 = vrot.lane.b32.xlu0 %v2416, 96
  %v2419 = vpop.permute.xlu0 %2418
  %2421 = vst.msk [vmem:[%s7 + $0x18] sm:$0xff] %vm787, %v2419
  %2423 = vrot.lane.b32.xlu0 %v2393, 32
  %v2424 = vpop.permute.xlu0 %2423
  %v2425 = vsel %vm364, %v2424, 0
  %2427 = vmatprep.subr.mxu0 0.0
  %2428 = vmatpush1.msra.mxu0 %v355
  %2429 = vmatprep.subr.mxu0 0.0
  %2430 = vmatpush1.msra.mxu0 %v356
  %2431 = vmatprep.subr.mxu0 0.0
  %2432 = vmatpush1.msra.mxu0 %v357
  %2433 = vmatprep.subr.mxu0 0.0
  %2434 = vmatpush1.msra.mxu0 %v358
  %2435 = vmatprep.subr.mxu0 0.0
  %2436 = vmatpush1.msra.mxu0 0.0
  %2437 = vmatprep.subr.mxu0 0.0
  %2438 = vmatpush1.msra.mxu0 0.0
  %2439 = vmatprep.subr.mxu0 0.0
  %2440 = vmatpush1.msra.mxu0 0.0
  %2441 = vmatprep.subr.mxu0 0.0
  %2442 = vmatpush1.msra.mxu0 0.0
  %2443 = vmatprep.subr.mxu0 0.0
  %2444 = vmatpush1.msra.mxu0 0.0
  %2445 = vmatprep.subr.mxu0 0.0
  %2446 = vmatpush1.msra.mxu0 0.0
  %2447 = vmatprep.subr.mxu0 0.0
  %2448 = vmatpush1.msra.mxu0 0.0
  %2449 = vmatprep.subr.mxu0 0.0
  %2450 = vmatpush1.msra.mxu0 0.0
  %2451 = vmatprep.subr.mxu0 0.0
  %2452 = vmatpush1.msra.mxu0 0.0
  %2453 = vmatprep.subr.mxu0 0.0
  %2454 = vmatpush1.msra.mxu0 0.0
  %2455 = vmatprep.subr.mxu0 0.0
  %2456 = vmatpush1.msra.mxu0 0.0
  %2457 = vmatprep.subr.mxu0 0.0
  %2458 = vmatpush1.msra.mxu0 0.0
  %2459 = vmatprep.subr.mxu0 0.0
  %2460 = vmatpush1.msra.mxu0 0.0
  %2461 = vmatprep.subr.mxu0 0.0
  %2462 = vmatpush1.msra.mxu0 0.0
  %2463 = vmatprep.subr.mxu0 0.0
  %2464 = vmatpush1.msra.mxu0 0.0
  %2465 = vmatprep.subr.mxu0 0.0
  %2466 = vmatpush1.msra.mxu0 0.0
  %2467 = vmatprep.subr.mxu0 0.0
  %2468 = vmatpush1.msra.mxu0 0.0
  %2469 = vmatprep.subr.mxu0 0.0
  %2470 = vmatpush1.msra.mxu0 0.0
  %2471 = vmatprep.subr.mxu0 0.0
  %2472 = vmatpush1.msra.mxu0 0.0
  %2473 = vmatprep.subr.mxu0 0.0
  %2474 = vmatpush1.msra.mxu0 0.0
  %2475 = vmatprep.subr.mxu0 0.0
  %2476 = vmatpush1.msra.mxu0 0.0
  %2477 = vmatprep.subr.mxu0 0.0
  %2478 = vmatpush1.msra.mxu0 0.0
  %2479 = vmatprep.subr.mxu0 0.0
  %2480 = vmatpush1.msra.mxu0 0.0
  %2481 = vmatprep.subr.mxu0 0.0
  %2482 = vmatpush1.msra.mxu0 0.0
  %2483 = vmatprep.subr.mxu0 0.0
  %2484 = vmatpush1.msra.mxu0 0.0
  %2485 = vmatprep.subr.mxu0 0.0
  %2486 = vmatpush1.msra.mxu0 0.0
  %2487 = vmatprep.subr.mxu0 0.0
  %2488 = vmatpush1.msra.mxu0 0.0
  %2489 = vmatprep.subr.mxu0 0.0
  %2490 = vmatpush1.msra.mxu0 0.0
  %2491 = vmatprep.mubr.f32.mxu0 0.0
  %2492 = vmatmul.mubr.f32.gmra.mrb[0].mxu0 %v2425
  %v2493 = vpop.f32.mrb[0].mxu0
  %v2494 = vadd.f32 0.0, %v2493
  %v2495 = vpop.f32.mrb[0].mxu0
  %2496 = vdwg.mxu0
  %v2497 = vadd.f32 %v352, %v2494
  %v2498 = vxor.u32 %v2497, 2147483648
  %v2499 = vmul.f32 %v2498, 1.442695
  %v2500 = vpow.pop %v2499
  %v2501 = vadd.f32 %v2500, 1.0
  %v2502 = vrcp.pop %v2501
  %v2503 = vmul.f32 1.0, %v2502
  %v2504 = vmul.f32 %v2503, 2.0
  %v2505 = vsub.f32 %v2504, 1.0
  %v2506 = vsel %vm363, %v2505, %v2503
  %v2507 = vmul.f32 %v2506, %v2394
  %2509 = vrot.lane.b32.xlu0 %v2506, 64
  %v2510 = vpop.permute.xlu0 %2509
  %v2512 = vmul.f32 %v2506, %v2510
  %2514 = vrot.lane.b32.xlu0 %v2512, 32
  %v2515 = vpop.permute.xlu0 %2514
  %v2517 = vadd.f32 %v2507, %v2515
  %v2518 = vtanh.pop %v2517
  %2520 = vrot.lane.b32.xlu0 %v2518, 64
  %v2521 = vpop.permute.xlu0 %2520
  %v2523 = vmul.f32 %v2506, %v2521
  %vm2524 = vcmp.gt.s32.totalorder %v47, 15
  %v2525 = vsel %vm2524, 1, 0
  %2526 = vset.pattern.permute.xlu0 0
  %2527 = vperm.xlu0 %2526, %v2525
  %v2528 = vpop.permute.xlu0 %2527
  %vm2529 = vcmp.eq.s32.totalorder %v2528, 1
  %v2530 = vsel %vm2529, %v2523, %v2393
  %v2531 = vsel %vm2529, %v2517, %v2394
  %v2532 = vsel %vm2529, %v2523, 0.0
  %v2533 = vmul.f32 %v2532, %v479
  %2535 = vrot.lane.b32.xlu0 %v2533, 32
  %v2536 = vpop.permute.xlu0 %2535
  %v2538 = vsel %vm364, %v2536, 0.0
  %2539 = vadd.xlane.f32.xlu0 %v2538
  %v2540 = vpop.xlane.xlu0 %2539
  %v2541 = vadd.f32 %v2540, %v493
  %v2542 = vxor.u32 %v2541, 2147483648
  %v2543 = vmul.f32 %v2542, 1.442695
  %v2544 = vpow.pop %v2543
  %v2545 = vadd.f32 %v2544, 1.0
  %v2546 = vrcp.pop %v2545
  %v2547 = vmul.f32 1.0, %v2546
  %2549 = vset.pattern.permute.xlu0 0
  %2550 = vperm.xlu0 %2549, %v2547
  %v2551 = vpop.permute.xlu0 %2550
  %v2553 = vmul.f32 %v2532, %v2551
  %2554 = vst.msk [vmem:[%s7 + $0x18] sm:$0xff] %vm921, %v2553
  %2556 = vrot.lane.b32.xlu0 %v2530, 32
  %v2557 = vpop.permute.xlu0 %2556
  %2559 = vst.msk [vmem:[%s8] sm:$0xff] %vm364, %v2557
  %2561 = vrot.lane.b32.xlu0 %v2531, 96
  %v2562 = vpop.permute.xlu0 %2561
  %2564 = vst.msk [vmem:[%s9] sm:$0xff] %vm364, %v2562
  // Predicated region
  $region30: #{gated_rnn_encoder_forward.1} parent=0 // pred_check
    _
  $region31: #{gated_rnn_encoder_forward.1} parent=0 // pred_check_branch
    %2566 = sbr.rel (0) target = $region33
  $region32: #{gated_rnn_encoder_forward.1} parent=0 // pred_region
    _
  $region33: #{gated_rnn_encoder_forward.1} parent=0 // pred_fallthru
    _
  // Predicated region
  $region34: #{gated_rnn_encoder_forward.1} parent=0 // pred_check
    _
  $region35: #{gated_rnn_encoder_forward.1} parent=0 // pred_check_branch
    %2568 = sbr.rel (0) target = $region37
  $region36: #{gated_rnn_encoder_forward.1} parent=0 // pred_region
    _
  $region37: #{gated_rnn_encoder_forward.1} parent=0 // pred_fallthru
    _
  // Predicated region
  $region38: #{gated_rnn_encoder_forward.1} parent=0 // pred_check
    _
  $region39: #{gated_rnn_encoder_forward.1} parent=0 // pred_check_branch
    %2570 = sbr.rel (0) target = $region41
  $region40: #{gated_rnn_encoder_forward.1} parent=0 // pred_region
    _
  $region41: #{gated_rnn_encoder_forward.1} parent=0 // pred_fallthru
    _
  // Predicated region
  $region42: #{gated_rnn_encoder_forward.1} parent=0 // pred_check
    _
  $region43: #{gated_rnn_encoder_forward.1} parent=0 // pred_check_branch
    %2572 = sbr.rel (0) target = $region45
  $region44: #{gated_rnn_encoder_forward.1} parent=0 // pred_region
    _
  $region45: #{gated_rnn_encoder_forward.1} parent=0 // pred_fallthru
    _
  // Predicated region
  $region46: #{gated_rnn_encoder_forward.1} parent=0 // pred_check
    _
  $region47: #{gated_rnn_encoder_forward.1} parent=0 // pred_check_branch
    %2574 = sbr.rel (0) target = $region49
  $region48: #{gated_rnn_encoder_forward.1} parent=0 // pred_region
    _
  $region49: #{gated_rnn_encoder_forward.1} parent=0 // pred_fallthru
    _
  // Predicated region
  $region50: #{gated_rnn_encoder_forward.1} parent=0 // pred_check
    _
  $region51: #{gated_rnn_encoder_forward.1} parent=0 // pred_check_branch
    %2576 = sbr.rel (0) target = $region53
  $region52: #{gated_rnn_encoder_forward.1} parent=0 // pred_region
    _
  $region53: #{gated_rnn_encoder_forward.1} parent=0 // pred_fallthru
    _

</llo_original>
